<compile_context>
chip_gen: v7x
topology: tpu7x:2x2x1
jax: 0.10.0
libtpu: 0.0.40
codegen_flags: <defaults>
</compile_context>

<pallas_src>
import functools

import jax
import jax.numpy as jnp
from jax.experimental import pallas as pl
from jax.experimental.pallas import tpu as pltpu

ATT_EPS = 1e-7
BN_EPS = 1e-5


def _cdiv(a, b):
    return -(-a // b)


def _round_up(v, m):
    return _cdiv(v, m) * m


def psla_attention_kernel(x_ref, w_ref, b_ref, r_ref, o_ref,
                          acc_n_ref, acc_d_ref, *, true_w, mask_w):
    """Grid step = (batch tile i, W chunk j)."""
    tb, a_pad = acc_n_ref.shape          # batch tile, padded heads*C_out
    wc = x_ref.shape[1]                  # W chunk length
    j = pl.program_id(1)

    @pl.when(j == 0)
    def _():
        acc_n_ref[...] = jnp.zeros_like(acc_n_ref)
        acc_d_ref[...] = jnp.zeros_like(acc_d_ref)

    # One 2D MXU matmul for all TB batch elements, both branches, all heads.
    x_bf = x_ref[...].astype(jnp.bfloat16)                      # (TB*C_in, Wc)
    u = jnp.dot(w_ref[...], x_bf,
                preferred_element_type=jnp.float32) + b_ref[...]  # (TB*F, Wc)

    # sigmoid(z) = 0.5*tanh(0.5*z) + 0.5; the 0.5 is folded into w/b upstream.
    s = jnp.tanh(u) * 0.5 + 0.5

    # Layout-preserving split into per-batch att / feat halves (sublane slices
    # at multiples of 8), so only the attention half is clamped -- no lane mask.
    s3 = s.reshape(tb, 2 * a_pad, wc)
    att = jnp.clip(s3[:, :a_pad, :], ATT_EPS, 1.0 - ATT_EPS)
    feat = s3[:, a_pad:, :]

    if mask_w:  # static: only when W was zero-padded to a multiple of Wc
        lane = jax.lax.broadcasted_iota(jnp.int32, (1, 1, wc), 2)
        att = jnp.where(j * wc + lane < true_w, att, 0.0)

    # Accumulate Sum_w(att) and Sum_w(att*feat) over W chunks.
    acc_d_ref[...] += jnp.sum(att, axis=-1)
    acc_n_ref[...] += jnp.sum(att * feat, axis=-1)

    @pl.when(j == pl.num_programs(1) - 1)
    def _():
        ratio = acc_n_ref[...] * pl.reciprocal(acc_d_ref[...], approx=True)
        # Weighted head reduction: (TB, A) @ (A, 128); lane-dense store.
        o_ref[...] = jnp.dot(ratio, r_ref[...],
                             preferred_element_type=jnp.float32)


def _choose_tiles(n, c_in, w, f_dim):
    # W chunking: a single chunk may have any width (block == full array dim);
    # multiple chunks must be a multiple of 128 (BlockSpec lane rule).
    if w <= 512:
        nw, wc = 1, w
    else:
        nw = _cdiv(w, 512)
        wc = _round_up(_cdiv(w, nw), 128)
    w_pad = nw * wc

    # Batch tile (multiple of 8): target >= ~4096*128 z elements per step so
    # the ~0.35us per-step overhead stays hidden; cap so the TB-replicated
    # block-diagonal weight stays small (MXU/VMEM headroom, incl. v7x 64 MiB).
    tb = _round_up(max(8, 4096 // wc), 8)
    tb = min(tb, 32)
    while tb > 8 and tb * f_dim * tb * c_in * 2 > (2 << 20):
        tb -= 8
    tb = min(tb, _round_up(n, 8))
    # Keep >= 2 parallel batch tiles when the batch allows it (v7x: 2 TCs).
    while tb > 8 and _cdiv(_round_up(n, 8), tb) < 2:
        tb -= 8
    n_pad = _round_up(n, tb)
    return tb, wc, nw, w_pad, n_pad


def psla_attention(x_nchw, wa_t, ba, wf_t, bf, head_weights):
    """x_nchw: (N, C_in, 1, W).  Returns (N, C_out) float32."""
    n, c_in, hh, w = x_nchw.shape
    assert hh == 1, "PSLAAttention expects the H (freq) axis to be 1"
    heads, _, c_out = wa_t.shape
    att_lanes = heads * c_out
    a_pad = _round_up(att_lanes, 8)          # att/feat half, sublane-aligned
    f_dim = 2 * a_pad
    c_out_pad = _round_up(c_out, 128)        # lane-dense output slab

    tb, wc, nw, w_pad, n_pad = _choose_tiles(n, c_in, w, f_dim)

    # ---- single-batch fused weight/bias: rows [0,a_pad)=att, [a_pad,2a)=feat.
    w_att_rows = jnp.transpose(wa_t, (0, 2, 1)).reshape(att_lanes, c_in)
    w_feat_rows = jnp.transpose(wf_t, (0, 2, 1)).reshape(att_lanes, c_in)
    w_single = jnp.zeros((f_dim, c_in), jnp.float32)
    w_single = w_single.at[:att_lanes].set(w_att_rows)
    w_single = w_single.at[a_pad:a_pad + att_lanes].set(w_feat_rows)
    b_single = jnp.zeros((f_dim,), jnp.float32)
    b_single = b_single.at[:att_lanes].set(ba[:, 0, :].reshape(att_lanes))
    b_single = b_single.at[a_pad:a_pad + att_lanes].set(
        bf[:, 0, :].reshape(att_lanes))

    # Fold the 0.5 of the tanh-sigmoid into the weights/bias, replicate the
    # weight block-diagonally over the batch tile (resident in VMEM).
    w_bd = jnp.kron(jnp.eye(tb, dtype=jnp.float32),
                    0.5 * w_single).astype(jnp.bfloat16)   # (TB*F, TB*C_in)
    b_bd = jnp.tile(0.5 * b_single, tb).reshape(tb * f_dim, 1)

    # Head-reduction matrix with head weights baked in, padded to 128 lanes.
    eye = jnp.eye(c_out, dtype=jnp.float32)
    r_small = (head_weights.astype(jnp.float32)[:, None, None] * eye[None]
               ).reshape(att_lanes, c_out)
    r_pad = jnp.zeros((a_pad, c_out_pad), jnp.float32)
    r_pad = r_pad.at[:att_lanes, :c_out].set(r_small)

    # ---- activations: native (N, C_in, W) layout, f32 (cast to bf16 in-kernel)
    x3 = x_nchw[:, :, 0, :].astype(jnp.float32)             # (N, C_in, W)
    if n_pad != n or w_pad != w:
        x3 = jnp.pad(x3, ((0, n_pad - n), (0, 0), (0, w_pad - w)))
    x_flat = x3.reshape(n_pad * c_in, w_pad)                 # free reshape

    out_pad = pl.pallas_call(
        functools.partial(psla_attention_kernel,
                          true_w=w, mask_w=(w_pad != w)),
        out_shape=jax.ShapeDtypeStruct((n_pad, c_out_pad), jnp.float32),
        grid=(n_pad // tb, nw),
        in_specs=[
            pl.BlockSpec((tb * c_in, wc), lambda i, j: (i, j)),       # x tile
            pl.BlockSpec((tb * f_dim, tb * c_in), lambda i, j: (0, 0)),  # W (resident)
            pl.BlockSpec((tb * f_dim, 1), lambda i, j: (0, 0)),       # bias (resident)
            pl.BlockSpec((a_pad, c_out_pad), lambda i, j: (0, 0)),    # head reduce
        ],
        out_specs=pl.BlockSpec((tb, c_out_pad), lambda i, j: (i, 0)),
        scratch_shapes=[pltpu.VMEM((tb, a_pad), jnp.float32),   # Sum_w att*feat
                        pltpu.VMEM((tb, a_pad), jnp.float32)],  # Sum_w att
        compiler_params=pltpu.CompilerParams(
            # Batch tiles parallel (megacore sharding), W chunks sequential.
            dimension_semantics=("parallel", "arbitrary"),
            # ~40 MiB keeps headroom on v7x (64 MiB physical VMEM); actual use
            # with the default tiles is ~10-20 MiB.
            vmem_limit_bytes=40 * 1024 * 1024,
        ),
    )(x_flat, w_bd, b_bd, r_pad)

    return out_pad[:n, :c_out]


def fold_bn(conv_w, gamma, beta, mean, var):
    """Fold eval-mode BatchNorm2d into a bias-free 1x1 conv.

    conv_w: (C_out, C_in)  -> returns (w_t: (C_in, C_out), b: (1, C_out))."""
    scale = gamma / jnp.sqrt(var + BN_EPS)
    w_eff = conv_w * scale[:, None]            # (C_out, C_in)
    b_eff = beta - mean * scale                # (C_out,)
    return w_eff.T, b_eff[None, :]


def reference_forward(x_nchw, wa_t, ba, wf_t, bf, head_weights,
                      matmul_dtype=jnp.float32):
    """Pure-JAX reference.  matmul_dtype=bfloat16 matches the kernel's MXU input."""
    x = jnp.transpose(x_nchw[:, :, 0, :], (0, 2, 1)).astype(jnp.float32)  # (N,W,Cin)
    xm = x.astype(matmul_dtype)
    out = 0.0
    for h in range(wa_t.shape[0]):
        za = jnp.dot(xm, wa_t[h].astype(matmul_dtype),
                     preferred_element_type=jnp.float32) + ba[h]
        zf = jnp.dot(xm, wf_t[h].astype(matmul_dtype),
                     preferred_element_type=jnp.float32) + bf[h]
        att = jnp.clip(jax.nn.sigmoid(za), ATT_EPS, 1.0 - ATT_EPS)
        att = att / jnp.sum(att, axis=1, keepdims=True)
        feat = jax.nn.sigmoid(zf)
        out = out + head_weights[h] * jnp.sum(att * feat, axis=1)
    return out


if __name__ == "__main__":
    N, C_IN, C_OUT, W, HEADS = 2, 8, 16, 12, 4

    key = jax.random.PRNGKey(0)
    ks = jax.random.split(key, 11)

    x = jax.random.normal(ks[0], (N, C_IN, 1, W), dtype=jnp.float32)

    # Per-head conv weights (Conv2d(C_IN, C_OUT, 1, bias=False)) and BN params.
    conv_a_w = 0.3 * jax.random.normal(ks[1], (HEADS, C_OUT, C_IN), jnp.float32)
    conv_f_w = 0.3 * jax.random.normal(ks[2], (HEADS, C_OUT, C_IN), jnp.float32)
    bn_a_gamma = 1.0 + 0.1 * jax.random.normal(ks[3], (HEADS, C_OUT), jnp.float32)
    bn_a_beta = 0.1 * jax.random.normal(ks[4], (HEADS, C_OUT), jnp.float32)
    bn_a_mean = 0.1 * jax.random.normal(ks[5], (HEADS, C_OUT), jnp.float32)
    bn_a_var = 0.5 + jax.random.uniform(ks[6], (HEADS, C_OUT), jnp.float32)
    bn_f_gamma = 1.0 + 0.1 * jax.random.normal(ks[7], (HEADS, C_OUT), jnp.float32)
    bn_f_beta = 0.1 * jax.random.normal(ks[8], (HEADS, C_OUT), jnp.float32)
    bn_f_mean = 0.1 * jax.random.normal(ks[9], (HEADS, C_OUT), jnp.float32)
    bn_f_var = 0.5 + jax.random.uniform(ks[10], (HEADS, C_OUT), jnp.float32)

    head_weights = jnp.full((HEADS,), 1.0 / HEADS, dtype=jnp.float32)

    wa_t, ba, wf_t, bf = [], [], [], []
    for h in range(HEADS):
        w_t, b = fold_bn(conv_a_w[h], bn_a_gamma[h], bn_a_beta[h],
                         bn_a_mean[h], bn_a_var[h])
        wa_t.append(w_t); ba.append(b)
        w_t, b = fold_bn(conv_f_w[h], bn_f_gamma[h], bn_f_beta[h],
                         bn_f_mean[h], bn_f_var[h])
        wf_t.append(w_t); bf.append(b)
    wa_t = jnp.stack(wa_t)   # (HEADS, C_IN, C_OUT)
    ba = jnp.stack(ba)       # (HEADS, 1, C_OUT)
    wf_t = jnp.stack(wf_t)
    bf = jnp.stack(bf)

    out = psla_attention(x, wa_t, ba, wf_t, bf, head_weights)
    out = jax.block_until_ready(out)

    assert out.shape == (N, C_OUT)

    # The kernel uses bf16 MXU inputs, an EUP tanh-based sigmoid, and an
    # approximate (EUP) reciprocal for the attention normalization: compare
    # tightly against a precision-matched reference and loosely against the
    # pure-f32 reference.
    ref_match = reference_forward(x, wa_t, ba, wf_t, bf, head_weights,
                                  matmul_dtype=jnp.bfloat16)
    ref_f32 = reference_forward(x, wa_t, ba, wf_t, bf, head_weights)
    assert jnp.allclose(out, ref_match, atol=1e-2, rtol=2e-2), (out, ref_match)
    assert jnp.allclose(out, ref_f32, atol=3e-2, rtol=3e-2), (out, ref_f32)

    print("KERNEL_OK")
</pallas_src>

<mosaic_0001>
module attributes {stable_mosaic.version = 11 : i64} {
  func.func @psla_attention_kernel(%arg0: i32, %arg1: i32, %arg2: memref<64x12xf32, #tpu.memory_space<vmem>>, %arg3: memref<1024x64xbf16, #tpu.memory_space<vmem>>, %arg4: memref<1024x1xf32, #tpu.memory_space<vmem>>, %arg5: memref<64x128xf32, #tpu.memory_space<vmem>>, %arg6: memref<8x128xf32, #tpu.memory_space<vmem>>, %arg7: memref<8x64xf32, #tpu.memory_space<vmem>>, %arg8: memref<8x64xf32, #tpu.memory_space<vmem>>) attributes {dimension_semantics = [#tpu.dimension_semantics<parallel>, #tpu.dimension_semantics<arbitrary>], iteration_bounds = array<i64: 1, 1>, scalar_prefetch = 0 : i64, scratch_operands = 2 : i64, tpu.core_type = #tpu.core_type<tc>, window_params = [{transform_indices = @transform_0, window_bounds = array<i64: 64, 12>}, {pipeline_mode = #tpu.pipeline_mode<synchronous>, transform_indices = @transform_1, window_bounds = array<i64: 1024, 64>}, {pipeline_mode = #tpu.pipeline_mode<synchronous>, transform_indices = @transform_2, window_bounds = array<i64: 1024, 1>}, {pipeline_mode = #tpu.pipeline_mode<synchronous>, transform_indices = @transform_3, window_bounds = array<i64: 64, 128>}, {transform_indices = @transform_4, window_bounds = array<i64: 8, 128>}]} {
    %c0_i32 = arith.constant 0 : i32
    %0 = arith.cmpi eq, %arg1, %c0_i32 : i32
    %1 = arith.extui %0 : i1 to i32
    %c0_i32_0 = arith.constant 0 : i32
    %2 = arith.cmpi ne, %1, %c0_i32_0 : i32
    scf.if %2 {
      %cst_22 = arith.constant 0.000000e+00 : f32
      %34 = vector.broadcast %cst_22 : f32 to vector<8x64xf32>
      %c0_23 = arith.constant 0 : index
      %c0_24 = arith.constant 0 : index
      %35 = vector.load %arg7[%c0_23, %c0_24] : memref<8x64xf32, #tpu.memory_space<vmem>>, vector<8x64xf32>
      tpu.vector_store %arg7[%c0_23, %c0_24], %34 {strides = array<i32>} : memref<8x64xf32, #tpu.memory_space<vmem>>, vector<8x64xf32>,
      %cst_25 = arith.constant 0.000000e+00 : f32
      %36 = vector.broadcast %cst_25 : f32 to vector<8x64xf32>
      %c0_26 = arith.constant 0 : index
      %c0_27 = arith.constant 0 : index
      %37 = vector.load %arg8[%c0_26, %c0_27] : memref<8x64xf32, #tpu.memory_space<vmem>>, vector<8x64xf32>
      tpu.vector_store %arg8[%c0_26, %c0_27], %36 {strides = array<i32>} : memref<8x64xf32, #tpu.memory_space<vmem>>, vector<8x64xf32>,
    } else {
    }
    %c0 = arith.constant 0 : index
    %c0_1 = arith.constant 0 : index
    %3 = vector.load %arg2[%c0, %c0_1] : memref<64x12xf32, #tpu.memory_space<vmem>>, vector<64x12xf32>
    %4 = arith.truncf %3 : vector<64x12xf32> to vector<64x12xbf16>
    %c0_2 = arith.constant 0 : index
    %c0_3 = arith.constant 0 : index
    %5 = vector.load %arg3[%c0_2, %c0_3] : memref<1024x64xbf16, #tpu.memory_space<vmem>>, vector<1024x64xbf16>
    %cst = arith.constant dense<0.000000e+00> : vector<1024x12xf32>
    %6 = tpu.matmul %5, %4, %cst {dimension_numbers = #tpu.dot_dimension_numbers<[1], [0], [0], [1], [0, 0, 1, 1], [], []>} : vector<1024x64xbf16>, vector<64x12xbf16>, vector<1024x12xf32> -> vector<1024x12xf32>
    %c0_4 = arith.constant 0 : index
    %c0_5 = arith.constant 0 : index
    %7 = vector.load %arg4[%c0_4, %c0_5] : memref<1024x1xf32, #tpu.memory_space<vmem>>, vector<1024x1xf32>
    %8 = vector.broadcast %7 : vector<1024x1xf32> to vector<1024x12xf32>
    %9 = arith.addf %6, %8 : vector<1024x12xf32>
    %10 = math.tanh %9 : vector<1024x12xf32>
    %cst_6 = arith.constant 5.000000e-01 : f32
    %11 = vector.broadcast %cst_6 : f32 to vector<1024x12xf32>
    %12 = arith.mulf %10, %11 : vector<1024x12xf32>
    %cst_7 = arith.constant 5.000000e-01 : f32
    %13 = vector.broadcast %cst_7 : f32 to vector<1024x12xf32>
    %14 = arith.addf %12, %13 : vector<1024x12xf32>
    %15 = vector.shape_cast %14 : vector<1024x12xf32> to vector<8x128x12xf32>
    %16 = vector.extract_strided_slice %15 {offsets = [0, 0, 0], sizes = [8, 64, 12], strides = [1, 1, 1]} : vector<8x128x12xf32> to vector<8x64x12xf32>
    %cst_8 = arith.constant 1.000000e-07 : f32
    %cst_9 = arith.constant 0.99999988 : f32
    %17 = vector.broadcast %cst_8 : f32 to vector<8x64x12xf32>
    %18 = arith.maximumf %17, %16 : vector<8x64x12xf32>
    %19 = vector.broadcast %cst_9 : f32 to vector<8x64x12xf32>
    %20 = arith.minimumf %19, %18 : vector<8x64x12xf32>
    %21 = vector.extract_strided_slice %15 {offsets = [0, 64, 0], sizes = [8, 64, 12], strides = [1, 1, 1]} : vector<8x128x12xf32> to vector<8x64x12xf32>
    %c0_10 = arith.constant 0 : index
    %c0_11 = arith.constant 0 : index
    %22 = vector.load %arg8[%c0_10, %c0_11] : memref<8x64xf32, #tpu.memory_space<vmem>>, vector<8x64xf32>
    %cst_12 = arith.constant dense<0.000000e+00> : vector<8x64xf32>
    %23 = vector.multi_reduction <add>, %20, %cst_12 [2] : vector<8x64x12xf32> to vector<8x64xf32>
    %24 = arith.addf %22, %23 : vector<8x64xf32>
    %c0_13 = arith.constant 0 : index
    %c0_14 = arith.constant 0 : index
    %25 = vector.load %arg8[%c0_13, %c0_14] : memref<8x64xf32, #tpu.memory_space<vmem>>, vector<8x64xf32>
    tpu.vector_store %arg8[%c0_13, %c0_14], %24 {strides = array<i32>} : memref<8x64xf32, #tpu.memory_space<vmem>>, vector<8x64xf32>,
    %c0_15 = arith.constant 0 : index
    %c0_16 = arith.constant 0 : index
    %26 = vector.load %arg7[%c0_15, %c0_16] : memref<8x64xf32, #tpu.memory_space<vmem>>, vector<8x64xf32>
    %27 = arith.mulf %20, %21 : vector<8x64x12xf32>
    %cst_17 = arith.constant dense<0.000000e+00> : vector<8x64xf32>
    %28 = vector.multi_reduction <add>, %27, %cst_17 [2] : vector<8x64x12xf32> to vector<8x64xf32>
    %29 = arith.addf %26, %28 : vector<8x64xf32>
    %c0_18 = arith.constant 0 : index
    %c0_19 = arith.constant 0 : index
    %30 = vector.load %arg7[%c0_18, %c0_19] : memref<8x64xf32, #tpu.memory_space<vmem>>, vector<8x64xf32>
    tpu.vector_store %arg7[%c0_18, %c0_19], %29 {strides = array<i32>} : memref<8x64xf32, #tpu.memory_space<vmem>>, vector<8x64xf32>,
    %c0_i32_20 = arith.constant 0 : i32
    %31 = arith.cmpi eq, %arg1, %c0_i32_20 : i32
    %32 = arith.extui %31 : i1 to i32
    %c0_i32_21 = arith.constant 0 : i32
    %33 = arith.cmpi ne, %32, %c0_i32_21 : i32
    scf.if %33 {
      %c0_22 = arith.constant 0 : index
      %c0_23 = arith.constant 0 : index
      %34 = vector.load %arg7[%c0_22, %c0_23] : memref<8x64xf32, #tpu.memory_space<vmem>>, vector<8x64xf32>
      %c0_24 = arith.constant 0 : index
      %c0_25 = arith.constant 0 : index
      %35 = vector.load %arg8[%c0_24, %c0_25] : memref<8x64xf32, #tpu.memory_space<vmem>>, vector<8x64xf32>
      %36 = tpu.reciprocal %35 {approx = true} : vector<8x64xf32> -> vector<8x64xf32>
      %37 = arith.mulf %34, %36 : vector<8x64xf32>
      %c0_26 = arith.constant 0 : index
      %c0_27 = arith.constant 0 : index
      %38 = vector.load %arg5[%c0_26, %c0_27] : memref<64x128xf32, #tpu.memory_space<vmem>>, vector<64x128xf32>
      %cst_28 = arith.constant dense<0.000000e+00> : vector<8x128xf32>
      %39 = tpu.matmul %37, %38, %cst_28 {dimension_numbers = #tpu.dot_dimension_numbers<[1], [0], [0], [1], [0, 0, 1, 1], [], []>} : vector<8x64xf32>, vector<64x128xf32>, vector<8x128xf32> -> vector<8x128xf32>
      %c0_29 = arith.constant 0 : index
      %c0_30 = arith.constant 0 : index
      %40 = vector.load %arg6[%c0_29, %c0_30] : memref<8x128xf32, #tpu.memory_space<vmem>>, vector<8x128xf32>
      tpu.vector_store %arg6[%c0_29, %c0_30], %39 {strides = array<i32>} : memref<8x128xf32, #tpu.memory_space<vmem>>, vector<8x128xf32>,
    } else {
    }
    return
  }
  func.func @transform_0(%arg0: i32, %arg1: i32) -> (i32, i32) {
    %c0_i32 = arith.constant 0 : i32
    return %arg0, %arg1 : i32, i32
  }
  func.func @transform_1(%arg0: i32, %arg1: i32) -> (i32, i32) {
    %c0_i32 = arith.constant 0 : i32
    %c0_i32_0 = arith.constant 0 : i32
    %c0_i32_1 = arith.constant 0 : i32
    return %c0_i32, %c0_i32_0 : i32, i32
  }
  func.func @transform_2(%arg0: i32, %arg1: i32) -> (i32, i32) {
    %c0_i32 = arith.constant 0 : i32
    %c0_i32_0 = arith.constant 0 : i32
    %c0_i32_1 = arith.constant 0 : i32
    return %c0_i32, %c0_i32_0 : i32, i32
  }
  func.func @transform_3(%arg0: i32, %arg1: i32) -> (i32, i32) {
    %c0_i32 = arith.constant 0 : i32
    %c0_i32_0 = arith.constant 0 : i32
    %c0_i32_1 = arith.constant 0 : i32
    return %c0_i32, %c0_i32_0 : i32, i32
  }
  func.func @transform_4(%arg0: i32, %arg1: i32) -> (i32, i32) {
    %c0_i32 = arith.constant 0 : i32
    %c0_i32_0 = arith.constant 0 : i32
    return %arg0, %c0_i32 : i32, i32
  }
}

</mosaic_0001>

<llo_original>
// kernel: tpu_custom_call.1
$region0: #{tpu_custom_call.1}
  #allocation0 [shape = 'u32[]', space=smem, size = 0x4, offset = 0x4, fixed_abs, tag = 'smem constant byte address 0x4 - core index']
  #allocation1 [shape = 'u32[144,128]{1,0:T(1,128)}', space=vmem, size = 0x12000, scoped, tag = 'internal scratch']
  #allocation2 [shape = 'f32[8,64]{1,0:T(8,128)}', space=vmem, size = 0x1000, scoped, tag = 'scratch operand']
  #allocation3 [shape = 'f32[8,64]{1,0:T(8,128)}', space=vmem, size = 0x1000, scoped, tag = 'scratch operand']
  %s0 = inlined_call_operand.vmem [shape: f32[64,12], index: 0, kind: input, shape index: {}]
  %s1 = inlined_call_operand.vmem [shape: bf16[1024,64], index: 1, kind: input, shape index: {}]
  %s2 = inlined_call_operand.vmem [shape: f32[1024,1], index: 2, kind: input, shape index: {}]
  %s3 = inlined_call_operand.vmem [shape: f32[64,128], index: 3, kind: input, shape index: {}]
  %s4 = inlined_call_operand.hbm [shape: f32[8,128], index: 4, kind: output, shape index: {}]
  %s5 = sld [smem:[#allocation0]]
  $region34: #{tpu_custom_call.1} parent=0
    _
  %s7 = ssub.s32 1, %s5
  %s8 = scalar_select 0, %s7, %s5
  $region1: #{tpu_custom_call.1} parent=0
    #allocation4 [shape = 'u8[4096]{0}', space=vmem, size = 0x1000, scoped, tag = 'output window, operand 0, single buffered']
    #allocation5 [shape = 's32[1]{0}', space=sflag, size = 0x4, scoped, tag = 'scoped memory for tpu_custom_call.1']
    %9 = vsyncpa [#allocation5], 0
    // Predicated region
    $region2: #{tpu_custom_call.1} parent=1 // pred_check
      _
    $region3: #{tpu_custom_call.1} parent=1 // pred_check_branch
      %11 = sbr.rel (0) target = $region5
    $region4: #{tpu_custom_call.1} parent=1 // pred_region
      _
    $region5: #{tpu_custom_call.1} parent=1 // pred_fallthru
      _
    // Predicated region
    $region6: #{tpu_custom_call.1} parent=1 // pred_check
      _
    $region7: #{tpu_custom_call.1} parent=1 // pred_check_branch
      %13 = sbr.rel (0) target = $region9
    $region8: #{tpu_custom_call.1} parent=1 // pred_region
      _
    $region9: #{tpu_custom_call.1} parent=1 // pred_fallthru
      _
    // Predicated region
    $region10: #{tpu_custom_call.1} parent=1 // pred_check
      _
    $region11: #{tpu_custom_call.1} parent=1 // pred_check_branch
      %15 = sbr.rel (0) target = $region13
    $region12: #{tpu_custom_call.1} parent=1 // pred_region
      _
    $region13: #{tpu_custom_call.1} parent=1 // pred_fallthru
      _
    // Predicated region
    $region14: #{tpu_custom_call.1} parent=1 // pred_check
      _
    $region15: #{tpu_custom_call.1} parent=1 // pred_check_branch
      %17 = sbr.rel (0) target = $region17
    $region16: #{tpu_custom_call.1} parent=1 // pred_region
      _
    $region17: #{tpu_custom_call.1} parent=1 // pred_fallthru
      _
    %p19 = scmp.eq.s32.totalorder 0, 0
    // Predicated region
    $region18: #{tpu_custom_call.1} parent=1 // pred_check
      %p20 = pneg %p19
    $region19: #{tpu_custom_call.1} parent=1 // pred_check_branch
      %22 = sbr.rel (%p20) target = $region21
    $region20: #{tpu_custom_call.1} parent=1 // pred_region
      %vm23 = vcmask 523264
      %24 = vst.msk [vmem:[#allocation2] sm:$0xff] %vm23, 0.0
      %25 = vst.msk [vmem:[#allocation3] sm:$0xff] %vm23, 0.0
    $region21: #{tpu_custom_call.1} parent=1 // pred_fallthru
      _
    %v26 = vld [vmem:[%s0] sm:$0xff]
    %v27 = vld [vmem:[%s0 + $0x8] sm:$0xff]
    %v28 = vld [vmem:[%s0 + $0x10] sm:$0xff]
    %v29 = vld [vmem:[%s0 + $0x18] sm:$0xff]
    %v30 = vld [vmem:[%s0 + $0x20] sm:$0xff]
    %v31 = vld [vmem:[%s0 + $0x28] sm:$0xff]
    %v32 = vld [vmem:[%s0 + $0x30] sm:$0xff]
    %v33 = vld [vmem:[%s0 + $0x38] sm:$0xff]
    %v34 = vpack.c.bf16 %v27, %v26
    %v35 = vpack.c.bf16 %v29, %v28
    %v36 = vpack.c.bf16 %v31, %v30
    %v37 = vpack.c.bf16 %v33, %v32
    %v38 = vld [vmem:[%s1] sm:$0xf]
    %v39 = vld [vmem:[%s1 + $0x4] sm:$0xf]
    %v40 = vld [vmem:[%s1 + $0x8] sm:$0xf]
    %v41 = vld [vmem:[%s1 + $0xc] sm:$0xf]
    %v42 = vld [vmem:[%s1 + $0x10] sm:$0xf]
    %v43 = vld [vmem:[%s1 + $0x14] sm:$0xf]
    %v44 = vld [vmem:[%s1 + $0x18] sm:$0xf]
    %v45 = vld [vmem:[%s1 + $0x1c] sm:$0xf]
    %v46 = vld [vmem:[%s1 + $0x20] sm:$0xf]
    %v47 = vld [vmem:[%s1 + $0x24] sm:$0xf]
    %v48 = vld [vmem:[%s1 + $0x28] sm:$0xf]
    %v49 = vld [vmem:[%s1 + $0x2c] sm:$0xf]
    %v50 = vld [vmem:[%s1 + $0x30] sm:$0xf]
    %v51 = vld [vmem:[%s1 + $0x34] sm:$0xf]
    %v52 = vld [vmem:[%s1 + $0x38] sm:$0xf]
    %v53 = vld [vmem:[%s1 + $0x3c] sm:$0xf]
    %v54 = vld [vmem:[%s1 + $0x40] sm:$0xf]
    %v55 = vld [vmem:[%s1 + $0x44] sm:$0xf]
    %v56 = vld [vmem:[%s1 + $0x48] sm:$0xf]
    %v57 = vld [vmem:[%s1 + $0x4c] sm:$0xf]
    %v58 = vld [vmem:[%s1 + $0x50] sm:$0xf]
    %v59 = vld [vmem:[%s1 + $0x54] sm:$0xf]
    %v60 = vld [vmem:[%s1 + $0x58] sm:$0xf]
    %v61 = vld [vmem:[%s1 + $0x5c] sm:$0xf]
    %v62 = vld [vmem:[%s1 + $0x60] sm:$0xf]
    %v63 = vld [vmem:[%s1 + $0x64] sm:$0xf]
    %v64 = vld [vmem:[%s1 + $0x68] sm:$0xf]
    %v65 = vld [vmem:[%s1 + $0x6c] sm:$0xf]
    %v66 = vld [vmem:[%s1 + $0x70] sm:$0xf]
    %v67 = vld [vmem:[%s1 + $0x74] sm:$0xf]
    %v68 = vld [vmem:[%s1 + $0x78] sm:$0xf]
    %v69 = vld [vmem:[%s1 + $0x7c] sm:$0xf]
    %v70 = vld [vmem:[%s1 + $0x80] sm:$0xf]
    %v71 = vld [vmem:[%s1 + $0x84] sm:$0xf]
    %v72 = vld [vmem:[%s1 + $0x88] sm:$0xf]
    %v73 = vld [vmem:[%s1 + $0x8c] sm:$0xf]
    %v74 = vld [vmem:[%s1 + $0x90] sm:$0xf]
    %v75 = vld [vmem:[%s1 + $0x94] sm:$0xf]
    %v76 = vld [vmem:[%s1 + $0x98] sm:$0xf]
    %v77 = vld [vmem:[%s1 + $0x9c] sm:$0xf]
    %v78 = vld [vmem:[%s1 + $0xa0] sm:$0xf]
    %v79 = vld [vmem:[%s1 + $0xa4] sm:$0xf]
    %v80 = vld [vmem:[%s1 + $0xa8] sm:$0xf]
    %v81 = vld [vmem:[%s1 + $0xac] sm:$0xf]
    %v82 = vld [vmem:[%s1 + $0xb0] sm:$0xf]
    %v83 = vld [vmem:[%s1 + $0xb4] sm:$0xf]
    %v84 = vld [vmem:[%s1 + $0xb8] sm:$0xf]
    %v85 = vld [vmem:[%s1 + $0xbc] sm:$0xf]
    %v86 = vld [vmem:[%s1 + $0xc0] sm:$0xf]
    %v87 = vld [vmem:[%s1 + $0xc4] sm:$0xf]
    %v88 = vld [vmem:[%s1 + $0xc8] sm:$0xf]
    %v89 = vld [vmem:[%s1 + $0xcc] sm:$0xf]
    %v90 = vld [vmem:[%s1 + $0xd0] sm:$0xf]
    %v91 = vld [vmem:[%s1 + $0xd4] sm:$0xf]
    %v92 = vld [vmem:[%s1 + $0xd8] sm:$0xf]
    %v93 = vld [vmem:[%s1 + $0xdc] sm:$0xf]
    %v94 = vld [vmem:[%s1 + $0xe0] sm:$0xf]
    %v95 = vld [vmem:[%s1 + $0xe4] sm:$0xf]
    %v96 = vld [vmem:[%s1 + $0xe8] sm:$0xf]
    %v97 = vld [vmem:[%s1 + $0xec] sm:$0xf]
    %v98 = vld [vmem:[%s1 + $0xf0] sm:$0xf]
    %v99 = vld [vmem:[%s1 + $0xf4] sm:$0xf]
    %v100 = vld [vmem:[%s1 + $0xf8] sm:$0xf]
    %v101 = vld [vmem:[%s1 + $0xfc] sm:$0xf]
    %v102 = vld [vmem:[%s1 + $0x100] sm:$0xf]
    %v103 = vld [vmem:[%s1 + $0x104] sm:$0xf]
    %v104 = vld [vmem:[%s1 + $0x108] sm:$0xf]
    %v105 = vld [vmem:[%s1 + $0x10c] sm:$0xf]
    %v106 = vld [vmem:[%s1 + $0x110] sm:$0xf]
    %v107 = vld [vmem:[%s1 + $0x114] sm:$0xf]
    %v108 = vld [vmem:[%s1 + $0x118] sm:$0xf]
    %v109 = vld [vmem:[%s1 + $0x11c] sm:$0xf]
    %v110 = vld [vmem:[%s1 + $0x120] sm:$0xf]
    %v111 = vld [vmem:[%s1 + $0x124] sm:$0xf]
    %v112 = vld [vmem:[%s1 + $0x128] sm:$0xf]
    %v113 = vld [vmem:[%s1 + $0x12c] sm:$0xf]
    %v114 = vld [vmem:[%s1 + $0x130] sm:$0xf]
    %v115 = vld [vmem:[%s1 + $0x134] sm:$0xf]
    %v116 = vld [vmem:[%s1 + $0x138] sm:$0xf]
    %v117 = vld [vmem:[%s1 + $0x13c] sm:$0xf]
    %v118 = vld [vmem:[%s1 + $0x140] sm:$0xf]
    %v119 = vld [vmem:[%s1 + $0x144] sm:$0xf]
    %v120 = vld [vmem:[%s1 + $0x148] sm:$0xf]
    %v121 = vld [vmem:[%s1 + $0x14c] sm:$0xf]
    %v122 = vld [vmem:[%s1 + $0x150] sm:$0xf]
    %v123 = vld [vmem:[%s1 + $0x154] sm:$0xf]
    %v124 = vld [vmem:[%s1 + $0x158] sm:$0xf]
    %v125 = vld [vmem:[%s1 + $0x15c] sm:$0xf]
    %v126 = vld [vmem:[%s1 + $0x160] sm:$0xf]
    %v127 = vld [vmem:[%s1 + $0x164] sm:$0xf]
    %v128 = vld [vmem:[%s1 + $0x168] sm:$0xf]
    %v129 = vld [vmem:[%s1 + $0x16c] sm:$0xf]
    %v130 = vld [vmem:[%s1 + $0x170] sm:$0xf]
    %v131 = vld [vmem:[%s1 + $0x174] sm:$0xf]
    %v132 = vld [vmem:[%s1 + $0x178] sm:$0xf]
    %v133 = vld [vmem:[%s1 + $0x17c] sm:$0xf]
    %v134 = vld [vmem:[%s1 + $0x180] sm:$0xf]
    %v135 = vld [vmem:[%s1 + $0x184] sm:$0xf]
    %v136 = vld [vmem:[%s1 + $0x188] sm:$0xf]
    %v137 = vld [vmem:[%s1 + $0x18c] sm:$0xf]
    %v138 = vld [vmem:[%s1 + $0x190] sm:$0xf]
    %v139 = vld [vmem:[%s1 + $0x194] sm:$0xf]
    %v140 = vld [vmem:[%s1 + $0x198] sm:$0xf]
    %v141 = vld [vmem:[%s1 + $0x19c] sm:$0xf]
    %v142 = vld [vmem:[%s1 + $0x1a0] sm:$0xf]
    %v143 = vld [vmem:[%s1 + $0x1a4] sm:$0xf]
    %v144 = vld [vmem:[%s1 + $0x1a8] sm:$0xf]
    %v145 = vld [vmem:[%s1 + $0x1ac] sm:$0xf]
    %v146 = vld [vmem:[%s1 + $0x1b0] sm:$0xf]
    %v147 = vld [vmem:[%s1 + $0x1b4] sm:$0xf]
    %v148 = vld [vmem:[%s1 + $0x1b8] sm:$0xf]
    %v149 = vld [vmem:[%s1 + $0x1bc] sm:$0xf]
    %v150 = vld [vmem:[%s1 + $0x1c0] sm:$0xf]
    %v151 = vld [vmem:[%s1 + $0x1c4] sm:$0xf]
    %v152 = vld [vmem:[%s1 + $0x1c8] sm:$0xf]
    %v153 = vld [vmem:[%s1 + $0x1cc] sm:$0xf]
    %v154 = vld [vmem:[%s1 + $0x1d0] sm:$0xf]
    %v155 = vld [vmem:[%s1 + $0x1d4] sm:$0xf]
    %v156 = vld [vmem:[%s1 + $0x1d8] sm:$0xf]
    %v157 = vld [vmem:[%s1 + $0x1dc] sm:$0xf]
    %v158 = vld [vmem:[%s1 + $0x1e0] sm:$0xf]
    %v159 = vld [vmem:[%s1 + $0x1e4] sm:$0xf]
    %v160 = vld [vmem:[%s1 + $0x1e8] sm:$0xf]
    %v161 = vld [vmem:[%s1 + $0x1ec] sm:$0xf]
    %v162 = vld [vmem:[%s1 + $0x1f0] sm:$0xf]
    %v163 = vld [vmem:[%s1 + $0x1f4] sm:$0xf]
    %v164 = vld [vmem:[%s1 + $0x1f8] sm:$0xf]
    %v165 = vld [vmem:[%s1 + $0x1fc] sm:$0xf]
    %v166 = vld [vmem:[%s2] sm:$0xff]
    %v167 = vld [vmem:[%s2 + $0x8] sm:$0xff]
    %v168 = vld [vmem:[%s2 + $0x10] sm:$0xff]
    %v169 = vld [vmem:[%s2 + $0x18] sm:$0xff]
    %v170 = vld [vmem:[%s2 + $0x20] sm:$0xff]
    %v171 = vld [vmem:[%s2 + $0x28] sm:$0xff]
    %v172 = vld [vmem:[%s2 + $0x30] sm:$0xff]
    %v173 = vld [vmem:[%s2 + $0x38] sm:$0xff]
    %v174 = vld [vmem:[%s2 + $0x40] sm:$0xff]
    %v175 = vld [vmem:[%s2 + $0x48] sm:$0xff]
    %v176 = vld [vmem:[%s2 + $0x50] sm:$0xff]
    %v177 = vld [vmem:[%s2 + $0x58] sm:$0xff]
    %v178 = vld [vmem:[%s2 + $0x60] sm:$0xff]
    %v179 = vld [vmem:[%s2 + $0x68] sm:$0xff]
    %v180 = vld [vmem:[%s2 + $0x70] sm:$0xff]
    %v181 = vld [vmem:[%s2 + $0x78] sm:$0xff]
    %v182 = vld [vmem:[%s2 + $0x80] sm:$0xff]
    %v183 = vld [vmem:[%s2 + $0x88] sm:$0xff]
    %v184 = vld [vmem:[%s2 + $0x90] sm:$0xff]
    %v185 = vld [vmem:[%s2 + $0x98] sm:$0xff]
    %v186 = vld [vmem:[%s2 + $0xa0] sm:$0xff]
    %v187 = vld [vmem:[%s2 + $0xa8] sm:$0xff]
    %v188 = vld [vmem:[%s2 + $0xb0] sm:$0xff]
    %v189 = vld [vmem:[%s2 + $0xb8] sm:$0xff]
    %v190 = vld [vmem:[%s2 + $0xc0] sm:$0xff]
    %v191 = vld [vmem:[%s2 + $0xc8] sm:$0xff]
    %v192 = vld [vmem:[%s2 + $0xd0] sm:$0xff]
    %v193 = vld [vmem:[%s2 + $0xd8] sm:$0xff]
    %v194 = vld [vmem:[%s2 + $0xe0] sm:$0xff]
    %v195 = vld [vmem:[%s2 + $0xe8] sm:$0xff]
    %v196 = vld [vmem:[%s2 + $0xf0] sm:$0xff]
    %v197 = vld [vmem:[%s2 + $0xf8] sm:$0xff]
    %v198 = vld [vmem:[%s2 + $0x100] sm:$0xff]
    %v199 = vld [vmem:[%s2 + $0x108] sm:$0xff]
    %v200 = vld [vmem:[%s2 + $0x110] sm:$0xff]
    %v201 = vld [vmem:[%s2 + $0x118] sm:$0xff]
    %v202 = vld [vmem:[%s2 + $0x120] sm:$0xff]
    %v203 = vld [vmem:[%s2 + $0x128] sm:$0xff]
    %v204 = vld [vmem:[%s2 + $0x130] sm:$0xff]
    %v205 = vld [vmem:[%s2 + $0x138] sm:$0xff]
    %v206 = vld [vmem:[%s2 + $0x140] sm:$0xff]
    %v207 = vld [vmem:[%s2 + $0x148] sm:$0xff]
    %v208 = vld [vmem:[%s2 + $0x150] sm:$0xff]
    %v209 = vld [vmem:[%s2 + $0x158] sm:$0xff]
    %v210 = vld [vmem:[%s2 + $0x160] sm:$0xff]
    %v211 = vld [vmem:[%s2 + $0x168] sm:$0xff]
    %v212 = vld [vmem:[%s2 + $0x170] sm:$0xff]
    %v213 = vld [vmem:[%s2 + $0x178] sm:$0xff]
    %v214 = vld [vmem:[%s2 + $0x180] sm:$0xff]
    %v215 = vld [vmem:[%s2 + $0x188] sm:$0xff]
    %v216 = vld [vmem:[%s2 + $0x190] sm:$0xff]
    %v217 = vld [vmem:[%s2 + $0x198] sm:$0xff]
    %v218 = vld [vmem:[%s2 + $0x1a0] sm:$0xff]
    %v219 = vld [vmem:[%s2 + $0x1a8] sm:$0xff]
    %v220 = vld [vmem:[%s2 + $0x1b0] sm:$0xff]
    %v221 = vld [vmem:[%s2 + $0x1b8] sm:$0xff]
    %v222 = vld [vmem:[%s2 + $0x1c0] sm:$0xff]
    %v223 = vld [vmem:[%s2 + $0x1c8] sm:$0xff]
    %v224 = vld [vmem:[%s2 + $0x1d0] sm:$0xff]
    %v225 = vld [vmem:[%s2 + $0x1d8] sm:$0xff]
    %v226 = vld [vmem:[%s2 + $0x1e0] sm:$0xff]
    %v227 = vld [vmem:[%s2 + $0x1e8] sm:$0xff]
    %v228 = vld [vmem:[%s2 + $0x1f0] sm:$0xff]
    %v229 = vld [vmem:[%s2 + $0x1f8] sm:$0xff]
    %v230 = vld [vmem:[%s2 + $0x200] sm:$0xff]
    %v231 = vld [vmem:[%s2 + $0x208] sm:$0xff]
    %v232 = vld [vmem:[%s2 + $0x210] sm:$0xff]
    %v233 = vld [vmem:[%s2 + $0x218] sm:$0xff]
    %v234 = vld [vmem:[%s2 + $0x220] sm:$0xff]
    %v235 = vld [vmem:[%s2 + $0x228] sm:$0xff]
    %v236 = vld [vmem:[%s2 + $0x230] sm:$0xff]
    %v237 = vld [vmem:[%s2 + $0x238] sm:$0xff]
    %v238 = vld [vmem:[%s2 + $0x240] sm:$0xff]
    %v239 = vld [vmem:[%s2 + $0x248] sm:$0xff]
    %v240 = vld [vmem:[%s2 + $0x250] sm:$0xff]
    %v241 = vld [vmem:[%s2 + $0x258] sm:$0xff]
    %v242 = vld [vmem:[%s2 + $0x260] sm:$0xff]
    %v243 = vld [vmem:[%s2 + $0x268] sm:$0xff]
    %v244 = vld [vmem:[%s2 + $0x270] sm:$0xff]
    %v245 = vld [vmem:[%s2 + $0x278] sm:$0xff]
    %v246 = vld [vmem:[%s2 + $0x280] sm:$0xff]
    %v247 = vld [vmem:[%s2 + $0x288] sm:$0xff]
    %v248 = vld [vmem:[%s2 + $0x290] sm:$0xff]
    %v249 = vld [vmem:[%s2 + $0x298] sm:$0xff]
    %v250 = vld [vmem:[%s2 + $0x2a0] sm:$0xff]
    %v251 = vld [vmem:[%s2 + $0x2a8] sm:$0xff]
    %v252 = vld [vmem:[%s2 + $0x2b0] sm:$0xff]
    %v253 = vld [vmem:[%s2 + $0x2b8] sm:$0xff]
    %v254 = vld [vmem:[%s2 + $0x2c0] sm:$0xff]
    %v255 = vld [vmem:[%s2 + $0x2c8] sm:$0xff]
    %v256 = vld [vmem:[%s2 + $0x2d0] sm:$0xff]
    %v257 = vld [vmem:[%s2 + $0x2d8] sm:$0xff]
    %v258 = vld [vmem:[%s2 + $0x2e0] sm:$0xff]
    %v259 = vld [vmem:[%s2 + $0x2e8] sm:$0xff]
    %v260 = vld [vmem:[%s2 + $0x2f0] sm:$0xff]
    %v261 = vld [vmem:[%s2 + $0x2f8] sm:$0xff]
    %v262 = vld [vmem:[%s2 + $0x300] sm:$0xff]
    %v263 = vld [vmem:[%s2 + $0x308] sm:$0xff]
    %v264 = vld [vmem:[%s2 + $0x310] sm:$0xff]
    %v265 = vld [vmem:[%s2 + $0x318] sm:$0xff]
    %v266 = vld [vmem:[%s2 + $0x320] sm:$0xff]
    %v267 = vld [vmem:[%s2 + $0x328] sm:$0xff]
    %v268 = vld [vmem:[%s2 + $0x330] sm:$0xff]
    %v269 = vld [vmem:[%s2 + $0x338] sm:$0xff]
    %v270 = vld [vmem:[%s2 + $0x340] sm:$0xff]
    %v271 = vld [vmem:[%s2 + $0x348] sm:$0xff]
    %v272 = vld [vmem:[%s2 + $0x350] sm:$0xff]
    %v273 = vld [vmem:[%s2 + $0x358] sm:$0xff]
    %v274 = vld [vmem:[%s2 + $0x360] sm:$0xff]
    %v275 = vld [vmem:[%s2 + $0x368] sm:$0xff]
    %v276 = vld [vmem:[%s2 + $0x370] sm:$0xff]
    %v277 = vld [vmem:[%s2 + $0x378] sm:$0xff]
    %v278 = vld [vmem:[%s2 + $0x380] sm:$0xff]
    %v279 = vld [vmem:[%s2 + $0x388] sm:$0xff]
    %v280 = vld [vmem:[%s2 + $0x390] sm:$0xff]
    %v281 = vld [vmem:[%s2 + $0x398] sm:$0xff]
    %v282 = vld [vmem:[%s2 + $0x3a0] sm:$0xff]
    %v283 = vld [vmem:[%s2 + $0x3a8] sm:$0xff]
    %v284 = vld [vmem:[%s2 + $0x3b0] sm:$0xff]
    %v285 = vld [vmem:[%s2 + $0x3b8] sm:$0xff]
    %v286 = vld [vmem:[%s2 + $0x3c0] sm:$0xff]
    %v287 = vld [vmem:[%s2 + $0x3c8] sm:$0xff]
    %v288 = vld [vmem:[%s2 + $0x3d0] sm:$0xff]
    %v289 = vld [vmem:[%s2 + $0x3d8] sm:$0xff]
    %v290 = vld [vmem:[%s2 + $0x3e0] sm:$0xff]
    %v291 = vld [vmem:[%s2 + $0x3e8] sm:$0xff]
    %v292 = vld [vmem:[%s2 + $0x3f0] sm:$0xff]
    %v293 = vld [vmem:[%s2 + $0x3f8] sm:$0xff]
    %295 = vset.pattern.permute.xlu0 0
    %296 = vperm.xlu0 %295, %v166
    %v297 = vpop.permute.xlu0 %296
    %300 = vset.pattern.permute.xlu0 0
    %301 = vperm.xlu0 %300, %v167
    %v302 = vpop.permute.xlu0 %301
    %305 = vset.pattern.permute.xlu0 0
    %306 = vperm.xlu0 %305, %v168
    %v307 = vpop.permute.xlu0 %306
    %310 = vset.pattern.permute.xlu0 0
    %311 = vperm.xlu0 %310, %v169
    %v312 = vpop.permute.xlu0 %311
    %315 = vset.pattern.permute.xlu0 0
    %316 = vperm.xlu0 %315, %v170
    %v317 = vpop.permute.xlu0 %316
    %320 = vset.pattern.permute.xlu0 0
    %321 = vperm.xlu0 %320, %v171
    %v322 = vpop.permute.xlu0 %321
    %325 = vset.pattern.permute.xlu0 0
    %326 = vperm.xlu0 %325, %v172
    %v327 = vpop.permute.xlu0 %326
    %330 = vset.pattern.permute.xlu0 0
    %331 = vperm.xlu0 %330, %v173
    %v332 = vpop.permute.xlu0 %331
    %335 = vset.pattern.permute.xlu0 0
    %336 = vperm.xlu0 %335, %v174
    %v337 = vpop.permute.xlu0 %336
    %340 = vset.pattern.permute.xlu0 0
    %341 = vperm.xlu0 %340, %v175
    %v342 = vpop.permute.xlu0 %341
    %345 = vset.pattern.permute.xlu0 0
    %346 = vperm.xlu0 %345, %v176
    %v347 = vpop.permute.xlu0 %346
    %350 = vset.pattern.permute.xlu0 0
    %351 = vperm.xlu0 %350, %v177
    %v352 = vpop.permute.xlu0 %351
    %355 = vset.pattern.permute.xlu0 0
    %356 = vperm.xlu0 %355, %v178
    %v357 = vpop.permute.xlu0 %356
    %360 = vset.pattern.permute.xlu0 0
    %361 = vperm.xlu0 %360, %v179
    %v362 = vpop.permute.xlu0 %361
    %365 = vset.pattern.permute.xlu0 0
    %366 = vperm.xlu0 %365, %v180
    %v367 = vpop.permute.xlu0 %366
    %370 = vset.pattern.permute.xlu0 0
    %371 = vperm.xlu0 %370, %v181
    %v372 = vpop.permute.xlu0 %371
    %375 = vset.pattern.permute.xlu0 0
    %376 = vperm.xlu0 %375, %v182
    %v377 = vpop.permute.xlu0 %376
    %380 = vset.pattern.permute.xlu0 0
    %381 = vperm.xlu0 %380, %v183
    %v382 = vpop.permute.xlu0 %381
    %385 = vset.pattern.permute.xlu0 0
    %386 = vperm.xlu0 %385, %v184
    %v387 = vpop.permute.xlu0 %386
    %390 = vset.pattern.permute.xlu0 0
    %391 = vperm.xlu0 %390, %v185
    %v392 = vpop.permute.xlu0 %391
    %395 = vset.pattern.permute.xlu0 0
    %396 = vperm.xlu0 %395, %v186
    %v397 = vpop.permute.xlu0 %396
    %400 = vset.pattern.permute.xlu0 0
    %401 = vperm.xlu0 %400, %v187
    %v402 = vpop.permute.xlu0 %401
    %405 = vset.pattern.permute.xlu0 0
    %406 = vperm.xlu0 %405, %v188
    %v407 = vpop.permute.xlu0 %406
    %410 = vset.pattern.permute.xlu0 0
    %411 = vperm.xlu0 %410, %v189
    %v412 = vpop.permute.xlu0 %411
    %415 = vset.pattern.permute.xlu0 0
    %416 = vperm.xlu0 %415, %v190
    %v417 = vpop.permute.xlu0 %416
    %420 = vset.pattern.permute.xlu0 0
    %421 = vperm.xlu0 %420, %v191
    %v422 = vpop.permute.xlu0 %421
    %425 = vset.pattern.permute.xlu0 0
    %426 = vperm.xlu0 %425, %v192
    %v427 = vpop.permute.xlu0 %426
    %430 = vset.pattern.permute.xlu0 0
    %431 = vperm.xlu0 %430, %v193
    %v432 = vpop.permute.xlu0 %431
    %435 = vset.pattern.permute.xlu0 0
    %436 = vperm.xlu0 %435, %v194
    %v437 = vpop.permute.xlu0 %436
    %440 = vset.pattern.permute.xlu0 0
    %441 = vperm.xlu0 %440, %v195
    %v442 = vpop.permute.xlu0 %441
    %445 = vset.pattern.permute.xlu0 0
    %446 = vperm.xlu0 %445, %v196
    %v447 = vpop.permute.xlu0 %446
    %450 = vset.pattern.permute.xlu0 0
    %451 = vperm.xlu0 %450, %v197
    %v452 = vpop.permute.xlu0 %451
    %455 = vset.pattern.permute.xlu0 0
    %456 = vperm.xlu0 %455, %v198
    %v457 = vpop.permute.xlu0 %456
    %460 = vset.pattern.permute.xlu0 0
    %461 = vperm.xlu0 %460, %v199
    %v462 = vpop.permute.xlu0 %461
    %465 = vset.pattern.permute.xlu0 0
    %466 = vperm.xlu0 %465, %v200
    %v467 = vpop.permute.xlu0 %466
    %470 = vset.pattern.permute.xlu0 0
    %471 = vperm.xlu0 %470, %v201
    %v472 = vpop.permute.xlu0 %471
    %475 = vset.pattern.permute.xlu0 0
    %476 = vperm.xlu0 %475, %v202
    %v477 = vpop.permute.xlu0 %476
    %480 = vset.pattern.permute.xlu0 0
    %481 = vperm.xlu0 %480, %v203
    %v482 = vpop.permute.xlu0 %481
    %485 = vset.pattern.permute.xlu0 0
    %486 = vperm.xlu0 %485, %v204
    %v487 = vpop.permute.xlu0 %486
    %490 = vset.pattern.permute.xlu0 0
    %491 = vperm.xlu0 %490, %v205
    %v492 = vpop.permute.xlu0 %491
    %495 = vset.pattern.permute.xlu0 0
    %496 = vperm.xlu0 %495, %v206
    %v497 = vpop.permute.xlu0 %496
    %500 = vset.pattern.permute.xlu0 0
    %501 = vperm.xlu0 %500, %v207
    %v502 = vpop.permute.xlu0 %501
    %505 = vset.pattern.permute.xlu0 0
    %506 = vperm.xlu0 %505, %v208
    %v507 = vpop.permute.xlu0 %506
    %510 = vset.pattern.permute.xlu0 0
    %511 = vperm.xlu0 %510, %v209
    %v512 = vpop.permute.xlu0 %511
    %515 = vset.pattern.permute.xlu0 0
    %516 = vperm.xlu0 %515, %v210
    %v517 = vpop.permute.xlu0 %516
    %520 = vset.pattern.permute.xlu0 0
    %521 = vperm.xlu0 %520, %v211
    %v522 = vpop.permute.xlu0 %521
    %525 = vset.pattern.permute.xlu0 0
    %526 = vperm.xlu0 %525, %v212
    %v527 = vpop.permute.xlu0 %526
    %530 = vset.pattern.permute.xlu0 0
    %531 = vperm.xlu0 %530, %v213
    %v532 = vpop.permute.xlu0 %531
    %535 = vset.pattern.permute.xlu0 0
    %536 = vperm.xlu0 %535, %v214
    %v537 = vpop.permute.xlu0 %536
    %540 = vset.pattern.permute.xlu0 0
    %541 = vperm.xlu0 %540, %v215
    %v542 = vpop.permute.xlu0 %541
    %545 = vset.pattern.permute.xlu0 0
    %546 = vperm.xlu0 %545, %v216
    %v547 = vpop.permute.xlu0 %546
    %550 = vset.pattern.permute.xlu0 0
    %551 = vperm.xlu0 %550, %v217
    %v552 = vpop.permute.xlu0 %551
    %555 = vset.pattern.permute.xlu0 0
    %556 = vperm.xlu0 %555, %v218
    %v557 = vpop.permute.xlu0 %556
    %560 = vset.pattern.permute.xlu0 0
    %561 = vperm.xlu0 %560, %v219
    %v562 = vpop.permute.xlu0 %561
    %565 = vset.pattern.permute.xlu0 0
    %566 = vperm.xlu0 %565, %v220
    %v567 = vpop.permute.xlu0 %566
    %570 = vset.pattern.permute.xlu0 0
    %571 = vperm.xlu0 %570, %v221
    %v572 = vpop.permute.xlu0 %571
    %575 = vset.pattern.permute.xlu0 0
    %576 = vperm.xlu0 %575, %v222
    %v577 = vpop.permute.xlu0 %576
    %580 = vset.pattern.permute.xlu0 0
    %581 = vperm.xlu0 %580, %v223
    %v582 = vpop.permute.xlu0 %581
    %585 = vset.pattern.permute.xlu0 0
    %586 = vperm.xlu0 %585, %v224
    %v587 = vpop.permute.xlu0 %586
    %590 = vset.pattern.permute.xlu0 0
    %591 = vperm.xlu0 %590, %v225
    %v592 = vpop.permute.xlu0 %591
    %595 = vset.pattern.permute.xlu0 0
    %596 = vperm.xlu0 %595, %v226
    %v597 = vpop.permute.xlu0 %596
    %600 = vset.pattern.permute.xlu0 0
    %601 = vperm.xlu0 %600, %v227
    %v602 = vpop.permute.xlu0 %601
    %605 = vset.pattern.permute.xlu0 0
    %606 = vperm.xlu0 %605, %v228
    %v607 = vpop.permute.xlu0 %606
    %610 = vset.pattern.permute.xlu0 0
    %611 = vperm.xlu0 %610, %v229
    %v612 = vpop.permute.xlu0 %611
    %615 = vset.pattern.permute.xlu0 0
    %616 = vperm.xlu0 %615, %v230
    %v617 = vpop.permute.xlu0 %616
    %620 = vset.pattern.permute.xlu0 0
    %621 = vperm.xlu0 %620, %v231
    %v622 = vpop.permute.xlu0 %621
    %625 = vset.pattern.permute.xlu0 0
    %626 = vperm.xlu0 %625, %v232
    %v627 = vpop.permute.xlu0 %626
    %630 = vset.pattern.permute.xlu0 0
    %631 = vperm.xlu0 %630, %v233
    %v632 = vpop.permute.xlu0 %631
    %635 = vset.pattern.permute.xlu0 0
    %636 = vperm.xlu0 %635, %v234
    %v637 = vpop.permute.xlu0 %636
    %640 = vset.pattern.permute.xlu0 0
    %641 = vperm.xlu0 %640, %v235
    %v642 = vpop.permute.xlu0 %641
    %645 = vset.pattern.permute.xlu0 0
    %646 = vperm.xlu0 %645, %v236
    %v647 = vpop.permute.xlu0 %646
    %650 = vset.pattern.permute.xlu0 0
    %651 = vperm.xlu0 %650, %v237
    %v652 = vpop.permute.xlu0 %651
    %655 = vset.pattern.permute.xlu0 0
    %656 = vperm.xlu0 %655, %v238
    %v657 = vpop.permute.xlu0 %656
    %660 = vset.pattern.permute.xlu0 0
    %661 = vperm.xlu0 %660, %v239
    %v662 = vpop.permute.xlu0 %661
    %665 = vset.pattern.permute.xlu0 0
    %666 = vperm.xlu0 %665, %v240
    %v667 = vpop.permute.xlu0 %666
    %670 = vset.pattern.permute.xlu0 0
    %671 = vperm.xlu0 %670, %v241
    %v672 = vpop.permute.xlu0 %671
    %675 = vset.pattern.permute.xlu0 0
    %676 = vperm.xlu0 %675, %v242
    %v677 = vpop.permute.xlu0 %676
    %680 = vset.pattern.permute.xlu0 0
    %681 = vperm.xlu0 %680, %v243
    %v682 = vpop.permute.xlu0 %681
    %685 = vset.pattern.permute.xlu0 0
    %686 = vperm.xlu0 %685, %v244
    %v687 = vpop.permute.xlu0 %686
    %690 = vset.pattern.permute.xlu0 0
    %691 = vperm.xlu0 %690, %v245
    %v692 = vpop.permute.xlu0 %691
    %695 = vset.pattern.permute.xlu0 0
    %696 = vperm.xlu0 %695, %v246
    %v697 = vpop.permute.xlu0 %696
    %700 = vset.pattern.permute.xlu0 0
    %701 = vperm.xlu0 %700, %v247
    %v702 = vpop.permute.xlu0 %701
    %705 = vset.pattern.permute.xlu0 0
    %706 = vperm.xlu0 %705, %v248
    %v707 = vpop.permute.xlu0 %706
    %710 = vset.pattern.permute.xlu0 0
    %711 = vperm.xlu0 %710, %v249
    %v712 = vpop.permute.xlu0 %711
    %715 = vset.pattern.permute.xlu0 0
    %716 = vperm.xlu0 %715, %v250
    %v717 = vpop.permute.xlu0 %716
    %720 = vset.pattern.permute.xlu0 0
    %721 = vperm.xlu0 %720, %v251
    %v722 = vpop.permute.xlu0 %721
    %725 = vset.pattern.permute.xlu0 0
    %726 = vperm.xlu0 %725, %v252
    %v727 = vpop.permute.xlu0 %726
    %730 = vset.pattern.permute.xlu0 0
    %731 = vperm.xlu0 %730, %v253
    %v732 = vpop.permute.xlu0 %731
    %735 = vset.pattern.permute.xlu0 0
    %736 = vperm.xlu0 %735, %v254
    %v737 = vpop.permute.xlu0 %736
    %740 = vset.pattern.permute.xlu0 0
    %741 = vperm.xlu0 %740, %v255
    %v742 = vpop.permute.xlu0 %741
    %745 = vset.pattern.permute.xlu0 0
    %746 = vperm.xlu0 %745, %v256
    %v747 = vpop.permute.xlu0 %746
    %750 = vset.pattern.permute.xlu0 0
    %751 = vperm.xlu0 %750, %v257
    %v752 = vpop.permute.xlu0 %751
    %755 = vset.pattern.permute.xlu0 0
    %756 = vperm.xlu0 %755, %v258
    %v757 = vpop.permute.xlu0 %756
    %760 = vset.pattern.permute.xlu0 0
    %761 = vperm.xlu0 %760, %v259
    %v762 = vpop.permute.xlu0 %761
    %765 = vset.pattern.permute.xlu0 0
    %766 = vperm.xlu0 %765, %v260
    %v767 = vpop.permute.xlu0 %766
    %770 = vset.pattern.permute.xlu0 0
    %771 = vperm.xlu0 %770, %v261
    %v772 = vpop.permute.xlu0 %771
    %775 = vset.pattern.permute.xlu0 0
    %776 = vperm.xlu0 %775, %v262
    %v777 = vpop.permute.xlu0 %776
    %780 = vset.pattern.permute.xlu0 0
    %781 = vperm.xlu0 %780, %v263
    %v782 = vpop.permute.xlu0 %781
    %785 = vset.pattern.permute.xlu0 0
    %786 = vperm.xlu0 %785, %v264
    %v787 = vpop.permute.xlu0 %786
    %790 = vset.pattern.permute.xlu0 0
    %791 = vperm.xlu0 %790, %v265
    %v792 = vpop.permute.xlu0 %791
    %795 = vset.pattern.permute.xlu0 0
    %796 = vperm.xlu0 %795, %v266
    %v797 = vpop.permute.xlu0 %796
    %800 = vset.pattern.permute.xlu0 0
    %801 = vperm.xlu0 %800, %v267
    %v802 = vpop.permute.xlu0 %801
    %805 = vset.pattern.permute.xlu0 0
    %806 = vperm.xlu0 %805, %v268
    %v807 = vpop.permute.xlu0 %806
    %810 = vset.pattern.permute.xlu0 0
    %811 = vperm.xlu0 %810, %v269
    %v812 = vpop.permute.xlu0 %811
    %815 = vset.pattern.permute.xlu0 0
    %816 = vperm.xlu0 %815, %v270
    %v817 = vpop.permute.xlu0 %816
    %820 = vset.pattern.permute.xlu0 0
    %821 = vperm.xlu0 %820, %v271
    %v822 = vpop.permute.xlu0 %821
    %825 = vset.pattern.permute.xlu0 0
    %826 = vperm.xlu0 %825, %v272
    %v827 = vpop.permute.xlu0 %826
    %830 = vset.pattern.permute.xlu0 0
    %831 = vperm.xlu0 %830, %v273
    %v832 = vpop.permute.xlu0 %831
    %835 = vset.pattern.permute.xlu0 0
    %836 = vperm.xlu0 %835, %v274
    %v837 = vpop.permute.xlu0 %836
    %840 = vset.pattern.permute.xlu0 0
    %841 = vperm.xlu0 %840, %v275
    %v842 = vpop.permute.xlu0 %841
    %845 = vset.pattern.permute.xlu0 0
    %846 = vperm.xlu0 %845, %v276
    %v847 = vpop.permute.xlu0 %846
    %850 = vset.pattern.permute.xlu0 0
    %851 = vperm.xlu0 %850, %v277
    %v852 = vpop.permute.xlu0 %851
    %855 = vset.pattern.permute.xlu0 0
    %856 = vperm.xlu0 %855, %v278
    %v857 = vpop.permute.xlu0 %856
    %860 = vset.pattern.permute.xlu0 0
    %861 = vperm.xlu0 %860, %v279
    %v862 = vpop.permute.xlu0 %861
    %865 = vset.pattern.permute.xlu0 0
    %866 = vperm.xlu0 %865, %v280
    %v867 = vpop.permute.xlu0 %866
    %870 = vset.pattern.permute.xlu0 0
    %871 = vperm.xlu0 %870, %v281
    %v872 = vpop.permute.xlu0 %871
    %875 = vset.pattern.permute.xlu0 0
    %876 = vperm.xlu0 %875, %v282
    %v877 = vpop.permute.xlu0 %876
    %880 = vset.pattern.permute.xlu0 0
    %881 = vperm.xlu0 %880, %v283
    %v882 = vpop.permute.xlu0 %881
    %885 = vset.pattern.permute.xlu0 0
    %886 = vperm.xlu0 %885, %v284
    %v887 = vpop.permute.xlu0 %886
    %890 = vset.pattern.permute.xlu0 0
    %891 = vperm.xlu0 %890, %v285
    %v892 = vpop.permute.xlu0 %891
    %895 = vset.pattern.permute.xlu0 0
    %896 = vperm.xlu0 %895, %v286
    %v897 = vpop.permute.xlu0 %896
    %900 = vset.pattern.permute.xlu0 0
    %901 = vperm.xlu0 %900, %v287
    %v902 = vpop.permute.xlu0 %901
    %905 = vset.pattern.permute.xlu0 0
    %906 = vperm.xlu0 %905, %v288
    %v907 = vpop.permute.xlu0 %906
    %910 = vset.pattern.permute.xlu0 0
    %911 = vperm.xlu0 %910, %v289
    %v912 = vpop.permute.xlu0 %911
    %915 = vset.pattern.permute.xlu0 0
    %916 = vperm.xlu0 %915, %v290
    %v917 = vpop.permute.xlu0 %916
    %920 = vset.pattern.permute.xlu0 0
    %921 = vperm.xlu0 %920, %v291
    %v922 = vpop.permute.xlu0 %921
    %925 = vset.pattern.permute.xlu0 0
    %926 = vperm.xlu0 %925, %v292
    %v927 = vpop.permute.xlu0 %926
    %930 = vset.pattern.permute.xlu0 0
    %931 = vperm.xlu0 %930, %v293
    %v932 = vpop.permute.xlu0 %931
    %v1062 = vunpack.c.l.b16 %v38
    %v1063 = vunpack.c.l.b16 %v39
    %v1064 = vunpack.c.l.b16 %v40
    %v1065 = vunpack.c.l.b16 %v41
    %v1066 = vunpack.c.l.b16 %v42
    %v1067 = vunpack.c.l.b16 %v43
    %v1068 = vunpack.c.l.b16 %v44
    %v1069 = vunpack.c.l.b16 %v45
    %v1070 = vunpack.c.l.b16 %v46
    %v1071 = vunpack.c.l.b16 %v47
    %v1072 = vunpack.c.l.b16 %v48
    %v1073 = vunpack.c.l.b16 %v49
    %v1074 = vunpack.c.l.b16 %v50
    %v1075 = vunpack.c.l.b16 %v51
    %v1076 = vunpack.c.l.b16 %v52
    %v1077 = vunpack.c.l.b16 %v53
    %v1078 = vunpack.c.l.b16 %v54
    %v1079 = vunpack.c.l.b16 %v55
    %v1080 = vunpack.c.l.b16 %v56
    %v1081 = vunpack.c.l.b16 %v57
    %v1082 = vunpack.c.l.b16 %v58
    %v1083 = vunpack.c.l.b16 %v59
    %v1084 = vunpack.c.l.b16 %v60
    %v1085 = vunpack.c.l.b16 %v61
    %v1086 = vunpack.c.l.b16 %v62
    %v1087 = vunpack.c.l.b16 %v63
    %v1088 = vunpack.c.l.b16 %v64
    %v1089 = vunpack.c.l.b16 %v65
    %v1090 = vunpack.c.l.b16 %v66
    %v1091 = vunpack.c.l.b16 %v67
    %v1092 = vunpack.c.l.b16 %v68
    %v1093 = vunpack.c.l.b16 %v69
    %v1094 = vunpack.c.l.b16 %v70
    %v1095 = vunpack.c.l.b16 %v71
    %v1096 = vunpack.c.l.b16 %v72
    %v1097 = vunpack.c.l.b16 %v73
    %v1098 = vunpack.c.l.b16 %v74
    %v1099 = vunpack.c.l.b16 %v75
    %v1100 = vunpack.c.l.b16 %v76
    %v1101 = vunpack.c.l.b16 %v77
    %v1102 = vunpack.c.l.b16 %v78
    %v1103 = vunpack.c.l.b16 %v79
    %v1104 = vunpack.c.l.b16 %v80
    %v1105 = vunpack.c.l.b16 %v81
    %v1106 = vunpack.c.l.b16 %v82
    %v1107 = vunpack.c.l.b16 %v83
    %v1108 = vunpack.c.l.b16 %v84
    %v1109 = vunpack.c.l.b16 %v85
    %v1110 = vunpack.c.l.b16 %v86
    %v1111 = vunpack.c.l.b16 %v87
    %v1112 = vunpack.c.l.b16 %v88
    %v1113 = vunpack.c.l.b16 %v89
    %v1114 = vunpack.c.l.b16 %v90
    %v1115 = vunpack.c.l.b16 %v91
    %v1116 = vunpack.c.l.b16 %v92
    %v1117 = vunpack.c.l.b16 %v93
    %v1118 = vunpack.c.l.b16 %v94
    %v1119 = vunpack.c.l.b16 %v95
    %v1120 = vunpack.c.l.b16 %v96
    %v1121 = vunpack.c.l.b16 %v97
    %v1122 = vunpack.c.l.b16 %v98
    %v1123 = vunpack.c.l.b16 %v99
    %v1124 = vunpack.c.l.b16 %v100
    %v1125 = vunpack.c.l.b16 %v101
    %v1126 = vunpack.c.l.b16 %v102
    %v1127 = vunpack.c.l.b16 %v103
    %v1128 = vunpack.c.l.b16 %v104
    %v1129 = vunpack.c.l.b16 %v105
    %v1130 = vunpack.c.l.b16 %v106
    %v1131 = vunpack.c.l.b16 %v107
    %v1132 = vunpack.c.l.b16 %v108
    %v1133 = vunpack.c.l.b16 %v109
    %v1134 = vunpack.c.l.b16 %v110
    %v1135 = vunpack.c.l.b16 %v111
    %v1136 = vunpack.c.l.b16 %v112
    %v1137 = vunpack.c.l.b16 %v113
    %v1138 = vunpack.c.l.b16 %v114
    %v1139 = vunpack.c.l.b16 %v115
    %v1140 = vunpack.c.l.b16 %v116
    %v1141 = vunpack.c.l.b16 %v117
    %v1142 = vunpack.c.l.b16 %v118
    %v1143 = vunpack.c.l.b16 %v119
    %v1144 = vunpack.c.l.b16 %v120
    %v1145 = vunpack.c.l.b16 %v121
    %v1146 = vunpack.c.l.b16 %v122
    %v1147 = vunpack.c.l.b16 %v123
    %v1148 = vunpack.c.l.b16 %v124
    %v1149 = vunpack.c.l.b16 %v125
    %v1150 = vunpack.c.l.b16 %v126
    %v1151 = vunpack.c.l.b16 %v127
    %v1152 = vunpack.c.l.b16 %v128
    %v1153 = vunpack.c.l.b16 %v129
    %v1154 = vunpack.c.l.b16 %v130
    %v1155 = vunpack.c.l.b16 %v131
    %v1156 = vunpack.c.l.b16 %v132
    %v1157 = vunpack.c.l.b16 %v133
    %v1158 = vunpack.c.l.b16 %v134
    %v1159 = vunpack.c.l.b16 %v135
    %v1160 = vunpack.c.l.b16 %v136
    %v1161 = vunpack.c.l.b16 %v137
    %v1162 = vunpack.c.l.b16 %v138
    %v1163 = vunpack.c.l.b16 %v139
    %v1164 = vunpack.c.l.b16 %v140
    %v1165 = vunpack.c.l.b16 %v141
    %v1166 = vunpack.c.l.b16 %v142
    %v1167 = vunpack.c.l.b16 %v143
    %v1168 = vunpack.c.l.b16 %v144
    %v1169 = vunpack.c.l.b16 %v145
    %v1170 = vunpack.c.l.b16 %v146
    %v1171 = vunpack.c.l.b16 %v147
    %v1172 = vunpack.c.l.b16 %v148
    %v1173 = vunpack.c.l.b16 %v149
    %v1174 = vunpack.c.l.b16 %v150
    %v1175 = vunpack.c.l.b16 %v151
    %v1176 = vunpack.c.l.b16 %v152
    %v1177 = vunpack.c.l.b16 %v153
    %v1178 = vunpack.c.l.b16 %v154
    %v1179 = vunpack.c.l.b16 %v155
    %v1180 = vunpack.c.l.b16 %v156
    %v1181 = vunpack.c.l.b16 %v157
    %v1182 = vunpack.c.l.b16 %v158
    %v1183 = vunpack.c.l.b16 %v159
    %v1184 = vunpack.c.l.b16 %v160
    %v1185 = vunpack.c.l.b16 %v161
    %v1186 = vunpack.c.l.b16 %v162
    %v1187 = vunpack.c.l.b16 %v163
    %v1188 = vunpack.c.l.b16 %v164
    %v1189 = vunpack.c.l.b16 %v165
    %v1190 = vpack.c.b16 %v1063, %v1062
    %v1191 = vpack.c.b16 %v1065, %v1064
    %v1192 = vpack.c.b16 %v1067, %v1066
    %v1193 = vpack.c.b16 %v1069, %v1068
    %v1194 = vpack.c.b16 %v1071, %v1070
    %v1195 = vpack.c.b16 %v1073, %v1072
    %v1196 = vpack.c.b16 %v1075, %v1074
    %v1197 = vpack.c.b16 %v1077, %v1076
    %v1198 = vpack.c.b16 %v1079, %v1078
    %v1199 = vpack.c.b16 %v1081, %v1080
    %v1200 = vpack.c.b16 %v1083, %v1082
    %v1201 = vpack.c.b16 %v1085, %v1084
    %v1202 = vpack.c.b16 %v1087, %v1086
    %v1203 = vpack.c.b16 %v1089, %v1088
    %v1204 = vpack.c.b16 %v1091, %v1090
    %v1205 = vpack.c.b16 %v1093, %v1092
    %v1206 = vpack.c.b16 %v1095, %v1094
    %v1207 = vpack.c.b16 %v1097, %v1096
    %v1208 = vpack.c.b16 %v1099, %v1098
    %v1209 = vpack.c.b16 %v1101, %v1100
    %v1210 = vpack.c.b16 %v1103, %v1102
    %v1211 = vpack.c.b16 %v1105, %v1104
    %v1212 = vpack.c.b16 %v1107, %v1106
    %v1213 = vpack.c.b16 %v1109, %v1108
    %v1214 = vpack.c.b16 %v1111, %v1110
    %v1215 = vpack.c.b16 %v1113, %v1112
    %v1216 = vpack.c.b16 %v1115, %v1114
    %v1217 = vpack.c.b16 %v1117, %v1116
    %v1218 = vpack.c.b16 %v1119, %v1118
    %v1219 = vpack.c.b16 %v1121, %v1120
    %v1220 = vpack.c.b16 %v1123, %v1122
    %v1221 = vpack.c.b16 %v1125, %v1124
    %v1222 = vpack.c.b16 %v1127, %v1126
    %v1223 = vpack.c.b16 %v1129, %v1128
    %v1224 = vpack.c.b16 %v1131, %v1130
    %v1225 = vpack.c.b16 %v1133, %v1132
    %v1226 = vpack.c.b16 %v1135, %v1134
    %v1227 = vpack.c.b16 %v1137, %v1136
    %v1228 = vpack.c.b16 %v1139, %v1138
    %v1229 = vpack.c.b16 %v1141, %v1140
    %v1230 = vpack.c.b16 %v1143, %v1142
    %v1231 = vpack.c.b16 %v1145, %v1144
    %v1232 = vpack.c.b16 %v1147, %v1146
    %v1233 = vpack.c.b16 %v1149, %v1148
    %v1234 = vpack.c.b16 %v1151, %v1150
    %v1235 = vpack.c.b16 %v1153, %v1152
    %v1236 = vpack.c.b16 %v1155, %v1154
    %v1237 = vpack.c.b16 %v1157, %v1156
    %v1238 = vpack.c.b16 %v1159, %v1158
    %v1239 = vpack.c.b16 %v1161, %v1160
    %v1240 = vpack.c.b16 %v1163, %v1162
    %v1241 = vpack.c.b16 %v1165, %v1164
    %v1242 = vpack.c.b16 %v1167, %v1166
    %v1243 = vpack.c.b16 %v1169, %v1168
    %v1244 = vpack.c.b16 %v1171, %v1170
    %v1245 = vpack.c.b16 %v1173, %v1172
    %v1246 = vpack.c.b16 %v1175, %v1174
    %v1247 = vpack.c.b16 %v1177, %v1176
    %v1248 = vpack.c.b16 %v1179, %v1178
    %v1249 = vpack.c.b16 %v1181, %v1180
    %v1250 = vpack.c.b16 %v1183, %v1182
    %v1251 = vpack.c.b16 %v1185, %v1184
    %v1252 = vpack.c.b16 %v1187, %v1186
    %v1253 = vpack.c.b16 %v1189, %v1188
    %vm1254 = vcmask 523264
    %v1256 = vsel %vm1254, %v1190, 0
    %v1259 = vsel %vm1254, %v1191, 0
    %v1262 = vsel %vm1254, %v1192, 0
    %v1265 = vsel %vm1254, %v1193, 0
    %v1268 = vsel %vm1254, %v1194, 0
    %v1271 = vsel %vm1254, %v1195, 0
    %v1274 = vsel %vm1254, %v1196, 0
    %v1277 = vsel %vm1254, %v1197, 0
    %v1280 = vsel %vm1254, %v1198, 0
    %v1283 = vsel %vm1254, %v1199, 0
    %v1286 = vsel %vm1254, %v1200, 0
    %v1289 = vsel %vm1254, %v1201, 0
    %v1292 = vsel %vm1254, %v1202, 0
    %v1295 = vsel %vm1254, %v1203, 0
    %v1298 = vsel %vm1254, %v1204, 0
    %v1301 = vsel %vm1254, %v1205, 0
    %v1304 = vsel %vm1254, %v1206, 0
    %v1307 = vsel %vm1254, %v1207, 0
    %v1310 = vsel %vm1254, %v1208, 0
    %v1313 = vsel %vm1254, %v1209, 0
    %v1316 = vsel %vm1254, %v1210, 0
    %v1319 = vsel %vm1254, %v1211, 0
    %v1322 = vsel %vm1254, %v1212, 0
    %v1325 = vsel %vm1254, %v1213, 0
    %v1328 = vsel %vm1254, %v1214, 0
    %v1331 = vsel %vm1254, %v1215, 0
    %v1334 = vsel %vm1254, %v1216, 0
    %v1337 = vsel %vm1254, %v1217, 0
    %v1340 = vsel %vm1254, %v1218, 0
    %v1343 = vsel %vm1254, %v1219, 0
    %v1346 = vsel %vm1254, %v1220, 0
    %v1349 = vsel %vm1254, %v1221, 0
    %v1352 = vsel %vm1254, %v1222, 0
    %v1355 = vsel %vm1254, %v1223, 0
    %v1358 = vsel %vm1254, %v1224, 0
    %v1361 = vsel %vm1254, %v1225, 0
    %v1364 = vsel %vm1254, %v1226, 0
    %v1367 = vsel %vm1254, %v1227, 0
    %v1370 = vsel %vm1254, %v1228, 0
    %v1373 = vsel %vm1254, %v1229, 0
    %v1376 = vsel %vm1254, %v1230, 0
    %v1379 = vsel %vm1254, %v1231, 0
    %v1382 = vsel %vm1254, %v1232, 0
    %v1385 = vsel %vm1254, %v1233, 0
    %v1388 = vsel %vm1254, %v1234, 0
    %v1391 = vsel %vm1254, %v1235, 0
    %v1394 = vsel %vm1254, %v1236, 0
    %v1397 = vsel %vm1254, %v1237, 0
    %v1400 = vsel %vm1254, %v1238, 0
    %v1403 = vsel %vm1254, %v1239, 0
    %v1406 = vsel %vm1254, %v1240, 0
    %v1409 = vsel %vm1254, %v1241, 0
    %v1412 = vsel %vm1254, %v1242, 0
    %v1415 = vsel %vm1254, %v1243, 0
    %v1418 = vsel %vm1254, %v1244, 0
    %v1421 = vsel %vm1254, %v1245, 0
    %v1424 = vsel %vm1254, %v1246, 0
    %v1427 = vsel %vm1254, %v1247, 0
    %v1430 = vsel %vm1254, %v1248, 0
    %v1433 = vsel %vm1254, %v1249, 0
    %v1436 = vsel %vm1254, %v1250, 0
    %v1439 = vsel %vm1254, %v1251, 0
    %v1442 = vsel %vm1254, %v1252, 0
    %v1445 = vsel %vm1254, %v1253, 0
    %1447 = vmatprep.subr.bf16.mxu0 0
    %1448 = vmatpush1.bf16.msra.mxu0 %v34
    %1449 = vmatprep.subr.bf16.mxu0 0
    %1450 = vmatpush1.bf16.msra.mxu0 %v35
    %1451 = vmatprep.subr.bf16.mxu0 0
    %1452 = vmatpush1.bf16.msra.mxu0 %v36
    %1453 = vmatprep.subr.bf16.mxu0 0
    %1454 = vmatpush1.bf16.msra.mxu0 %v37
    %1455 = vmatprep.subr.bf16.mxu0 0
    %1456 = vmatpush1.bf16.msra.mxu0 0
    %1457 = vmatprep.subr.bf16.mxu0 0
    %1458 = vmatpush1.bf16.msra.mxu0 0
    %1459 = vmatprep.subr.bf16.mxu0 0
    %1460 = vmatpush1.bf16.msra.mxu0 0
    %1461 = vmatprep.subr.bf16.mxu0 0
    %1462 = vmatpush1.bf16.msra.mxu0 0
    %1463 = vmatprep.subr.bf16.mxu0 0
    %1464 = vmatpush1.bf16.msra.mxu0 0
    %1465 = vmatprep.subr.bf16.mxu0 0
    %1466 = vmatpush1.bf16.msra.mxu0 0
    %1467 = vmatprep.subr.bf16.mxu0 0
    %1468 = vmatpush1.bf16.msra.mxu0 0
    %1469 = vmatprep.subr.bf16.mxu0 0
    %1470 = vmatpush1.bf16.msra.mxu0 0
    %1471 = vmatprep.subr.bf16.mxu0 0
    %1472 = vmatpush1.bf16.msra.mxu0 0
    %1473 = vmatprep.subr.bf16.mxu0 0
    %1474 = vmatpush1.bf16.msra.mxu0 0
    %1475 = vmatprep.subr.bf16.mxu0 0
    %1476 = vmatpush1.bf16.msra.mxu0 0
    %1477 = vmatprep.subr.bf16.mxu0 0
    %1478 = vmatpush1.bf16.msra.mxu0 0
    %1479 = vmatprep.mubr.bf16.mxu0 0
    %1480 = vmatmul.mubr.bf16.gmra.mrb[0].mxu0 %v1256
    %v1481 = vpop.f32.mrb[0].mxu0
    %v1482 = vadd.f32 %v297, %v1481
    %v1483 = vpop.f32.mrb[0].mxu0
    %v1484 = vpop.f32.mrb[0].mxu0
    %v1485 = vadd.f32 %v302, %v1484
    %v1486 = vpop.f32.mrb[0].mxu0
    %1487 = vmatprep.mubr.bf16.mxu0 0
    %1488 = vmatmul.mubr.bf16.gmra.mrb[0].mxu0 %v1259
    %v1489 = vpop.f32.mrb[0].mxu0
    %v1490 = vadd.f32 %v307, %v1489
    %v1491 = vpop.f32.mrb[0].mxu0
    %v1492 = vpop.f32.mrb[0].mxu0
    %v1493 = vadd.f32 %v312, %v1492
    %v1494 = vpop.f32.mrb[0].mxu0
    %1495 = vmatprep.mubr.bf16.mxu0 0
    %1496 = vmatmul.mubr.bf16.gmra.mrb[0].mxu0 %v1262
    %v1497 = vpop.f32.mrb[0].mxu0
    %v1498 = vadd.f32 %v317, %v1497
    %v1499 = vpop.f32.mrb[0].mxu0
    %v1500 = vpop.f32.mrb[0].mxu0
    %v1501 = vadd.f32 %v322, %v1500
    %v1502 = vpop.f32.mrb[0].mxu0
    %1503 = vmatprep.mubr.bf16.mxu0 0
    %1504 = vmatmul.mubr.bf16.gmra.mrb[0].mxu0 %v1265
    %v1505 = vpop.f32.mrb[0].mxu0
    %v1506 = vadd.f32 %v327, %v1505
    %v1507 = vpop.f32.mrb[0].mxu0
    %v1508 = vpop.f32.mrb[0].mxu0
    %v1509 = vadd.f32 %v332, %v1508
    %v1510 = vpop.f32.mrb[0].mxu0
    %1511 = vmatprep.mubr.bf16.mxu0 0
    %1512 = vmatmul.mubr.bf16.gmra.mrb[0].mxu0 %v1268
    %v1513 = vpop.f32.mrb[0].mxu0
    %v1514 = vadd.f32 %v337, %v1513
    %v1515 = vpop.f32.mrb[0].mxu0
    %v1516 = vpop.f32.mrb[0].mxu0
    %v1517 = vadd.f32 %v342, %v1516
    %v1518 = vpop.f32.mrb[0].mxu0
    %1519 = vmatprep.mubr.bf16.mxu0 0
    %1520 = vmatmul.mubr.bf16.gmra.mrb[0].mxu0 %v1271
    %v1521 = vpop.f32.mrb[0].mxu0
    %v1522 = vadd.f32 %v347, %v1521
    %v1523 = vpop.f32.mrb[0].mxu0
    %v1524 = vpop.f32.mrb[0].mxu0
    %v1525 = vadd.f32 %v352, %v1524
    %v1526 = vpop.f32.mrb[0].mxu0
    %1527 = vmatprep.mubr.bf16.mxu0 0
    %1528 = vmatmul.mubr.bf16.gmra.mrb[0].mxu0 %v1274
    %v1529 = vpop.f32.mrb[0].mxu0
    %v1530 = vadd.f32 %v357, %v1529
    %v1531 = vpop.f32.mrb[0].mxu0
    %v1532 = vpop.f32.mrb[0].mxu0
    %v1533 = vadd.f32 %v362, %v1532
    %v1534 = vpop.f32.mrb[0].mxu0
    %1535 = vmatprep.mubr.bf16.mxu0 0
    %1536 = vmatmul.mubr.bf16.gmra.mrb[0].mxu0 %v1277
    %v1537 = vpop.f32.mrb[0].mxu0
    %v1538 = vadd.f32 %v367, %v1537
    %v1539 = vpop.f32.mrb[0].mxu0
    %v1540 = vpop.f32.mrb[0].mxu0
    %v1541 = vadd.f32 %v372, %v1540
    %v1542 = vpop.f32.mrb[0].mxu0
    %1543 = vmatprep.mubr.bf16.mxu0 0
    %1544 = vmatmul.mubr.bf16.gmra.mrb[0].mxu0 %v1280
    %v1545 = vpop.f32.mrb[0].mxu0
    %v1546 = vadd.f32 %v377, %v1545
    %v1547 = vpop.f32.mrb[0].mxu0
    %v1548 = vpop.f32.mrb[0].mxu0
    %v1549 = vadd.f32 %v382, %v1548
    %v1550 = vpop.f32.mrb[0].mxu0
    %1551 = vmatprep.mubr.bf16.mxu0 0
    %1552 = vmatmul.mubr.bf16.gmra.mrb[0].mxu0 %v1283
    %v1553 = vpop.f32.mrb[0].mxu0
    %v1554 = vadd.f32 %v387, %v1553
    %v1555 = vpop.f32.mrb[0].mxu0
    %v1556 = vpop.f32.mrb[0].mxu0
    %v1557 = vadd.f32 %v392, %v1556
    %v1558 = vpop.f32.mrb[0].mxu0
    %1559 = vmatprep.mubr.bf16.mxu0 0
    %1560 = vmatmul.mubr.bf16.gmra.mrb[0].mxu0 %v1286
    %v1561 = vpop.f32.mrb[0].mxu0
    %v1562 = vadd.f32 %v397, %v1561
    %v1563 = vpop.f32.mrb[0].mxu0
    %v1564 = vpop.f32.mrb[0].mxu0
    %v1565 = vadd.f32 %v402, %v1564
    %v1566 = vpop.f32.mrb[0].mxu0
    %1567 = vmatprep.mubr.bf16.mxu0 0
    %1568 = vmatmul.mubr.bf16.gmra.mrb[0].mxu0 %v1289
    %v1569 = vpop.f32.mrb[0].mxu0
    %v1570 = vadd.f32 %v407, %v1569
    %v1571 = vpop.f32.mrb[0].mxu0
    %v1572 = vpop.f32.mrb[0].mxu0
    %v1573 = vadd.f32 %v412, %v1572
    %v1574 = vpop.f32.mrb[0].mxu0
    %1575 = vmatprep.mubr.bf16.mxu0 0
    %1576 = vmatmul.mubr.bf16.gmra.mrb[0].mxu0 %v1292
    %v1577 = vpop.f32.mrb[0].mxu0
    %v1578 = vadd.f32 %v417, %v1577
    %v1579 = vpop.f32.mrb[0].mxu0
    %v1580 = vpop.f32.mrb[0].mxu0
    %v1581 = vadd.f32 %v422, %v1580
    %v1582 = vpop.f32.mrb[0].mxu0
    %1583 = vmatprep.mubr.bf16.mxu0 0
    %1584 = vmatmul.mubr.bf16.gmra.mrb[0].mxu0 %v1295
    %v1585 = vpop.f32.mrb[0].mxu0
    %v1586 = vadd.f32 %v427, %v1585
    %v1587 = vpop.f32.mrb[0].mxu0
    %v1588 = vpop.f32.mrb[0].mxu0
    %v1589 = vadd.f32 %v432, %v1588
    %v1590 = vpop.f32.mrb[0].mxu0
    %1591 = vmatprep.mubr.bf16.mxu0 0
    %1592 = vmatmul.mubr.bf16.gmra.mrb[0].mxu0 %v1298
    %v1593 = vpop.f32.mrb[0].mxu0
    %v1594 = vadd.f32 %v437, %v1593
    %v1595 = vpop.f32.mrb[0].mxu0
    %v1596 = vpop.f32.mrb[0].mxu0
    %v1597 = vadd.f32 %v442, %v1596
    %v1598 = vpop.f32.mrb[0].mxu0
    %1599 = vmatprep.mubr.bf16.mxu0 0
    %1600 = vmatmul.mubr.bf16.gmra.mrb[0].mxu0 %v1301
    %v1601 = vpop.f32.mrb[0].mxu0
    %v1602 = vadd.f32 %v447, %v1601
    %v1603 = vpop.f32.mrb[0].mxu0
    %v1604 = vpop.f32.mrb[0].mxu0
    %v1605 = vadd.f32 %v452, %v1604
    %v1606 = vpop.f32.mrb[0].mxu0
    %1607 = vmatprep.mubr.bf16.mxu0 0
    %1608 = vmatmul.mubr.bf16.gmra.mrb[0].mxu0 %v1304
    %v1609 = vpop.f32.mrb[0].mxu0
    %v1610 = vadd.f32 %v457, %v1609
    %v1611 = vpop.f32.mrb[0].mxu0
    %v1612 = vpop.f32.mrb[0].mxu0
    %v1613 = vadd.f32 %v462, %v1612
    %v1614 = vpop.f32.mrb[0].mxu0
    %1615 = vmatprep.mubr.bf16.mxu0 0
    %1616 = vmatmul.mubr.bf16.gmra.mrb[0].mxu0 %v1307
    %v1617 = vpop.f32.mrb[0].mxu0
    %v1618 = vadd.f32 %v467, %v1617
    %v1619 = vpop.f32.mrb[0].mxu0
    %v1620 = vpop.f32.mrb[0].mxu0
    %v1621 = vadd.f32 %v472, %v1620
    %v1622 = vpop.f32.mrb[0].mxu0
    %1623 = vmatprep.mubr.bf16.mxu0 0
    %1624 = vmatmul.mubr.bf16.gmra.mrb[0].mxu0 %v1310
    %v1625 = vpop.f32.mrb[0].mxu0
    %v1626 = vadd.f32 %v477, %v1625
    %v1627 = vpop.f32.mrb[0].mxu0
    %v1628 = vpop.f32.mrb[0].mxu0
    %v1629 = vadd.f32 %v482, %v1628
    %v1630 = vpop.f32.mrb[0].mxu0
    %1631 = vmatprep.mubr.bf16.mxu0 0
    %1632 = vmatmul.mubr.bf16.gmra.mrb[0].mxu0 %v1313
    %v1633 = vpop.f32.mrb[0].mxu0
    %v1634 = vadd.f32 %v487, %v1633
    %v1635 = vpop.f32.mrb[0].mxu0
    %v1636 = vpop.f32.mrb[0].mxu0
    %v1637 = vadd.f32 %v492, %v1636
    %v1638 = vpop.f32.mrb[0].mxu0
    %1639 = vmatprep.mubr.bf16.mxu0 0
    %1640 = vmatmul.mubr.bf16.gmra.mrb[0].mxu0 %v1316
    %v1641 = vpop.f32.mrb[0].mxu0
    %v1642 = vadd.f32 %v497, %v1641
    %v1643 = vpop.f32.mrb[0].mxu0
    %v1644 = vpop.f32.mrb[0].mxu0
    %v1645 = vadd.f32 %v502, %v1644
    %v1646 = vpop.f32.mrb[0].mxu0
    %1647 = vmatprep.mubr.bf16.mxu0 0
    %1648 = vmatmul.mubr.bf16.gmra.mrb[0].mxu0 %v1319
    %v1649 = vpop.f32.mrb[0].mxu0
    %v1650 = vadd.f32 %v507, %v1649
    %v1651 = vpop.f32.mrb[0].mxu0
    %v1652 = vpop.f32.mrb[0].mxu0
    %v1653 = vadd.f32 %v512, %v1652
    %v1654 = vpop.f32.mrb[0].mxu0
    %1655 = vmatprep.mubr.bf16.mxu0 0
    %1656 = vmatmul.mubr.bf16.gmra.mrb[0].mxu0 %v1322
    %v1657 = vpop.f32.mrb[0].mxu0
    %v1658 = vadd.f32 %v517, %v1657
    %v1659 = vpop.f32.mrb[0].mxu0
    %v1660 = vpop.f32.mrb[0].mxu0
    %v1661 = vadd.f32 %v522, %v1660
    %v1662 = vpop.f32.mrb[0].mxu0
    %1663 = vmatprep.mubr.bf16.mxu0 0
    %1664 = vmatmul.mubr.bf16.gmra.mrb[0].mxu0 %v1325
    %v1665 = vpop.f32.mrb[0].mxu0
    %v1666 = vadd.f32 %v527, %v1665
    %v1667 = vpop.f32.mrb[0].mxu0
    %v1668 = vpop.f32.mrb[0].mxu0
    %v1669 = vadd.f32 %v532, %v1668
    %v1670 = vpop.f32.mrb[0].mxu0
    %1671 = vmatprep.mubr.bf16.mxu0 0
    %1672 = vmatmul.mubr.bf16.gmra.mrb[0].mxu0 %v1328
    %v1673 = vpop.f32.mrb[0].mxu0
    %v1674 = vadd.f32 %v537, %v1673
    %v1675 = vpop.f32.mrb[0].mxu0
    %v1676 = vpop.f32.mrb[0].mxu0
    %v1677 = vadd.f32 %v542, %v1676
    %v1678 = vpop.f32.mrb[0].mxu0
    %1679 = vmatprep.mubr.bf16.mxu0 0
    %1680 = vmatmul.mubr.bf16.gmra.mrb[0].mxu0 %v1331
    %v1681 = vpop.f32.mrb[0].mxu0
    %v1682 = vadd.f32 %v547, %v1681
    %v1683 = vpop.f32.mrb[0].mxu0
    %v1684 = vpop.f32.mrb[0].mxu0
    %v1685 = vadd.f32 %v552, %v1684
    %v1686 = vpop.f32.mrb[0].mxu0
    %1687 = vmatprep.mubr.bf16.mxu0 0
    %1688 = vmatmul.mubr.bf16.gmra.mrb[0].mxu0 %v1334
    %v1689 = vpop.f32.mrb[0].mxu0
    %v1690 = vadd.f32 %v557, %v1689
    %v1691 = vpop.f32.mrb[0].mxu0
    %v1692 = vpop.f32.mrb[0].mxu0
    %v1693 = vadd.f32 %v562, %v1692
    %v1694 = vpop.f32.mrb[0].mxu0
    %1695 = vmatprep.mubr.bf16.mxu0 0
    %1696 = vmatmul.mubr.bf16.gmra.mrb[0].mxu0 %v1337
    %v1697 = vpop.f32.mrb[0].mxu0
    %v1698 = vadd.f32 %v567, %v1697
    %v1699 = vpop.f32.mrb[0].mxu0
    %v1700 = vpop.f32.mrb[0].mxu0
    %v1701 = vadd.f32 %v572, %v1700
    %v1702 = vpop.f32.mrb[0].mxu0
    %1703 = vmatprep.mubr.bf16.mxu0 0
    %1704 = vmatmul.mubr.bf16.gmra.mrb[0].mxu0 %v1340
    %v1705 = vpop.f32.mrb[0].mxu0
    %v1706 = vadd.f32 %v577, %v1705
    %v1707 = vpop.f32.mrb[0].mxu0
    %v1708 = vpop.f32.mrb[0].mxu0
    %v1709 = vadd.f32 %v582, %v1708
    %v1710 = vpop.f32.mrb[0].mxu0
    %1711 = vmatprep.mubr.bf16.mxu0 0
    %1712 = vmatmul.mubr.bf16.gmra.mrb[0].mxu0 %v1343
    %v1713 = vpop.f32.mrb[0].mxu0
    %v1714 = vadd.f32 %v587, %v1713
    %v1715 = vpop.f32.mrb[0].mxu0
    %v1716 = vpop.f32.mrb[0].mxu0
    %v1717 = vadd.f32 %v592, %v1716
    %v1718 = vpop.f32.mrb[0].mxu0
    %1719 = vmatprep.mubr.bf16.mxu0 0
    %1720 = vmatmul.mubr.bf16.gmra.mrb[0].mxu0 %v1346
    %v1721 = vpop.f32.mrb[0].mxu0
    %v1722 = vadd.f32 %v597, %v1721
    %v1723 = vpop.f32.mrb[0].mxu0
    %v1724 = vpop.f32.mrb[0].mxu0
    %v1725 = vadd.f32 %v602, %v1724
    %v1726 = vpop.f32.mrb[0].mxu0
    %1727 = vmatprep.mubr.bf16.mxu0 0
    %1728 = vmatmul.mubr.bf16.gmra.mrb[0].mxu0 %v1349
    %v1729 = vpop.f32.mrb[0].mxu0
    %v1730 = vadd.f32 %v607, %v1729
    %v1731 = vpop.f32.mrb[0].mxu0
    %v1732 = vpop.f32.mrb[0].mxu0
    %v1733 = vadd.f32 %v612, %v1732
    %v1734 = vpop.f32.mrb[0].mxu0
    %1735 = vmatprep.mubr.bf16.mxu0 0
    %1736 = vmatmul.mubr.bf16.gmra.mrb[0].mxu0 %v1352
    %v1737 = vpop.f32.mrb[0].mxu0
    %v1738 = vadd.f32 %v617, %v1737
    %v1739 = vpop.f32.mrb[0].mxu0
    %v1740 = vpop.f32.mrb[0].mxu0
    %v1741 = vadd.f32 %v622, %v1740
    %v1742 = vpop.f32.mrb[0].mxu0
    %1743 = vmatprep.mubr.bf16.mxu0 0
    %1744 = vmatmul.mubr.bf16.gmra.mrb[0].mxu0 %v1355
    %v1745 = vpop.f32.mrb[0].mxu0
    %v1746 = vadd.f32 %v627, %v1745
    %v1747 = vpop.f32.mrb[0].mxu0
    %v1748 = vpop.f32.mrb[0].mxu0
    %v1749 = vadd.f32 %v632, %v1748
    %v1750 = vpop.f32.mrb[0].mxu0
    %1751 = vmatprep.mubr.bf16.mxu0 0
    %1752 = vmatmul.mubr.bf16.gmra.mrb[0].mxu0 %v1358
    %v1753 = vpop.f32.mrb[0].mxu0
    %v1754 = vadd.f32 %v637, %v1753
    %v1755 = vpop.f32.mrb[0].mxu0
    %v1756 = vpop.f32.mrb[0].mxu0
    %v1757 = vadd.f32 %v642, %v1756
    %v1758 = vpop.f32.mrb[0].mxu0
    %1759 = vmatprep.mubr.bf16.mxu0 0
    %1760 = vmatmul.mubr.bf16.gmra.mrb[0].mxu0 %v1361
    %v1761 = vpop.f32.mrb[0].mxu0
    %v1762 = vadd.f32 %v647, %v1761
    %v1763 = vpop.f32.mrb[0].mxu0
    %v1764 = vpop.f32.mrb[0].mxu0
    %v1765 = vadd.f32 %v652, %v1764
    %v1766 = vpop.f32.mrb[0].mxu0
    %1767 = vmatprep.mubr.bf16.mxu0 0
    %1768 = vmatmul.mubr.bf16.gmra.mrb[0].mxu0 %v1364
    %v1769 = vpop.f32.mrb[0].mxu0
    %v1770 = vadd.f32 %v657, %v1769
    %v1771 = vpop.f32.mrb[0].mxu0
    %v1772 = vpop.f32.mrb[0].mxu0
    %v1773 = vadd.f32 %v662, %v1772
    %v1774 = vpop.f32.mrb[0].mxu0
    %1775 = vmatprep.mubr.bf16.mxu0 0
    %1776 = vmatmul.mubr.bf16.gmra.mrb[0].mxu0 %v1367
    %v1777 = vpop.f32.mrb[0].mxu0
    %v1778 = vadd.f32 %v667, %v1777
    %v1779 = vpop.f32.mrb[0].mxu0
    %v1780 = vpop.f32.mrb[0].mxu0
    %v1781 = vadd.f32 %v672, %v1780
    %v1782 = vpop.f32.mrb[0].mxu0
    %1783 = vmatprep.mubr.bf16.mxu0 0
    %1784 = vmatmul.mubr.bf16.gmra.mrb[0].mxu0 %v1370
    %v1785 = vpop.f32.mrb[0].mxu0
    %v1786 = vadd.f32 %v677, %v1785
    %v1787 = vpop.f32.mrb[0].mxu0
    %v1788 = vpop.f32.mrb[0].mxu0
    %v1789 = vadd.f32 %v682, %v1788
    %v1790 = vpop.f32.mrb[0].mxu0
    %1791 = vmatprep.mubr.bf16.mxu0 0
    %1792 = vmatmul.mubr.bf16.gmra.mrb[0].mxu0 %v1373
    %v1793 = vpop.f32.mrb[0].mxu0
    %v1794 = vadd.f32 %v687, %v1793
    %v1795 = vpop.f32.mrb[0].mxu0
    %v1796 = vpop.f32.mrb[0].mxu0
    %v1797 = vadd.f32 %v692, %v1796
    %v1798 = vpop.f32.mrb[0].mxu0
    %1799 = vmatprep.mubr.bf16.mxu0 0
    %1800 = vmatmul.mubr.bf16.gmra.mrb[0].mxu0 %v1376
    %v1801 = vpop.f32.mrb[0].mxu0
    %v1802 = vadd.f32 %v697, %v1801
    %v1803 = vpop.f32.mrb[0].mxu0
    %v1804 = vpop.f32.mrb[0].mxu0
    %v1805 = vadd.f32 %v702, %v1804
    %v1806 = vpop.f32.mrb[0].mxu0
    %1807 = vmatprep.mubr.bf16.mxu0 0
    %1808 = vmatmul.mubr.bf16.gmra.mrb[0].mxu0 %v1379
    %v1809 = vpop.f32.mrb[0].mxu0
    %v1810 = vadd.f32 %v707, %v1809
    %v1811 = vpop.f32.mrb[0].mxu0
    %v1812 = vpop.f32.mrb[0].mxu0
    %v1813 = vadd.f32 %v712, %v1812
    %v1814 = vpop.f32.mrb[0].mxu0
    %1815 = vmatprep.mubr.bf16.mxu0 0
    %1816 = vmatmul.mubr.bf16.gmra.mrb[0].mxu0 %v1382
    %v1817 = vpop.f32.mrb[0].mxu0
    %v1818 = vadd.f32 %v717, %v1817
    %v1819 = vpop.f32.mrb[0].mxu0
    %v1820 = vpop.f32.mrb[0].mxu0
    %v1821 = vadd.f32 %v722, %v1820
    %v1822 = vpop.f32.mrb[0].mxu0
    %1823 = vmatprep.mubr.bf16.mxu0 0
    %1824 = vmatmul.mubr.bf16.gmra.mrb[0].mxu0 %v1385
    %v1825 = vpop.f32.mrb[0].mxu0
    %v1826 = vadd.f32 %v727, %v1825
    %v1827 = vpop.f32.mrb[0].mxu0
    %v1828 = vpop.f32.mrb[0].mxu0
    %v1829 = vadd.f32 %v732, %v1828
    %v1830 = vpop.f32.mrb[0].mxu0
    %1831 = vmatprep.mubr.bf16.mxu0 0
    %1832 = vmatmul.mubr.bf16.gmra.mrb[0].mxu0 %v1388
    %v1833 = vpop.f32.mrb[0].mxu0
    %v1834 = vadd.f32 %v737, %v1833
    %v1835 = vpop.f32.mrb[0].mxu0
    %v1836 = vpop.f32.mrb[0].mxu0
    %v1837 = vadd.f32 %v742, %v1836
    %v1838 = vpop.f32.mrb[0].mxu0
    %1839 = vmatprep.mubr.bf16.mxu0 0
    %1840 = vmatmul.mubr.bf16.gmra.mrb[0].mxu0 %v1391
    %v1841 = vpop.f32.mrb[0].mxu0
    %v1842 = vadd.f32 %v747, %v1841
    %v1843 = vpop.f32.mrb[0].mxu0
    %v1844 = vpop.f32.mrb[0].mxu0
    %v1845 = vadd.f32 %v752, %v1844
    %v1846 = vpop.f32.mrb[0].mxu0
    %1847 = vmatprep.mubr.bf16.mxu0 0
    %1848 = vmatmul.mubr.bf16.gmra.mrb[0].mxu0 %v1394
    %v1849 = vpop.f32.mrb[0].mxu0
    %v1850 = vadd.f32 %v757, %v1849
    %v1851 = vpop.f32.mrb[0].mxu0
    %v1852 = vpop.f32.mrb[0].mxu0
    %v1853 = vadd.f32 %v762, %v1852
    %v1854 = vpop.f32.mrb[0].mxu0
    %1855 = vmatprep.mubr.bf16.mxu0 0
    %1856 = vmatmul.mubr.bf16.gmra.mrb[0].mxu0 %v1397
    %v1857 = vpop.f32.mrb[0].mxu0
    %v1858 = vadd.f32 %v767, %v1857
    %v1859 = vpop.f32.mrb[0].mxu0
    %v1860 = vpop.f32.mrb[0].mxu0
    %v1861 = vadd.f32 %v772, %v1860
    %v1862 = vpop.f32.mrb[0].mxu0
    %1863 = vmatprep.mubr.bf16.mxu0 0
    %1864 = vmatmul.mubr.bf16.gmra.mrb[0].mxu0 %v1400
    %v1865 = vpop.f32.mrb[0].mxu0
    %v1866 = vadd.f32 %v777, %v1865
    %v1867 = vpop.f32.mrb[0].mxu0
    %v1868 = vpop.f32.mrb[0].mxu0
    %v1869 = vadd.f32 %v782, %v1868
    %v1870 = vpop.f32.mrb[0].mxu0
    %1871 = vmatprep.mubr.bf16.mxu0 0
    %1872 = vmatmul.mubr.bf16.gmra.mrb[0].mxu0 %v1403
    %v1873 = vpop.f32.mrb[0].mxu0
    %v1874 = vadd.f32 %v787, %v1873
    %v1875 = vpop.f32.mrb[0].mxu0
    %v1876 = vpop.f32.mrb[0].mxu0
    %v1877 = vadd.f32 %v792, %v1876
    %v1878 = vpop.f32.mrb[0].mxu0
    %1879 = vmatprep.mubr.bf16.mxu0 0
    %1880 = vmatmul.mubr.bf16.gmra.mrb[0].mxu0 %v1406
    %v1881 = vpop.f32.mrb[0].mxu0
    %v1882 = vadd.f32 %v797, %v1881
    %v1883 = vpop.f32.mrb[0].mxu0
    %v1884 = vpop.f32.mrb[0].mxu0
    %v1885 = vadd.f32 %v802, %v1884
    %v1886 = vpop.f32.mrb[0].mxu0
    %1887 = vmatprep.mubr.bf16.mxu0 0
    %1888 = vmatmul.mubr.bf16.gmra.mrb[0].mxu0 %v1409
    %v1889 = vpop.f32.mrb[0].mxu0
    %v1890 = vadd.f32 %v807, %v1889
    %v1891 = vpop.f32.mrb[0].mxu0
    %v1892 = vpop.f32.mrb[0].mxu0
    %v1893 = vadd.f32 %v812, %v1892
    %v1894 = vpop.f32.mrb[0].mxu0
    %1895 = vmatprep.mubr.bf16.mxu0 0
    %1896 = vmatmul.mubr.bf16.gmra.mrb[0].mxu0 %v1412
    %v1897 = vpop.f32.mrb[0].mxu0
    %v1898 = vadd.f32 %v817, %v1897
    %v1899 = vpop.f32.mrb[0].mxu0
    %v1900 = vpop.f32.mrb[0].mxu0
    %v1901 = vadd.f32 %v822, %v1900
    %v1902 = vpop.f32.mrb[0].mxu0
    %1903 = vmatprep.mubr.bf16.mxu0 0
    %1904 = vmatmul.mubr.bf16.gmra.mrb[0].mxu0 %v1415
    %v1905 = vpop.f32.mrb[0].mxu0
    %v1906 = vadd.f32 %v827, %v1905
    %v1907 = vpop.f32.mrb[0].mxu0
    %v1908 = vpop.f32.mrb[0].mxu0
    %v1909 = vadd.f32 %v832, %v1908
    %v1910 = vpop.f32.mrb[0].mxu0
    %1911 = vmatprep.mubr.bf16.mxu0 0
    %1912 = vmatmul.mubr.bf16.gmra.mrb[0].mxu0 %v1418
    %v1913 = vpop.f32.mrb[0].mxu0
    %v1914 = vadd.f32 %v837, %v1913
    %v1915 = vpop.f32.mrb[0].mxu0
    %v1916 = vpop.f32.mrb[0].mxu0
    %v1917 = vadd.f32 %v842, %v1916
    %v1918 = vpop.f32.mrb[0].mxu0
    %1919 = vmatprep.mubr.bf16.mxu0 0
    %1920 = vmatmul.mubr.bf16.gmra.mrb[0].mxu0 %v1421
    %v1921 = vpop.f32.mrb[0].mxu0
    %v1922 = vadd.f32 %v847, %v1921
    %v1923 = vpop.f32.mrb[0].mxu0
    %v1924 = vpop.f32.mrb[0].mxu0
    %v1925 = vadd.f32 %v852, %v1924
    %v1926 = vpop.f32.mrb[0].mxu0
    %1927 = vmatprep.mubr.bf16.mxu0 0
    %1928 = vmatmul.mubr.bf16.gmra.mrb[0].mxu0 %v1424
    %v1929 = vpop.f32.mrb[0].mxu0
    %v1930 = vadd.f32 %v857, %v1929
    %v1931 = vpop.f32.mrb[0].mxu0
    %v1932 = vpop.f32.mrb[0].mxu0
    %v1933 = vadd.f32 %v862, %v1932
    %v1934 = vpop.f32.mrb[0].mxu0
    %1935 = vmatprep.mubr.bf16.mxu0 0
    %1936 = vmatmul.mubr.bf16.gmra.mrb[0].mxu0 %v1427
    %v1937 = vpop.f32.mrb[0].mxu0
    %v1938 = vadd.f32 %v867, %v1937
    %v1939 = vpop.f32.mrb[0].mxu0
    %v1940 = vpop.f32.mrb[0].mxu0
    %v1941 = vadd.f32 %v872, %v1940
    %v1942 = vpop.f32.mrb[0].mxu0
    %1943 = vmatprep.mubr.bf16.mxu0 0
    %1944 = vmatmul.mubr.bf16.gmra.mrb[0].mxu0 %v1430
    %v1945 = vpop.f32.mrb[0].mxu0
    %v1946 = vadd.f32 %v877, %v1945
    %v1947 = vpop.f32.mrb[0].mxu0
    %v1948 = vpop.f32.mrb[0].mxu0
    %v1949 = vadd.f32 %v882, %v1948
    %v1950 = vpop.f32.mrb[0].mxu0
    %1951 = vmatprep.mubr.bf16.mxu0 0
    %1952 = vmatmul.mubr.bf16.gmra.mrb[0].mxu0 %v1433
    %v1953 = vpop.f32.mrb[0].mxu0
    %v1954 = vadd.f32 %v887, %v1953
    %v1955 = vpop.f32.mrb[0].mxu0
    %v1956 = vpop.f32.mrb[0].mxu0
    %v1957 = vadd.f32 %v892, %v1956
    %v1958 = vpop.f32.mrb[0].mxu0
    %1959 = vmatprep.mubr.bf16.mxu0 0
    %1960 = vmatmul.mubr.bf16.gmra.mrb[0].mxu0 %v1436
    %v1961 = vpop.f32.mrb[0].mxu0
    %v1962 = vadd.f32 %v897, %v1961
    %v1963 = vpop.f32.mrb[0].mxu0
    %v1964 = vpop.f32.mrb[0].mxu0
    %v1965 = vadd.f32 %v902, %v1964
    %v1966 = vpop.f32.mrb[0].mxu0
    %1967 = vmatprep.mubr.bf16.mxu0 0
    %1968 = vmatmul.mubr.bf16.gmra.mrb[0].mxu0 %v1439
    %v1969 = vpop.f32.mrb[0].mxu0
    %v1970 = vadd.f32 %v907, %v1969
    %v1971 = vpop.f32.mrb[0].mxu0
    %v1972 = vpop.f32.mrb[0].mxu0
    %v1973 = vadd.f32 %v912, %v1972
    %v1974 = vpop.f32.mrb[0].mxu0
    %1975 = vmatprep.mubr.bf16.mxu0 0
    %1976 = vmatmul.mubr.bf16.gmra.mrb[0].mxu0 %v1442
    %v1977 = vpop.f32.mrb[0].mxu0
    %v1978 = vadd.f32 %v917, %v1977
    %v1979 = vpop.f32.mrb[0].mxu0
    %v1980 = vpop.f32.mrb[0].mxu0
    %v1981 = vadd.f32 %v922, %v1980
    %v1982 = vpop.f32.mrb[0].mxu0
    %1983 = vmatprep.mubr.bf16.mxu0 0
    %1984 = vmatmul.mubr.bf16.gmra.mrb[0].mxu0 %v1445
    %v1985 = vpop.f32.mrb[0].mxu0
    %v1986 = vadd.f32 %v927, %v1985
    %v1987 = vpop.f32.mrb[0].mxu0
    %v1988 = vpop.f32.mrb[0].mxu0
    %v1989 = vadd.f32 %v932, %v1988
    %v1990 = vpop.f32.mrb[0].mxu0
    %1991 = vdwg.mxu0
    %v1992 = vtanh.pop %v1482
    %v1993 = vtanh.pop %v1485
    %v1994 = vtanh.pop %v1490
    %v1995 = vtanh.pop %v1493
    %v1996 = vtanh.pop %v1498
    %v1997 = vtanh.pop %v1501
    %v1998 = vtanh.pop %v1506
    %v1999 = vtanh.pop %v1509
    %v2000 = vtanh.pop %v1514
    %v2001 = vtanh.pop %v1517
    %v2002 = vtanh.pop %v1522
    %v2003 = vtanh.pop %v1525
    %v2004 = vtanh.pop %v1530
    %v2005 = vtanh.pop %v1533
    %v2006 = vtanh.pop %v1538
    %v2007 = vtanh.pop %v1541
    %v2008 = vtanh.pop %v1546
    %v2009 = vtanh.pop %v1549
    %v2010 = vtanh.pop %v1554
    %v2011 = vtanh.pop %v1557
    %v2012 = vtanh.pop %v1562
    %v2013 = vtanh.pop %v1565
    %v2014 = vtanh.pop %v1570
    %v2015 = vtanh.pop %v1573
    %v2016 = vtanh.pop %v1578
    %v2017 = vtanh.pop %v1581
    %v2018 = vtanh.pop %v1586
    %v2019 = vtanh.pop %v1589
    %v2020 = vtanh.pop %v1594
    %v2021 = vtanh.pop %v1597
    %v2022 = vtanh.pop %v1602
    %v2023 = vtanh.pop %v1605
    %v2024 = vtanh.pop %v1610
    %v2025 = vtanh.pop %v1613
    %v2026 = vtanh.pop %v1618
    %v2027 = vtanh.pop %v1621
    %v2028 = vtanh.pop %v1626
    %v2029 = vtanh.pop %v1629
    %v2030 = vtanh.pop %v1634
    %v2031 = vtanh.pop %v1637
    %v2032 = vtanh.pop %v1642
    %v2033 = vtanh.pop %v1645
    %v2034 = vtanh.pop %v1650
    %v2035 = vtanh.pop %v1653
    %v2036 = vtanh.pop %v1658
    %v2037 = vtanh.pop %v1661
    %v2038 = vtanh.pop %v1666
    %v2039 = vtanh.pop %v1669
    %v2040 = vtanh.pop %v1674
    %v2041 = vtanh.pop %v1677
    %v2042 = vtanh.pop %v1682
    %v2043 = vtanh.pop %v1685
    %v2044 = vtanh.pop %v1690
    %v2045 = vtanh.pop %v1693
    %v2046 = vtanh.pop %v1698
    %v2047 = vtanh.pop %v1701
    %v2048 = vtanh.pop %v1706
    %v2049 = vtanh.pop %v1709
    %v2050 = vtanh.pop %v1714
    %v2051 = vtanh.pop %v1717
    %v2052 = vtanh.pop %v1722
    %v2053 = vtanh.pop %v1725
    %v2054 = vtanh.pop %v1730
    %v2055 = vtanh.pop %v1733
    %v2056 = vtanh.pop %v1738
    %v2057 = vtanh.pop %v1741
    %v2058 = vtanh.pop %v1746
    %v2059 = vtanh.pop %v1749
    %v2060 = vtanh.pop %v1754
    %v2061 = vtanh.pop %v1757
    %v2062 = vtanh.pop %v1762
    %v2063 = vtanh.pop %v1765
    %v2064 = vtanh.pop %v1770
    %v2065 = vtanh.pop %v1773
    %v2066 = vtanh.pop %v1778
    %v2067 = vtanh.pop %v1781
    %v2068 = vtanh.pop %v1786
    %v2069 = vtanh.pop %v1789
    %v2070 = vtanh.pop %v1794
    %v2071 = vtanh.pop %v1797
    %v2072 = vtanh.pop %v1802
    %v2073 = vtanh.pop %v1805
    %v2074 = vtanh.pop %v1810
    %v2075 = vtanh.pop %v1813
    %v2076 = vtanh.pop %v1818
    %v2077 = vtanh.pop %v1821
    %v2078 = vtanh.pop %v1826
    %v2079 = vtanh.pop %v1829
    %v2080 = vtanh.pop %v1834
    %v2081 = vtanh.pop %v1837
    %v2082 = vtanh.pop %v1842
    %v2083 = vtanh.pop %v1845
    %v2084 = vtanh.pop %v1850
    %v2085 = vtanh.pop %v1853
    %v2086 = vtanh.pop %v1858
    %v2087 = vtanh.pop %v1861
    %v2088 = vtanh.pop %v1866
    %v2089 = vtanh.pop %v1869
    %v2090 = vtanh.pop %v1874
    %v2091 = vtanh.pop %v1877
    %v2092 = vtanh.pop %v1882
    %v2093 = vtanh.pop %v1885
    %v2094 = vtanh.pop %v1890
    %v2095 = vtanh.pop %v1893
    %v2096 = vtanh.pop %v1898
    %v2097 = vtanh.pop %v1901
    %v2098 = vtanh.pop %v1906
    %v2099 = vtanh.pop %v1909
    %v2100 = vtanh.pop %v1914
    %v2101 = vtanh.pop %v1917
    %v2102 = vtanh.pop %v1922
    %v2103 = vtanh.pop %v1925
    %v2104 = vtanh.pop %v1930
    %v2105 = vtanh.pop %v1933
    %v2106 = vtanh.pop %v1938
    %v2107 = vtanh.pop %v1941
    %v2108 = vtanh.pop %v1946
    %v2109 = vtanh.pop %v1949
    %v2110 = vtanh.pop %v1954
    %v2111 = vtanh.pop %v1957
    %v2112 = vtanh.pop %v1962
    %v2113 = vtanh.pop %v1965
    %v2114 = vtanh.pop %v1970
    %v2115 = vtanh.pop %v1973
    %v2116 = vtanh.pop %v1978
    %v2117 = vtanh.pop %v1981
    %v2118 = vtanh.pop %v1986
    %v2119 = vtanh.pop %v1989
    %v2120 = vmul.f32 %v1992, 0.5
    %v2121 = vmul.f32 %v1993, 0.5
    %v2122 = vmul.f32 %v1994, 0.5
    %v2123 = vmul.f32 %v1995, 0.5
    %v2124 = vmul.f32 %v1996, 0.5
    %v2125 = vmul.f32 %v1997, 0.5
    %v2126 = vmul.f32 %v1998, 0.5
    %v2127 = vmul.f32 %v1999, 0.5
    %v2128 = vmul.f32 %v2000, 0.5
    %v2129 = vmul.f32 %v2001, 0.5
    %v2130 = vmul.f32 %v2002, 0.5
    %v2131 = vmul.f32 %v2003, 0.5
    %v2132 = vmul.f32 %v2004, 0.5
    %v2133 = vmul.f32 %v2005, 0.5
    %v2134 = vmul.f32 %v2006, 0.5
    %v2135 = vmul.f32 %v2007, 0.5
    %v2136 = vmul.f32 %v2008, 0.5
    %v2137 = vmul.f32 %v2009, 0.5
    %v2138 = vmul.f32 %v2010, 0.5
    %v2139 = vmul.f32 %v2011, 0.5
    %v2140 = vmul.f32 %v2012, 0.5
    %v2141 = vmul.f32 %v2013, 0.5
    %v2142 = vmul.f32 %v2014, 0.5
    %v2143 = vmul.f32 %v2015, 0.5
    %v2144 = vmul.f32 %v2016, 0.5
    %v2145 = vmul.f32 %v2017, 0.5
    %v2146 = vmul.f32 %v2018, 0.5
    %v2147 = vmul.f32 %v2019, 0.5
    %v2148 = vmul.f32 %v2020, 0.5
    %v2149 = vmul.f32 %v2021, 0.5
    %v2150 = vmul.f32 %v2022, 0.5
    %v2151 = vmul.f32 %v2023, 0.5
    %v2152 = vmul.f32 %v2024, 0.5
    %v2153 = vmul.f32 %v2025, 0.5
    %v2154 = vmul.f32 %v2026, 0.5
    %v2155 = vmul.f32 %v2027, 0.5
    %v2156 = vmul.f32 %v2028, 0.5
    %v2157 = vmul.f32 %v2029, 0.5
    %v2158 = vmul.f32 %v2030, 0.5
    %v2159 = vmul.f32 %v2031, 0.5
    %v2160 = vmul.f32 %v2032, 0.5
    %v2161 = vmul.f32 %v2033, 0.5
    %v2162 = vmul.f32 %v2034, 0.5
    %v2163 = vmul.f32 %v2035, 0.5
    %v2164 = vmul.f32 %v2036, 0.5
    %v2165 = vmul.f32 %v2037, 0.5
    %v2166 = vmul.f32 %v2038, 0.5
    %v2167 = vmul.f32 %v2039, 0.5
    %v2168 = vmul.f32 %v2040, 0.5
    %v2169 = vmul.f32 %v2041, 0.5
    %v2170 = vmul.f32 %v2042, 0.5
    %v2171 = vmul.f32 %v2043, 0.5
    %v2172 = vmul.f32 %v2044, 0.5
    %v2173 = vmul.f32 %v2045, 0.5
    %v2174 = vmul.f32 %v2046, 0.5
    %v2175 = vmul.f32 %v2047, 0.5
    %v2176 = vmul.f32 %v2048, 0.5
    %v2177 = vmul.f32 %v2049, 0.5
    %v2178 = vmul.f32 %v2050, 0.5
    %v2179 = vmul.f32 %v2051, 0.5
    %v2180 = vmul.f32 %v2052, 0.5
    %v2181 = vmul.f32 %v2053, 0.5
    %v2182 = vmul.f32 %v2054, 0.5
    %v2183 = vmul.f32 %v2055, 0.5
    %v2184 = vmul.f32 %v2056, 0.5
    %v2185 = vmul.f32 %v2057, 0.5
    %v2186 = vmul.f32 %v2058, 0.5
    %v2187 = vmul.f32 %v2059, 0.5
    %v2188 = vmul.f32 %v2060, 0.5
    %v2189 = vmul.f32 %v2061, 0.5
    %v2190 = vmul.f32 %v2062, 0.5
    %v2191 = vmul.f32 %v2063, 0.5
    %v2192 = vmul.f32 %v2064, 0.5
    %v2193 = vmul.f32 %v2065, 0.5
    %v2194 = vmul.f32 %v2066, 0.5
    %v2195 = vmul.f32 %v2067, 0.5
    %v2196 = vmul.f32 %v2068, 0.5
    %v2197 = vmul.f32 %v2069, 0.5
    %v2198 = vmul.f32 %v2070, 0.5
    %v2199 = vmul.f32 %v2071, 0.5
    %v2200 = vmul.f32 %v2072, 0.5
    %v2201 = vmul.f32 %v2073, 0.5
    %v2202 = vmul.f32 %v2074, 0.5
    %v2203 = vmul.f32 %v2075, 0.5
    %v2204 = vmul.f32 %v2076, 0.5
    %v2205 = vmul.f32 %v2077, 0.5
    %v2206 = vmul.f32 %v2078, 0.5
    %v2207 = vmul.f32 %v2079, 0.5
    %v2208 = vmul.f32 %v2080, 0.5
    %v2209 = vmul.f32 %v2081, 0.5
    %v2210 = vmul.f32 %v2082, 0.5
    %v2211 = vmul.f32 %v2083, 0.5
    %v2212 = vmul.f32 %v2084, 0.5
    %v2213 = vmul.f32 %v2085, 0.5
    %v2214 = vmul.f32 %v2086, 0.5
    %v2215 = vmul.f32 %v2087, 0.5
    %v2216 = vmul.f32 %v2088, 0.5
    %v2217 = vmul.f32 %v2089, 0.5
    %v2218 = vmul.f32 %v2090, 0.5
    %v2219 = vmul.f32 %v2091, 0.5
    %v2220 = vmul.f32 %v2092, 0.5
    %v2221 = vmul.f32 %v2093, 0.5
    %v2222 = vmul.f32 %v2094, 0.5
    %v2223 = vmul.f32 %v2095, 0.5
    %v2224 = vmul.f32 %v2096, 0.5
    %v2225 = vmul.f32 %v2097, 0.5
    %v2226 = vmul.f32 %v2098, 0.5
    %v2227 = vmul.f32 %v2099, 0.5
    %v2228 = vmul.f32 %v2100, 0.5
    %v2229 = vmul.f32 %v2101, 0.5
    %v2230 = vmul.f32 %v2102, 0.5
    %v2231 = vmul.f32 %v2103, 0.5
    %v2232 = vmul.f32 %v2104, 0.5
    %v2233 = vmul.f32 %v2105, 0.5
    %v2234 = vmul.f32 %v2106, 0.5
    %v2235 = vmul.f32 %v2107, 0.5
    %v2236 = vmul.f32 %v2108, 0.5
    %v2237 = vmul.f32 %v2109, 0.5
    %v2238 = vmul.f32 %v2110, 0.5
    %v2239 = vmul.f32 %v2111, 0.5
    %v2240 = vmul.f32 %v2112, 0.5
    %v2241 = vmul.f32 %v2113, 0.5
    %v2242 = vmul.f32 %v2114, 0.5
    %v2243 = vmul.f32 %v2115, 0.5
    %v2244 = vmul.f32 %v2116, 0.5
    %v2245 = vmul.f32 %v2117, 0.5
    %v2246 = vmul.f32 %v2118, 0.5
    %v2247 = vmul.f32 %v2119, 0.5
    %v2248 = vadd.f32 %v2120, 0.5
    %v2249 = vadd.f32 %v2121, 0.5
    %v2250 = vadd.f32 %v2122, 0.5
    %v2251 = vadd.f32 %v2123, 0.5
    %v2252 = vadd.f32 %v2124, 0.5
    %v2253 = vadd.f32 %v2125, 0.5
    %v2254 = vadd.f32 %v2126, 0.5
    %v2255 = vadd.f32 %v2127, 0.5
    %v2256 = vadd.f32 %v2128, 0.5
    %v2257 = vadd.f32 %v2129, 0.5
    %v2258 = vadd.f32 %v2130, 0.5
    %v2259 = vadd.f32 %v2131, 0.5
    %v2260 = vadd.f32 %v2132, 0.5
    %v2261 = vadd.f32 %v2133, 0.5
    %v2262 = vadd.f32 %v2134, 0.5
    %v2263 = vadd.f32 %v2135, 0.5
    %v2264 = vadd.f32 %v2136, 0.5
    %v2265 = vadd.f32 %v2137, 0.5
    %v2266 = vadd.f32 %v2138, 0.5
    %v2267 = vadd.f32 %v2139, 0.5
    %v2268 = vadd.f32 %v2140, 0.5
    %v2269 = vadd.f32 %v2141, 0.5
    %v2270 = vadd.f32 %v2142, 0.5
    %v2271 = vadd.f32 %v2143, 0.5
    %v2272 = vadd.f32 %v2144, 0.5
    %v2273 = vadd.f32 %v2145, 0.5
    %v2274 = vadd.f32 %v2146, 0.5
    %v2275 = vadd.f32 %v2147, 0.5
    %v2276 = vadd.f32 %v2148, 0.5
    %v2277 = vadd.f32 %v2149, 0.5
    %v2278 = vadd.f32 %v2150, 0.5
    %v2279 = vadd.f32 %v2151, 0.5
    %v2280 = vadd.f32 %v2152, 0.5
    %v2281 = vadd.f32 %v2153, 0.5
    %v2282 = vadd.f32 %v2154, 0.5
    %v2283 = vadd.f32 %v2155, 0.5
    %v2284 = vadd.f32 %v2156, 0.5
    %v2285 = vadd.f32 %v2157, 0.5
    %v2286 = vadd.f32 %v2158, 0.5
    %v2287 = vadd.f32 %v2159, 0.5
    %v2288 = vadd.f32 %v2160, 0.5
    %v2289 = vadd.f32 %v2161, 0.5
    %v2290 = vadd.f32 %v2162, 0.5
    %v2291 = vadd.f32 %v2163, 0.5
    %v2292 = vadd.f32 %v2164, 0.5
    %v2293 = vadd.f32 %v2165, 0.5
    %v2294 = vadd.f32 %v2166, 0.5
    %v2295 = vadd.f32 %v2167, 0.5
    %v2296 = vadd.f32 %v2168, 0.5
    %v2297 = vadd.f32 %v2169, 0.5
    %v2298 = vadd.f32 %v2170, 0.5
    %v2299 = vadd.f32 %v2171, 0.5
    %v2300 = vadd.f32 %v2172, 0.5
    %v2301 = vadd.f32 %v2173, 0.5
    %v2302 = vadd.f32 %v2174, 0.5
    %v2303 = vadd.f32 %v2175, 0.5
    %v2304 = vadd.f32 %v2176, 0.5
    %v2305 = vadd.f32 %v2177, 0.5
    %v2306 = vadd.f32 %v2178, 0.5
    %v2307 = vadd.f32 %v2179, 0.5
    %v2308 = vadd.f32 %v2180, 0.5
    %v2309 = vadd.f32 %v2181, 0.5
    %v2310 = vadd.f32 %v2182, 0.5
    %v2311 = vadd.f32 %v2183, 0.5
    %v2312 = vadd.f32 %v2184, 0.5
    %v2313 = vadd.f32 %v2185, 0.5
    %v2314 = vadd.f32 %v2186, 0.5
    %v2315 = vadd.f32 %v2187, 0.5
    %v2316 = vadd.f32 %v2188, 0.5
    %v2317 = vadd.f32 %v2189, 0.5
    %v2318 = vadd.f32 %v2190, 0.5
    %v2319 = vadd.f32 %v2191, 0.5
    %v2320 = vadd.f32 %v2192, 0.5
    %v2321 = vadd.f32 %v2193, 0.5
    %v2322 = vadd.f32 %v2194, 0.5
    %v2323 = vadd.f32 %v2195, 0.5
    %v2324 = vadd.f32 %v2196, 0.5
    %v2325 = vadd.f32 %v2197, 0.5
    %v2326 = vadd.f32 %v2198, 0.5
    %v2327 = vadd.f32 %v2199, 0.5
    %v2328 = vadd.f32 %v2200, 0.5
    %v2329 = vadd.f32 %v2201, 0.5
    %v2330 = vadd.f32 %v2202, 0.5
    %v2331 = vadd.f32 %v2203, 0.5
    %v2332 = vadd.f32 %v2204, 0.5
    %v2333 = vadd.f32 %v2205, 0.5
    %v2334 = vadd.f32 %v2206, 0.5
    %v2335 = vadd.f32 %v2207, 0.5
    %v2336 = vadd.f32 %v2208, 0.5
    %v2337 = vadd.f32 %v2209, 0.5
    %v2338 = vadd.f32 %v2210, 0.5
    %v2339 = vadd.f32 %v2211, 0.5
    %v2340 = vadd.f32 %v2212, 0.5
    %v2341 = vadd.f32 %v2213, 0.5
    %v2342 = vadd.f32 %v2214, 0.5
    %v2343 = vadd.f32 %v2215, 0.5
    %v2344 = vadd.f32 %v2216, 0.5
    %v2345 = vadd.f32 %v2217, 0.5
    %v2346 = vadd.f32 %v2218, 0.5
    %v2347 = vadd.f32 %v2219, 0.5
    %v2348 = vadd.f32 %v2220, 0.5
    %v2349 = vadd.f32 %v2221, 0.5
    %v2350 = vadd.f32 %v2222, 0.5
    %v2351 = vadd.f32 %v2223, 0.5
    %v2352 = vadd.f32 %v2224, 0.5
    %v2353 = vadd.f32 %v2225, 0.5
    %v2354 = vadd.f32 %v2226, 0.5
    %v2355 = vadd.f32 %v2227, 0.5
    %v2356 = vadd.f32 %v2228, 0.5
    %v2357 = vadd.f32 %v2229, 0.5
    %v2358 = vadd.f32 %v2230, 0.5
    %v2359 = vadd.f32 %v2231, 0.5
    %v2360 = vadd.f32 %v2232, 0.5
    %v2361 = vadd.f32 %v2233, 0.5
    %v2362 = vadd.f32 %v2234, 0.5
    %v2363 = vadd.f32 %v2235, 0.5
    %v2364 = vadd.f32 %v2236, 0.5
    %v2365 = vadd.f32 %v2237, 0.5
    %v2366 = vadd.f32 %v2238, 0.5
    %v2367 = vadd.f32 %v2239, 0.5
    %v2368 = vadd.f32 %v2240, 0.5
    %v2369 = vadd.f32 %v2241, 0.5
    %v2370 = vadd.f32 %v2242, 0.5
    %v2371 = vadd.f32 %v2243, 0.5
    %v2372 = vadd.f32 %v2244, 0.5
    %v2373 = vadd.f32 %v2245, 0.5
    %v2374 = vadd.f32 %v2246, 0.5
    %v2375 = vadd.f32 %v2247, 0.5
    %v2376 = vmax.f32 %v2248, 1e-07
    %v2377 = vmax.f32 %v2249, 1e-07
    %v2378 = vmax.f32 %v2250, 1e-07
    %v2379 = vmax.f32 %v2251, 1e-07
    %v2380 = vmax.f32 %v2252, 1e-07
    %v2381 = vmax.f32 %v2253, 1e-07
    %v2382 = vmax.f32 %v2254, 1e-07
    %v2383 = vmax.f32 %v2255, 1e-07
    %v2384 = vmax.f32 %v2264, 1e-07
    %v2385 = vmax.f32 %v2265, 1e-07
    %v2386 = vmax.f32 %v2266, 1e-07
    %v2387 = vmax.f32 %v2267, 1e-07
    %v2388 = vmax.f32 %v2268, 1e-07
    %v2389 = vmax.f32 %v2269, 1e-07
    %v2390 = vmax.f32 %v2270, 1e-07
    %v2391 = vmax.f32 %v2271, 1e-07
    %v2392 = vmax.f32 %v2280, 1e-07
    %v2393 = vmax.f32 %v2281, 1e-07
    %v2394 = vmax.f32 %v2282, 1e-07
    %v2395 = vmax.f32 %v2283, 1e-07
    %v2396 = vmax.f32 %v2284, 1e-07
    %v2397 = vmax.f32 %v2285, 1e-07
    %v2398 = vmax.f32 %v2286, 1e-07
    %v2399 = vmax.f32 %v2287, 1e-07
    %v2400 = vmax.f32 %v2296, 1e-07
    %v2401 = vmax.f32 %v2297, 1e-07
    %v2402 = vmax.f32 %v2298, 1e-07
    %v2403 = vmax.f32 %v2299, 1e-07
    %v2404 = vmax.f32 %v2300, 1e-07
    %v2405 = vmax.f32 %v2301, 1e-07
    %v2406 = vmax.f32 %v2302, 1e-07
    %v2407 = vmax.f32 %v2303, 1e-07
    %v2408 = vmax.f32 %v2312, 1e-07
    %v2409 = vmax.f32 %v2313, 1e-07
    %v2410 = vmax.f32 %v2314, 1e-07
    %v2411 = vmax.f32 %v2315, 1e-07
    %v2412 = vmax.f32 %v2316, 1e-07
    %v2413 = vmax.f32 %v2317, 1e-07
    %v2414 = vmax.f32 %v2318, 1e-07
    %v2415 = vmax.f32 %v2319, 1e-07
    %v2416 = vmax.f32 %v2328, 1e-07
    %v2417 = vmax.f32 %v2329, 1e-07
    %v2418 = vmax.f32 %v2330, 1e-07
    %v2419 = vmax.f32 %v2331, 1e-07
    %v2420 = vmax.f32 %v2332, 1e-07
    %v2421 = vmax.f32 %v2333, 1e-07
    %v2422 = vmax.f32 %v2334, 1e-07
    %v2423 = vmax.f32 %v2335, 1e-07
    %v2424 = vmax.f32 %v2344, 1e-07
    %v2425 = vmax.f32 %v2345, 1e-07
    %v2426 = vmax.f32 %v2346, 1e-07
    %v2427 = vmax.f32 %v2347, 1e-07
    %v2428 = vmax.f32 %v2348, 1e-07
    %v2429 = vmax.f32 %v2349, 1e-07
    %v2430 = vmax.f32 %v2350, 1e-07
    %v2431 = vmax.f32 %v2351, 1e-07
    %v2432 = vmax.f32 %v2360, 1e-07
    %v2433 = vmax.f32 %v2361, 1e-07
    %v2434 = vmax.f32 %v2362, 1e-07
    %v2435 = vmax.f32 %v2363, 1e-07
    %v2436 = vmax.f32 %v2364, 1e-07
    %v2437 = vmax.f32 %v2365, 1e-07
    %v2438 = vmax.f32 %v2366, 1e-07
    %v2439 = vmax.f32 %v2367, 1e-07
    %v2440 = vmin.f32 %v2376, 0.9999999
    %v2441 = vmin.f32 %v2377, 0.9999999
    %v2442 = vmin.f32 %v2378, 0.9999999
    %v2443 = vmin.f32 %v2379, 0.9999999
    %v2444 = vmin.f32 %v2380, 0.9999999
    %v2445 = vmin.f32 %v2381, 0.9999999
    %v2446 = vmin.f32 %v2382, 0.9999999
    %v2447 = vmin.f32 %v2383, 0.9999999
    %v2448 = vmin.f32 %v2384, 0.9999999
    %v2449 = vmin.f32 %v2385, 0.9999999
    %v2450 = vmin.f32 %v2386, 0.9999999
    %v2451 = vmin.f32 %v2387, 0.9999999
    %v2452 = vmin.f32 %v2388, 0.9999999
    %v2453 = vmin.f32 %v2389, 0.9999999
    %v2454 = vmin.f32 %v2390, 0.9999999
    %v2455 = vmin.f32 %v2391, 0.9999999
    %v2456 = vmin.f32 %v2392, 0.9999999
    %v2457 = vmin.f32 %v2393, 0.9999999
    %v2458 = vmin.f32 %v2394, 0.9999999
    %v2459 = vmin.f32 %v2395, 0.9999999
    %v2460 = vmin.f32 %v2396, 0.9999999
    %v2461 = vmin.f32 %v2397, 0.9999999
    %v2462 = vmin.f32 %v2398, 0.9999999
    %v2463 = vmin.f32 %v2399, 0.9999999
    %v2464 = vmin.f32 %v2400, 0.9999999
    %v2465 = vmin.f32 %v2401, 0.9999999
    %v2466 = vmin.f32 %v2402, 0.9999999
    %v2467 = vmin.f32 %v2403, 0.9999999
    %v2468 = vmin.f32 %v2404, 0.9999999
    %v2469 = vmin.f32 %v2405, 0.9999999
    %v2470 = vmin.f32 %v2406, 0.9999999
    %v2471 = vmin.f32 %v2407, 0.9999999
    %v2472 = vmin.f32 %v2408, 0.9999999
    %v2473 = vmin.f32 %v2409, 0.9999999
    %v2474 = vmin.f32 %v2410, 0.9999999
    %v2475 = vmin.f32 %v2411, 0.9999999
    %v2476 = vmin.f32 %v2412, 0.9999999
    %v2477 = vmin.f32 %v2413, 0.9999999
    %v2478 = vmin.f32 %v2414, 0.9999999
    %v2479 = vmin.f32 %v2415, 0.9999999
    %v2480 = vmin.f32 %v2416, 0.9999999
    %v2481 = vmin.f32 %v2417, 0.9999999
    %v2482 = vmin.f32 %v2418, 0.9999999
    %v2483 = vmin.f32 %v2419, 0.9999999
    %v2484 = vmin.f32 %v2420, 0.9999999
    %v2485 = vmin.f32 %v2421, 0.9999999
    %v2486 = vmin.f32 %v2422, 0.9999999
    %v2487 = vmin.f32 %v2423, 0.9999999
    %v2488 = vmin.f32 %v2424, 0.9999999
    %v2489 = vmin.f32 %v2425, 0.9999999
    %v2490 = vmin.f32 %v2426, 0.9999999
    %v2491 = vmin.f32 %v2427, 0.9999999
    %v2492 = vmin.f32 %v2428, 0.9999999
    %v2493 = vmin.f32 %v2429, 0.9999999
    %v2494 = vmin.f32 %v2430, 0.9999999
    %v2495 = vmin.f32 %v2431, 0.9999999
    %v2496 = vmin.f32 %v2432, 0.9999999
    %v2497 = vmin.f32 %v2433, 0.9999999
    %v2498 = vmin.f32 %v2434, 0.9999999
    %v2499 = vmin.f32 %v2435, 0.9999999
    %v2500 = vmin.f32 %v2436, 0.9999999
    %v2501 = vmin.f32 %v2437, 0.9999999
    %v2502 = vmin.f32 %v2438, 0.9999999
    %v2503 = vmin.f32 %v2439, 0.9999999
    %v2504 = vld [vmem:[#allocation3] sm:$0xff]
    %vm2505 = vcmask 97280
    %v2506 = vsel %vm2505, %v2440, 0.0
    %2507 = vadd.xlane.f32.xlu0 %v2506
    %v2508 = vpop.xlane.xlu0 %2507
    %v2509 = vsel %vm2505, %v2441, 0.0
    %2510 = vadd.xlane.f32.xlu0 %v2509
    %v2511 = vpop.xlane.xlu0 %2510
    %v2512 = vsel %vm2505, %v2442, 0.0
    %2513 = vadd.xlane.f32.xlu0 %v2512
    %v2514 = vpop.xlane.xlu0 %2513
    %v2515 = vsel %vm2505, %v2443, 0.0
    %2516 = vadd.xlane.f32.xlu0 %v2515
    %v2517 = vpop.xlane.xlu0 %2516
    %v2518 = vsel %vm2505, %v2444, 0.0
    %2519 = vadd.xlane.f32.xlu0 %v2518
    %v2520 = vpop.xlane.xlu0 %2519
    %v2521 = vsel %vm2505, %v2445, 0.0
    %2522 = vadd.xlane.f32.xlu0 %v2521
    %v2523 = vpop.xlane.xlu0 %2522
    %v2524 = vsel %vm2505, %v2446, 0.0
    %2525 = vadd.xlane.f32.xlu0 %v2524
    %v2526 = vpop.xlane.xlu0 %2525
    %v2527 = vsel %vm2505, %v2447, 0.0
    %2528 = vadd.xlane.f32.xlu0 %v2527
    %v2529 = vpop.xlane.xlu0 %2528
    %v2530 = vsel %vm2505, %v2448, 0.0
    %2531 = vadd.xlane.f32.xlu0 %v2530
    %v2532 = vpop.xlane.xlu0 %2531
    %v2533 = vsel %vm2505, %v2449, 0.0
    %2534 = vadd.xlane.f32.xlu0 %v2533
    %v2535 = vpop.xlane.xlu0 %2534
    %v2536 = vsel %vm2505, %v2450, 0.0
    %2537 = vadd.xlane.f32.xlu0 %v2536
    %v2538 = vpop.xlane.xlu0 %2537
    %v2539 = vsel %vm2505, %v2451, 0.0
    %2540 = vadd.xlane.f32.xlu0 %v2539
    %v2541 = vpop.xlane.xlu0 %2540
    %v2542 = vsel %vm2505, %v2452, 0.0
    %2543 = vadd.xlane.f32.xlu0 %v2542
    %v2544 = vpop.xlane.xlu0 %2543
    %v2545 = vsel %vm2505, %v2453, 0.0
    %2546 = vadd.xlane.f32.xlu0 %v2545
    %v2547 = vpop.xlane.xlu0 %2546
    %v2548 = vsel %vm2505, %v2454, 0.0
    %2549 = vadd.xlane.f32.xlu0 %v2548
    %v2550 = vpop.xlane.xlu0 %2549
    %v2551 = vsel %vm2505, %v2455, 0.0
    %2552 = vadd.xlane.f32.xlu0 %v2551
    %v2553 = vpop.xlane.xlu0 %2552
    %v2554 = vsel %vm2505, %v2456, 0.0
    %2555 = vadd.xlane.f32.xlu0 %v2554
    %v2556 = vpop.xlane.xlu0 %2555
    %v2557 = vsel %vm2505, %v2457, 0.0
    %2558 = vadd.xlane.f32.xlu0 %v2557
    %v2559 = vpop.xlane.xlu0 %2558
    %v2560 = vsel %vm2505, %v2458, 0.0
    %2561 = vadd.xlane.f32.xlu0 %v2560
    %v2562 = vpop.xlane.xlu0 %2561
    %v2563 = vsel %vm2505, %v2459, 0.0
    %2564 = vadd.xlane.f32.xlu0 %v2563
    %v2565 = vpop.xlane.xlu0 %2564
    %v2566 = vsel %vm2505, %v2460, 0.0
    %2567 = vadd.xlane.f32.xlu0 %v2566
    %v2568 = vpop.xlane.xlu0 %2567
    %v2569 = vsel %vm2505, %v2461, 0.0
    %2570 = vadd.xlane.f32.xlu0 %v2569
    %v2571 = vpop.xlane.xlu0 %2570
    %v2572 = vsel %vm2505, %v2462, 0.0
    %2573 = vadd.xlane.f32.xlu0 %v2572
    %v2574 = vpop.xlane.xlu0 %2573
    %v2575 = vsel %vm2505, %v2463, 0.0
    %2576 = vadd.xlane.f32.xlu0 %v2575
    %v2577 = vpop.xlane.xlu0 %2576
    %v2578 = vsel %vm2505, %v2464, 0.0
    %2579 = vadd.xlane.f32.xlu0 %v2578
    %v2580 = vpop.xlane.xlu0 %2579
    %v2581 = vsel %vm2505, %v2465, 0.0
    %2582 = vadd.xlane.f32.xlu0 %v2581
    %v2583 = vpop.xlane.xlu0 %2582
    %v2584 = vsel %vm2505, %v2466, 0.0
    %2585 = vadd.xlane.f32.xlu0 %v2584
    %v2586 = vpop.xlane.xlu0 %2585
    %v2587 = vsel %vm2505, %v2467, 0.0
    %2588 = vadd.xlane.f32.xlu0 %v2587
    %v2589 = vpop.xlane.xlu0 %2588
    %v2590 = vsel %vm2505, %v2468, 0.0
    %2591 = vadd.xlane.f32.xlu0 %v2590
    %v2592 = vpop.xlane.xlu0 %2591
    %v2593 = vsel %vm2505, %v2469, 0.0
    %2594 = vadd.xlane.f32.xlu0 %v2593
    %v2595 = vpop.xlane.xlu0 %2594
    %v2596 = vsel %vm2505, %v2470, 0.0
    %2597 = vadd.xlane.f32.xlu0 %v2596
    %v2598 = vpop.xlane.xlu0 %2597
    %v2599 = vsel %vm2505, %v2471, 0.0
    %2600 = vadd.xlane.f32.xlu0 %v2599
    %v2601 = vpop.xlane.xlu0 %2600
    %v2602 = vsel %vm2505, %v2472, 0.0
    %2603 = vadd.xlane.f32.xlu0 %v2602
    %v2604 = vpop.xlane.xlu0 %2603
    %v2605 = vsel %vm2505, %v2473, 0.0
    %2606 = vadd.xlane.f32.xlu0 %v2605
    %v2607 = vpop.xlane.xlu0 %2606
    %v2608 = vsel %vm2505, %v2474, 0.0
    %2609 = vadd.xlane.f32.xlu0 %v2608
    %v2610 = vpop.xlane.xlu0 %2609
    %v2611 = vsel %vm2505, %v2475, 0.0
    %2612 = vadd.xlane.f32.xlu0 %v2611
    %v2613 = vpop.xlane.xlu0 %2612
    %v2614 = vsel %vm2505, %v2476, 0.0
    %2615 = vadd.xlane.f32.xlu0 %v2614
    %v2616 = vpop.xlane.xlu0 %2615
    %v2617 = vsel %vm2505, %v2477, 0.0
    %2618 = vadd.xlane.f32.xlu0 %v2617
    %v2619 = vpop.xlane.xlu0 %2618
    %v2620 = vsel %vm2505, %v2478, 0.0
    %2621 = vadd.xlane.f32.xlu0 %v2620
    %v2622 = vpop.xlane.xlu0 %2621
    %v2623 = vsel %vm2505, %v2479, 0.0
    %2624 = vadd.xlane.f32.xlu0 %v2623
    %v2625 = vpop.xlane.xlu0 %2624
    %v2626 = vsel %vm2505, %v2480, 0.0
    %2627 = vadd.xlane.f32.xlu0 %v2626
    %v2628 = vpop.xlane.xlu0 %2627
    %v2629 = vsel %vm2505, %v2481, 0.0
    %2630 = vadd.xlane.f32.xlu0 %v2629
    %v2631 = vpop.xlane.xlu0 %2630
    %v2632 = vsel %vm2505, %v2482, 0.0
    %2633 = vadd.xlane.f32.xlu0 %v2632
    %v2634 = vpop.xlane.xlu0 %2633
    %v2635 = vsel %vm2505, %v2483, 0.0
    %2636 = vadd.xlane.f32.xlu0 %v2635
    %v2637 = vpop.xlane.xlu0 %2636
    %v2638 = vsel %vm2505, %v2484, 0.0
    %2639 = vadd.xlane.f32.xlu0 %v2638
    %v2640 = vpop.xlane.xlu0 %2639
    %v2641 = vsel %vm2505, %v2485, 0.0
    %2642 = vadd.xlane.f32.xlu0 %v2641
    %v2643 = vpop.xlane.xlu0 %2642
    %v2644 = vsel %vm2505, %v2486, 0.0
    %2645 = vadd.xlane.f32.xlu0 %v2644
    %v2646 = vpop.xlane.xlu0 %2645
    %v2647 = vsel %vm2505, %v2487, 0.0
    %2648 = vadd.xlane.f32.xlu0 %v2647
    %v2649 = vpop.xlane.xlu0 %2648
    %v2650 = vsel %vm2505, %v2488, 0.0
    %2651 = vadd.xlane.f32.xlu0 %v2650
    %v2652 = vpop.xlane.xlu0 %2651
    %v2653 = vsel %vm2505, %v2489, 0.0
    %2654 = vadd.xlane.f32.xlu0 %v2653
    %v2655 = vpop.xlane.xlu0 %2654
    %v2656 = vsel %vm2505, %v2490, 0.0
    %2657 = vadd.xlane.f32.xlu0 %v2656
    %v2658 = vpop.xlane.xlu0 %2657
    %v2659 = vsel %vm2505, %v2491, 0.0
    %2660 = vadd.xlane.f32.xlu0 %v2659
    %v2661 = vpop.xlane.xlu0 %2660
    %v2662 = vsel %vm2505, %v2492, 0.0
    %2663 = vadd.xlane.f32.xlu0 %v2662
    %v2664 = vpop.xlane.xlu0 %2663
    %v2665 = vsel %vm2505, %v2493, 0.0
    %2666 = vadd.xlane.f32.xlu0 %v2665
    %v2667 = vpop.xlane.xlu0 %2666
    %v2668 = vsel %vm2505, %v2494, 0.0
    %2669 = vadd.xlane.f32.xlu0 %v2668
    %v2670 = vpop.xlane.xlu0 %2669
    %v2671 = vsel %vm2505, %v2495, 0.0
    %2672 = vadd.xlane.f32.xlu0 %v2671
    %v2673 = vpop.xlane.xlu0 %2672
    %v2674 = vsel %vm2505, %v2496, 0.0
    %2675 = vadd.xlane.f32.xlu0 %v2674
    %v2676 = vpop.xlane.xlu0 %2675
    %v2677 = vsel %vm2505, %v2497, 0.0
    %2678 = vadd.xlane.f32.xlu0 %v2677
    %v2679 = vpop.xlane.xlu0 %2678
    %v2680 = vsel %vm2505, %v2498, 0.0
    %2681 = vadd.xlane.f32.xlu0 %v2680
    %v2682 = vpop.xlane.xlu0 %2681
    %v2683 = vsel %vm2505, %v2499, 0.0
    %2684 = vadd.xlane.f32.xlu0 %v2683
    %v2685 = vpop.xlane.xlu0 %2684
    %v2686 = vsel %vm2505, %v2500, 0.0
    %2687 = vadd.xlane.f32.xlu0 %v2686
    %v2688 = vpop.xlane.xlu0 %2687
    %v2689 = vsel %vm2505, %v2501, 0.0
    %2690 = vadd.xlane.f32.xlu0 %v2689
    %v2691 = vpop.xlane.xlu0 %2690
    %v2692 = vsel %vm2505, %v2502, 0.0
    %2693 = vadd.xlane.f32.xlu0 %v2692
    %v2694 = vpop.xlane.xlu0 %2693
    %v2695 = vsel %vm2505, %v2503, 0.0
    %2696 = vadd.xlane.f32.xlu0 %v2695
    %v2697 = vpop.xlane.xlu0 %2696
    %v2762 = vlaneseq
    %v2763 = vand.u32 %v2762, 127
    %v2764 = vlaneseq
    %v2765 = vshrl.u32 %v2764, 7
    %v2766 = vsub.s32 %v2763, %v2765
    %v2767 = vrot.slane %v2508, %v2766
    %v2768 = vadd.s32 %v2763, 4294967288
    %v2769 = vlaneseq
    %v2770 = vshrl.u32 %v2769, 7
    %v2771 = vsub.s32 %v2768, %v2770
    %v2772 = vrot.slane %v2511, %v2771
    %vm2773 = vcmask 130112
    %v2774 = vsel %vm2773, %v2772, %v2767
    %v2775 = vadd.s32 %v2763, 4294967280
    %v2776 = vlaneseq
    %v2777 = vshrl.u32 %v2776, 7
    %v2778 = vsub.s32 %v2775, %v2777
    %v2779 = vrot.slane %v2514, %v2778
    %vm2780 = vcmask 195712
    %v2781 = vsel %vm2780, %v2779, %v2774
    %v2782 = vadd.s32 %v2763, 4294967272
    %v2783 = vlaneseq
    %v2784 = vshrl.u32 %v2783, 7
    %v2785 = vsub.s32 %v2782, %v2784
    %v2786 = vrot.slane %v2517, %v2785
    %vm2787 = vcmask 261312
    %v2788 = vsel %vm2787, %v2786, %v2781
    %v2789 = vadd.s32 %v2763, 4294967264
    %v2790 = vlaneseq
    %v2791 = vshrl.u32 %v2790, 7
    %v2792 = vsub.s32 %v2789, %v2791
    %v2793 = vrot.slane %v2520, %v2792
    %vm2794 = vcmask 326912
    %v2795 = vsel %vm2794, %v2793, %v2788
    %v2796 = vadd.s32 %v2763, 4294967256
    %v2797 = vlaneseq
    %v2798 = vshrl.u32 %v2797, 7
    %v2799 = vsub.s32 %v2796, %v2798
    %v2800 = vrot.slane %v2523, %v2799
    %vm2801 = vcmask 392512
    %v2802 = vsel %vm2801, %v2800, %v2795
    %v2803 = vadd.s32 %v2763, 4294967248
    %v2804 = vlaneseq
    %v2805 = vshrl.u32 %v2804, 7
    %v2806 = vsub.s32 %v2803, %v2805
    %v2807 = vrot.slane %v2526, %v2806
    %vm2808 = vcmask 458112
    %v2809 = vsel %vm2808, %v2807, %v2802
    %v2810 = vadd.s32 %v2763, 4294967240
    %v2811 = vlaneseq
    %v2812 = vshrl.u32 %v2811, 7
    %v2813 = vsub.s32 %v2810, %v2812
    %v2814 = vrot.slane %v2529, %v2813
    %vm2815 = vcmask 523712
    %v2816 = vsel %vm2815, %v2814, %v2809
    %v2817 = vlaneseq
    %v2818 = vshrl.u32 %v2817, 7
    %v2819 = vsub.s32 %v2763, %v2818
    %v2820 = vrot.slane %v2532, %v2819
    %v2821 = vlaneseq
    %v2822 = vshrl.u32 %v2821, 7
    %v2823 = vsub.s32 %v2768, %v2822
    %v2824 = vrot.slane %v2535, %v2823
    %v2825 = vsel %vm2773, %v2824, %v2820
    %v2826 = vlaneseq
    %v2827 = vshrl.u32 %v2826, 7
    %v2828 = vsub.s32 %v2775, %v2827
    %v2829 = vrot.slane %v2538, %v2828
    %v2830 = vsel %vm2780, %v2829, %v2825
    %v2831 = vlaneseq
    %v2832 = vshrl.u32 %v2831, 7
    %v2833 = vsub.s32 %v2782, %v2832
    %v2834 = vrot.slane %v2541, %v2833
    %v2835 = vsel %vm2787, %v2834, %v2830
    %v2836 = vlaneseq
    %v2837 = vshrl.u32 %v2836, 7
    %v2838 = vsub.s32 %v2789, %v2837
    %v2839 = vrot.slane %v2544, %v2838
    %v2840 = vsel %vm2794, %v2839, %v2835
    %v2841 = vlaneseq
    %v2842 = vshrl.u32 %v2841, 7
    %v2843 = vsub.s32 %v2796, %v2842
    %v2844 = vrot.slane %v2547, %v2843
    %v2845 = vsel %vm2801, %v2844, %v2840
    %v2846 = vlaneseq
    %v2847 = vshrl.u32 %v2846, 7
    %v2848 = vsub.s32 %v2803, %v2847
    %v2849 = vrot.slane %v2550, %v2848
    %v2850 = vsel %vm2808, %v2849, %v2845
    %v2851 = vlaneseq
    %v2852 = vshrl.u32 %v2851, 7
    %v2853 = vsub.s32 %v2810, %v2852
    %v2854 = vrot.slane %v2553, %v2853
    %v2855 = vsel %vm2815, %v2854, %v2850
    %v2856 = vlaneseq
    %v2857 = vshrl.u32 %v2856, 7
    %v2858 = vsub.s32 %v2763, %v2857
    %v2859 = vrot.slane %v2556, %v2858
    %v2860 = vlaneseq
    %v2861 = vshrl.u32 %v2860, 7
    %v2862 = vsub.s32 %v2768, %v2861
    %v2863 = vrot.slane %v2559, %v2862
    %v2864 = vsel %vm2773, %v2863, %v2859
    %v2865 = vlaneseq
    %v2866 = vshrl.u32 %v2865, 7
    %v2867 = vsub.s32 %v2775, %v2866
    %v2868 = vrot.slane %v2562, %v2867
    %v2869 = vsel %vm2780, %v2868, %v2864
    %v2870 = vlaneseq
    %v2871 = vshrl.u32 %v2870, 7
    %v2872 = vsub.s32 %v2782, %v2871
    %v2873 = vrot.slane %v2565, %v2872
    %v2874 = vsel %vm2787, %v2873, %v2869
    %v2875 = vlaneseq
    %v2876 = vshrl.u32 %v2875, 7
    %v2877 = vsub.s32 %v2789, %v2876
    %v2878 = vrot.slane %v2568, %v2877
    %v2879 = vsel %vm2794, %v2878, %v2874
    %v2880 = vlaneseq
    %v2881 = vshrl.u32 %v2880, 7
    %v2882 = vsub.s32 %v2796, %v2881
    %v2883 = vrot.slane %v2571, %v2882
    %v2884 = vsel %vm2801, %v2883, %v2879
    %v2885 = vlaneseq
    %v2886 = vshrl.u32 %v2885, 7
    %v2887 = vsub.s32 %v2803, %v2886
    %v2888 = vrot.slane %v2574, %v2887
    %v2889 = vsel %vm2808, %v2888, %v2884
    %v2890 = vlaneseq
    %v2891 = vshrl.u32 %v2890, 7
    %v2892 = vsub.s32 %v2810, %v2891
    %v2893 = vrot.slane %v2577, %v2892
    %v2894 = vsel %vm2815, %v2893, %v2889
    %v2895 = vlaneseq
    %v2896 = vshrl.u32 %v2895, 7
    %v2897 = vsub.s32 %v2763, %v2896
    %v2898 = vrot.slane %v2580, %v2897
    %v2899 = vlaneseq
    %v2900 = vshrl.u32 %v2899, 7
    %v2901 = vsub.s32 %v2768, %v2900
    %v2902 = vrot.slane %v2583, %v2901
    %v2903 = vsel %vm2773, %v2902, %v2898
    %v2904 = vlaneseq
    %v2905 = vshrl.u32 %v2904, 7
    %v2906 = vsub.s32 %v2775, %v2905
    %v2907 = vrot.slane %v2586, %v2906
    %v2908 = vsel %vm2780, %v2907, %v2903
    %v2909 = vlaneseq
    %v2910 = vshrl.u32 %v2909, 7
    %v2911 = vsub.s32 %v2782, %v2910
    %v2912 = vrot.slane %v2589, %v2911
    %v2913 = vsel %vm2787, %v2912, %v2908
    %v2914 = vlaneseq
    %v2915 = vshrl.u32 %v2914, 7
    %v2916 = vsub.s32 %v2789, %v2915
    %v2917 = vrot.slane %v2592, %v2916
    %v2918 = vsel %vm2794, %v2917, %v2913
    %v2919 = vlaneseq
    %v2920 = vshrl.u32 %v2919, 7
    %v2921 = vsub.s32 %v2796, %v2920
    %v2922 = vrot.slane %v2595, %v2921
    %v2923 = vsel %vm2801, %v2922, %v2918
    %v2924 = vlaneseq
    %v2925 = vshrl.u32 %v2924, 7
    %v2926 = vsub.s32 %v2803, %v2925
    %v2927 = vrot.slane %v2598, %v2926
    %v2928 = vsel %vm2808, %v2927, %v2923
    %v2929 = vlaneseq
    %v2930 = vshrl.u32 %v2929, 7
    %v2931 = vsub.s32 %v2810, %v2930
    %v2932 = vrot.slane %v2601, %v2931
    %v2933 = vsel %vm2815, %v2932, %v2928
    %v2934 = vlaneseq
    %v2935 = vshrl.u32 %v2934, 7
    %v2936 = vsub.s32 %v2763, %v2935
    %v2937 = vrot.slane %v2604, %v2936
    %v2938 = vlaneseq
    %v2939 = vshrl.u32 %v2938, 7
    %v2940 = vsub.s32 %v2768, %v2939
    %v2941 = vrot.slane %v2607, %v2940
    %v2942 = vsel %vm2773, %v2941, %v2937
    %v2943 = vlaneseq
    %v2944 = vshrl.u32 %v2943, 7
    %v2945 = vsub.s32 %v2775, %v2944
    %v2946 = vrot.slane %v2610, %v2945
    %v2947 = vsel %vm2780, %v2946, %v2942
    %v2948 = vlaneseq
    %v2949 = vshrl.u32 %v2948, 7
    %v2950 = vsub.s32 %v2782, %v2949
    %v2951 = vrot.slane %v2613, %v2950
    %v2952 = vsel %vm2787, %v2951, %v2947
    %v2953 = vlaneseq
    %v2954 = vshrl.u32 %v2953, 7
    %v2955 = vsub.s32 %v2789, %v2954
    %v2956 = vrot.slane %v2616, %v2955
    %v2957 = vsel %vm2794, %v2956, %v2952
    %v2958 = vlaneseq
    %v2959 = vshrl.u32 %v2958, 7
    %v2960 = vsub.s32 %v2796, %v2959
    %v2961 = vrot.slane %v2619, %v2960
    %v2962 = vsel %vm2801, %v2961, %v2957
    %v2963 = vlaneseq
    %v2964 = vshrl.u32 %v2963, 7
    %v2965 = vsub.s32 %v2803, %v2964
    %v2966 = vrot.slane %v2622, %v2965
    %v2967 = vsel %vm2808, %v2966, %v2962
    %v2968 = vlaneseq
    %v2969 = vshrl.u32 %v2968, 7
    %v2970 = vsub.s32 %v2810, %v2969
    %v2971 = vrot.slane %v2625, %v2970
    %v2972 = vsel %vm2815, %v2971, %v2967
    %v2973 = vlaneseq
    %v2974 = vshrl.u32 %v2973, 7
    %v2975 = vsub.s32 %v2763, %v2974
    %v2976 = vrot.slane %v2628, %v2975
    %v2977 = vlaneseq
    %v2978 = vshrl.u32 %v2977, 7
    %v2979 = vsub.s32 %v2768, %v2978
    %v2980 = vrot.slane %v2631, %v2979
    %v2981 = vsel %vm2773, %v2980, %v2976
    %v2982 = vlaneseq
    %v2983 = vshrl.u32 %v2982, 7
    %v2984 = vsub.s32 %v2775, %v2983
    %v2985 = vrot.slane %v2634, %v2984
    %v2986 = vsel %vm2780, %v2985, %v2981
    %v2987 = vlaneseq
    %v2988 = vshrl.u32 %v2987, 7
    %v2989 = vsub.s32 %v2782, %v2988
    %v2990 = vrot.slane %v2637, %v2989
    %v2991 = vsel %vm2787, %v2990, %v2986
    %v2992 = vlaneseq
    %v2993 = vshrl.u32 %v2992, 7
    %v2994 = vsub.s32 %v2789, %v2993
    %v2995 = vrot.slane %v2640, %v2994
    %v2996 = vsel %vm2794, %v2995, %v2991
    %v2997 = vlaneseq
    %v2998 = vshrl.u32 %v2997, 7
    %v2999 = vsub.s32 %v2796, %v2998
    %v3000 = vrot.slane %v2643, %v2999
    %v3001 = vsel %vm2801, %v3000, %v2996
    %v3002 = vlaneseq
    %v3003 = vshrl.u32 %v3002, 7
    %v3004 = vsub.s32 %v2803, %v3003
    %v3005 = vrot.slane %v2646, %v3004
    %v3006 = vsel %vm2808, %v3005, %v3001
    %v3007 = vlaneseq
    %v3008 = vshrl.u32 %v3007, 7
    %v3009 = vsub.s32 %v2810, %v3008
    %v3010 = vrot.slane %v2649, %v3009
    %v3011 = vsel %vm2815, %v3010, %v3006
    %v3012 = vlaneseq
    %v3013 = vshrl.u32 %v3012, 7
    %v3014 = vsub.s32 %v2763, %v3013
    %v3015 = vrot.slane %v2652, %v3014
    %v3016 = vlaneseq
    %v3017 = vshrl.u32 %v3016, 7
    %v3018 = vsub.s32 %v2768, %v3017
    %v3019 = vrot.slane %v2655, %v3018
    %v3020 = vsel %vm2773, %v3019, %v3015
    %v3021 = vlaneseq
    %v3022 = vshrl.u32 %v3021, 7
    %v3023 = vsub.s32 %v2775, %v3022
    %v3024 = vrot.slane %v2658, %v3023
    %v3025 = vsel %vm2780, %v3024, %v3020
    %v3026 = vlaneseq
    %v3027 = vshrl.u32 %v3026, 7
    %v3028 = vsub.s32 %v2782, %v3027
    %v3029 = vrot.slane %v2661, %v3028
    %v3030 = vsel %vm2787, %v3029, %v3025
    %v3031 = vlaneseq
    %v3032 = vshrl.u32 %v3031, 7
    %v3033 = vsub.s32 %v2789, %v3032
    %v3034 = vrot.slane %v2664, %v3033
    %v3035 = vsel %vm2794, %v3034, %v3030
    %v3036 = vlaneseq
    %v3037 = vshrl.u32 %v3036, 7
    %v3038 = vsub.s32 %v2796, %v3037
    %v3039 = vrot.slane %v2667, %v3038
    %v3040 = vsel %vm2801, %v3039, %v3035
    %v3041 = vlaneseq
    %v3042 = vshrl.u32 %v3041, 7
    %v3043 = vsub.s32 %v2803, %v3042
    %v3044 = vrot.slane %v2670, %v3043
    %v3045 = vsel %vm2808, %v3044, %v3040
    %v3046 = vlaneseq
    %v3047 = vshrl.u32 %v3046, 7
    %v3048 = vsub.s32 %v2810, %v3047
    %v3049 = vrot.slane %v2673, %v3048
    %v3050 = vsel %vm2815, %v3049, %v3045
    %v3051 = vlaneseq
    %v3052 = vshrl.u32 %v3051, 7
    %v3053 = vsub.s32 %v2763, %v3052
    %v3054 = vrot.slane %v2676, %v3053
    %v3055 = vlaneseq
    %v3056 = vshrl.u32 %v3055, 7
    %v3057 = vsub.s32 %v2768, %v3056
    %v3058 = vrot.slane %v2679, %v3057
    %v3059 = vsel %vm2773, %v3058, %v3054
    %v3060 = vlaneseq
    %v3061 = vshrl.u32 %v3060, 7
    %v3062 = vsub.s32 %v2775, %v3061
    %v3063 = vrot.slane %v2682, %v3062
    %v3064 = vsel %vm2780, %v3063, %v3059
    %v3065 = vlaneseq
    %v3066 = vshrl.u32 %v3065, 7
    %v3067 = vsub.s32 %v2782, %v3066
    %v3068 = vrot.slane %v2685, %v3067
    %v3069 = vsel %vm2787, %v3068, %v3064
    %v3070 = vlaneseq
    %v3071 = vshrl.u32 %v3070, 7
    %v3072 = vsub.s32 %v2789, %v3071
    %v3073 = vrot.slane %v2688, %v3072
    %v3074 = vsel %vm2794, %v3073, %v3069
    %v3075 = vlaneseq
    %v3076 = vshrl.u32 %v3075, 7
    %v3077 = vsub.s32 %v2796, %v3076
    %v3078 = vrot.slane %v2691, %v3077
    %v3079 = vsel %vm2801, %v3078, %v3074
    %v3080 = vlaneseq
    %v3081 = vshrl.u32 %v3080, 7
    %v3082 = vsub.s32 %v2803, %v3081
    %v3083 = vrot.slane %v2694, %v3082
    %v3084 = vsel %vm2808, %v3083, %v3079
    %v3085 = vlaneseq
    %v3086 = vshrl.u32 %v3085, 7
    %v3087 = vsub.s32 %v2810, %v3086
    %v3088 = vrot.slane %v2697, %v3087
    %v3089 = vsel %vm2815, %v3088, %v3084
    %vm3090 = vcmask 1041409
    %v3091 = vsel %vm3090, %v2855, %v2816
    %vm3092 = vcmask 1042434
    %v3093 = vsel %vm3092, %v2894, %v3091
    %vm3094 = vcmask 1043459
    %v3095 = vsel %vm3094, %v2933, %v3093
    %vm3096 = vcmask 1044484
    %v3097 = vsel %vm3096, %v2972, %v3095
    %vm3098 = vcmask 1045509
    %v3099 = vsel %vm3098, %v3011, %v3097
    %vm3100 = vcmask 1046534
    %v3101 = vsel %vm3100, %v3050, %v3099
    %vm3102 = vcmask 1047559
    %v3103 = vsel %vm3102, %v3089, %v3101
    %v3105 = vadd.f32 %v2504, %v3103
    %3106 = vst.msk [vmem:[#allocation3] sm:$0xff] %vm1254, %v3105
    %v3107 = vld [vmem:[#allocation2] sm:$0xff]
    %v3108 = vmul.f32 %v2440, %v2256
    %v3109 = vmul.f32 %v2441, %v2257
    %v3110 = vmul.f32 %v2442, %v2258
    %v3111 = vmul.f32 %v2443, %v2259
    %v3112 = vmul.f32 %v2444, %v2260
    %v3113 = vmul.f32 %v2445, %v2261
    %v3114 = vmul.f32 %v2446, %v2262
    %v3115 = vmul.f32 %v2447, %v2263
    %v3116 = vmul.f32 %v2448, %v2272
    %v3117 = vmul.f32 %v2449, %v2273
    %v3118 = vmul.f32 %v2450, %v2274
    %v3119 = vmul.f32 %v2451, %v2275
    %v3120 = vmul.f32 %v2452, %v2276
    %v3121 = vmul.f32 %v2453, %v2277
    %v3122 = vmul.f32 %v2454, %v2278
    %v3123 = vmul.f32 %v2455, %v2279
    %v3124 = vmul.f32 %v2456, %v2288
    %v3125 = vmul.f32 %v2457, %v2289
    %v3126 = vmul.f32 %v2458, %v2290
    %v3127 = vmul.f32 %v2459, %v2291
    %v3128 = vmul.f32 %v2460, %v2292
    %v3129 = vmul.f32 %v2461, %v2293
    %v3130 = vmul.f32 %v2462, %v2294
    %v3131 = vmul.f32 %v2463, %v2295
    %v3132 = vmul.f32 %v2464, %v2304
    %v3133 = vmul.f32 %v2465, %v2305
    %v3134 = vmul.f32 %v2466, %v2306
    %v3135 = vmul.f32 %v2467, %v2307
    %v3136 = vmul.f32 %v2468, %v2308
    %v3137 = vmul.f32 %v2469, %v2309
    %v3138 = vmul.f32 %v2470, %v2310
    %v3139 = vmul.f32 %v2471, %v2311
    %v3140 = vmul.f32 %v2472, %v2320
    %v3141 = vmul.f32 %v2473, %v2321
    %v3142 = vmul.f32 %v2474, %v2322
    %v3143 = vmul.f32 %v2475, %v2323
    %v3144 = vmul.f32 %v2476, %v2324
    %v3145 = vmul.f32 %v2477, %v2325
    %v3146 = vmul.f32 %v2478, %v2326
    %v3147 = vmul.f32 %v2479, %v2327
    %v3148 = vmul.f32 %v2480, %v2336
    %v3149 = vmul.f32 %v2481, %v2337
    %v3150 = vmul.f32 %v2482, %v2338
    %v3151 = vmul.f32 %v2483, %v2339
    %v3152 = vmul.f32 %v2484, %v2340
    %v3153 = vmul.f32 %v2485, %v2341
    %v3154 = vmul.f32 %v2486, %v2342
    %v3155 = vmul.f32 %v2487, %v2343
    %v3156 = vmul.f32 %v2488, %v2352
    %v3157 = vmul.f32 %v2489, %v2353
    %v3158 = vmul.f32 %v2490, %v2354
    %v3159 = vmul.f32 %v2491, %v2355
    %v3160 = vmul.f32 %v2492, %v2356
    %v3161 = vmul.f32 %v2493, %v2357
    %v3162 = vmul.f32 %v2494, %v2358
    %v3163 = vmul.f32 %v2495, %v2359
    %v3164 = vmul.f32 %v2496, %v2368
    %v3165 = vmul.f32 %v2497, %v2369
    %v3166 = vmul.f32 %v2498, %v2370
    %v3167 = vmul.f32 %v2499, %v2371
    %v3168 = vmul.f32 %v2500, %v2372
    %v3169 = vmul.f32 %v2501, %v2373
    %v3170 = vmul.f32 %v2502, %v2374
    %v3171 = vmul.f32 %v2503, %v2375
    %v3172 = vsel %vm2505, %v3108, 0.0
    %3173 = vadd.xlane.f32.xlu0 %v3172
    %v3174 = vpop.xlane.xlu0 %3173
    %v3175 = vsel %vm2505, %v3109, 0.0
    %3176 = vadd.xlane.f32.xlu0 %v3175
    %v3177 = vpop.xlane.xlu0 %3176
    %v3178 = vsel %vm2505, %v3110, 0.0
    %3179 = vadd.xlane.f32.xlu0 %v3178
    %v3180 = vpop.xlane.xlu0 %3179
    %v3181 = vsel %vm2505, %v3111, 0.0
    %3182 = vadd.xlane.f32.xlu0 %v3181
    %v3183 = vpop.xlane.xlu0 %3182
    %v3184 = vsel %vm2505, %v3112, 0.0
    %3185 = vadd.xlane.f32.xlu0 %v3184
    %v3186 = vpop.xlane.xlu0 %3185
    %v3187 = vsel %vm2505, %v3113, 0.0
    %3188 = vadd.xlane.f32.xlu0 %v3187
    %v3189 = vpop.xlane.xlu0 %3188
    %v3190 = vsel %vm2505, %v3114, 0.0
    %3191 = vadd.xlane.f32.xlu0 %v3190
    %v3192 = vpop.xlane.xlu0 %3191
    %v3193 = vsel %vm2505, %v3115, 0.0
    %3194 = vadd.xlane.f32.xlu0 %v3193
    %v3195 = vpop.xlane.xlu0 %3194
    %v3196 = vsel %vm2505, %v3116, 0.0
    %3197 = vadd.xlane.f32.xlu0 %v3196
    %v3198 = vpop.xlane.xlu0 %3197
    %v3199 = vsel %vm2505, %v3117, 0.0
    %3200 = vadd.xlane.f32.xlu0 %v3199
    %v3201 = vpop.xlane.xlu0 %3200
    %v3202 = vsel %vm2505, %v3118, 0.0
    %3203 = vadd.xlane.f32.xlu0 %v3202
    %v3204 = vpop.xlane.xlu0 %3203
    %v3205 = vsel %vm2505, %v3119, 0.0
    %3206 = vadd.xlane.f32.xlu0 %v3205
    %v3207 = vpop.xlane.xlu0 %3206
    %v3208 = vsel %vm2505, %v3120, 0.0
    %3209 = vadd.xlane.f32.xlu0 %v3208
    %v3210 = vpop.xlane.xlu0 %3209
    %v3211 = vsel %vm2505, %v3121, 0.0
    %3212 = vadd.xlane.f32.xlu0 %v3211
    %v3213 = vpop.xlane.xlu0 %3212
    %v3214 = vsel %vm2505, %v3122, 0.0
    %3215 = vadd.xlane.f32.xlu0 %v3214
    %v3216 = vpop.xlane.xlu0 %3215
    %v3217 = vsel %vm2505, %v3123, 0.0
    %3218 = vadd.xlane.f32.xlu0 %v3217
    %v3219 = vpop.xlane.xlu0 %3218
    %v3220 = vsel %vm2505, %v3124, 0.0
    %3221 = vadd.xlane.f32.xlu0 %v3220
    %v3222 = vpop.xlane.xlu0 %3221
    %v3223 = vsel %vm2505, %v3125, 0.0
    %3224 = vadd.xlane.f32.xlu0 %v3223
    %v3225 = vpop.xlane.xlu0 %3224
    %v3226 = vsel %vm2505, %v3126, 0.0
    %3227 = vadd.xlane.f32.xlu0 %v3226
    %v3228 = vpop.xlane.xlu0 %3227
    %v3229 = vsel %vm2505, %v3127, 0.0
    %3230 = vadd.xlane.f32.xlu0 %v3229
    %v3231 = vpop.xlane.xlu0 %3230
    %v3232 = vsel %vm2505, %v3128, 0.0
    %3233 = vadd.xlane.f32.xlu0 %v3232
    %v3234 = vpop.xlane.xlu0 %3233
    %v3235 = vsel %vm2505, %v3129, 0.0
    %3236 = vadd.xlane.f32.xlu0 %v3235
    %v3237 = vpop.xlane.xlu0 %3236
    %v3238 = vsel %vm2505, %v3130, 0.0
    %3239 = vadd.xlane.f32.xlu0 %v3238
    %v3240 = vpop.xlane.xlu0 %3239
    %v3241 = vsel %vm2505, %v3131, 0.0
    %3242 = vadd.xlane.f32.xlu0 %v3241
    %v3243 = vpop.xlane.xlu0 %3242
    %v3244 = vsel %vm2505, %v3132, 0.0
    %3245 = vadd.xlane.f32.xlu0 %v3244
    %v3246 = vpop.xlane.xlu0 %3245
    %v3247 = vsel %vm2505, %v3133, 0.0
    %3248 = vadd.xlane.f32.xlu0 %v3247
    %v3249 = vpop.xlane.xlu0 %3248
    %v3250 = vsel %vm2505, %v3134, 0.0
    %3251 = vadd.xlane.f32.xlu0 %v3250
    %v3252 = vpop.xlane.xlu0 %3251
    %v3253 = vsel %vm2505, %v3135, 0.0
    %3254 = vadd.xlane.f32.xlu0 %v3253
    %v3255 = vpop.xlane.xlu0 %3254
    %v3256 = vsel %vm2505, %v3136, 0.0
    %3257 = vadd.xlane.f32.xlu0 %v3256
    %v3258 = vpop.xlane.xlu0 %3257
    %v3259 = vsel %vm2505, %v3137, 0.0
    %3260 = vadd.xlane.f32.xlu0 %v3259
    %v3261 = vpop.xlane.xlu0 %3260
    %v3262 = vsel %vm2505, %v3138, 0.0
    %3263 = vadd.xlane.f32.xlu0 %v3262
    %v3264 = vpop.xlane.xlu0 %3263
    %v3265 = vsel %vm2505, %v3139, 0.0
    %3266 = vadd.xlane.f32.xlu0 %v3265
    %v3267 = vpop.xlane.xlu0 %3266
    %v3268 = vsel %vm2505, %v3140, 0.0
    %3269 = vadd.xlane.f32.xlu0 %v3268
    %v3270 = vpop.xlane.xlu0 %3269
    %v3271 = vsel %vm2505, %v3141, 0.0
    %3272 = vadd.xlane.f32.xlu0 %v3271
    %v3273 = vpop.xlane.xlu0 %3272
    %v3274 = vsel %vm2505, %v3142, 0.0
    %3275 = vadd.xlane.f32.xlu0 %v3274
    %v3276 = vpop.xlane.xlu0 %3275
    %v3277 = vsel %vm2505, %v3143, 0.0
    %3278 = vadd.xlane.f32.xlu0 %v3277
    %v3279 = vpop.xlane.xlu0 %3278
    %v3280 = vsel %vm2505, %v3144, 0.0
    %3281 = vadd.xlane.f32.xlu0 %v3280
    %v3282 = vpop.xlane.xlu0 %3281
    %v3283 = vsel %vm2505, %v3145, 0.0
    %3284 = vadd.xlane.f32.xlu0 %v3283
    %v3285 = vpop.xlane.xlu0 %3284
    %v3286 = vsel %vm2505, %v3146, 0.0
    %3287 = vadd.xlane.f32.xlu0 %v3286
    %v3288 = vpop.xlane.xlu0 %3287
    %v3289 = vsel %vm2505, %v3147, 0.0
    %3290 = vadd.xlane.f32.xlu0 %v3289
    %v3291 = vpop.xlane.xlu0 %3290
    %v3292 = vsel %vm2505, %v3148, 0.0
    %3293 = vadd.xlane.f32.xlu0 %v3292
    %v3294 = vpop.xlane.xlu0 %3293
    %v3295 = vsel %vm2505, %v3149, 0.0
    %3296 = vadd.xlane.f32.xlu0 %v3295
    %v3297 = vpop.xlane.xlu0 %3296
    %v3298 = vsel %vm2505, %v3150, 0.0
    %3299 = vadd.xlane.f32.xlu0 %v3298
    %v3300 = vpop.xlane.xlu0 %3299
    %v3301 = vsel %vm2505, %v3151, 0.0
    %3302 = vadd.xlane.f32.xlu0 %v3301
    %v3303 = vpop.xlane.xlu0 %3302
    %v3304 = vsel %vm2505, %v3152, 0.0
    %3305 = vadd.xlane.f32.xlu0 %v3304
    %v3306 = vpop.xlane.xlu0 %3305
    %v3307 = vsel %vm2505, %v3153, 0.0
    %3308 = vadd.xlane.f32.xlu0 %v3307
    %v3309 = vpop.xlane.xlu0 %3308
    %v3310 = vsel %vm2505, %v3154, 0.0
    %3311 = vadd.xlane.f32.xlu0 %v3310
    %v3312 = vpop.xlane.xlu0 %3311
    %v3313 = vsel %vm2505, %v3155, 0.0
    %3314 = vadd.xlane.f32.xlu0 %v3313
    %v3315 = vpop.xlane.xlu0 %3314
    %v3316 = vsel %vm2505, %v3156, 0.0
    %3317 = vadd.xlane.f32.xlu0 %v3316
    %v3318 = vpop.xlane.xlu0 %3317
    %v3319 = vsel %vm2505, %v3157, 0.0
    %3320 = vadd.xlane.f32.xlu0 %v3319
    %v3321 = vpop.xlane.xlu0 %3320
    %v3322 = vsel %vm2505, %v3158, 0.0
    %3323 = vadd.xlane.f32.xlu0 %v3322
    %v3324 = vpop.xlane.xlu0 %3323
    %v3325 = vsel %vm2505, %v3159, 0.0
    %3326 = vadd.xlane.f32.xlu0 %v3325
    %v3327 = vpop.xlane.xlu0 %3326
    %v3328 = vsel %vm2505, %v3160, 0.0
    %3329 = vadd.xlane.f32.xlu0 %v3328
    %v3330 = vpop.xlane.xlu0 %3329
    %v3331 = vsel %vm2505, %v3161, 0.0
    %3332 = vadd.xlane.f32.xlu0 %v3331
    %v3333 = vpop.xlane.xlu0 %3332
    %v3334 = vsel %vm2505, %v3162, 0.0
    %3335 = vadd.xlane.f32.xlu0 %v3334
    %v3336 = vpop.xlane.xlu0 %3335
    %v3337 = vsel %vm2505, %v3163, 0.0
    %3338 = vadd.xlane.f32.xlu0 %v3337
    %v3339 = vpop.xlane.xlu0 %3338
    %v3340 = vsel %vm2505, %v3164, 0.0
    %3341 = vadd.xlane.f32.xlu0 %v3340
    %v3342 = vpop.xlane.xlu0 %3341
    %v3343 = vsel %vm2505, %v3165, 0.0
    %3344 = vadd.xlane.f32.xlu0 %v3343
    %v3345 = vpop.xlane.xlu0 %3344
    %v3346 = vsel %vm2505, %v3166, 0.0
    %3347 = vadd.xlane.f32.xlu0 %v3346
    %v3348 = vpop.xlane.xlu0 %3347
    %v3349 = vsel %vm2505, %v3167, 0.0
    %3350 = vadd.xlane.f32.xlu0 %v3349
    %v3351 = vpop.xlane.xlu0 %3350
    %v3352 = vsel %vm2505, %v3168, 0.0
    %3353 = vadd.xlane.f32.xlu0 %v3352
    %v3354 = vpop.xlane.xlu0 %3353
    %v3355 = vsel %vm2505, %v3169, 0.0
    %3356 = vadd.xlane.f32.xlu0 %v3355
    %v3357 = vpop.xlane.xlu0 %3356
    %v3358 = vsel %vm2505, %v3170, 0.0
    %3359 = vadd.xlane.f32.xlu0 %v3358
    %v3360 = vpop.xlane.xlu0 %3359
    %v3361 = vsel %vm2505, %v3171, 0.0
    %3362 = vadd.xlane.f32.xlu0 %v3361
    %v3363 = vpop.xlane.xlu0 %3362
    %v3428 = vlaneseq
    %v3429 = vshrl.u32 %v3428, 7
    %v3430 = vsub.s32 %v2763, %v3429
    %v3431 = vrot.slane %v3174, %v3430
    %v3432 = vlaneseq
    %v3433 = vshrl.u32 %v3432, 7
    %v3434 = vsub.s32 %v2768, %v3433
    %v3435 = vrot.slane %v3177, %v3434
    %v3436 = vsel %vm2773, %v3435, %v3431
    %v3437 = vlaneseq
    %v3438 = vshrl.u32 %v3437, 7
    %v3439 = vsub.s32 %v2775, %v3438
    %v3440 = vrot.slane %v3180, %v3439
    %v3441 = vsel %vm2780, %v3440, %v3436
    %v3442 = vlaneseq
    %v3443 = vshrl.u32 %v3442, 7
    %v3444 = vsub.s32 %v2782, %v3443
    %v3445 = vrot.slane %v3183, %v3444
    %v3446 = vsel %vm2787, %v3445, %v3441
    %v3447 = vlaneseq
    %v3448 = vshrl.u32 %v3447, 7
    %v3449 = vsub.s32 %v2789, %v3448
    %v3450 = vrot.slane %v3186, %v3449
    %v3451 = vsel %vm2794, %v3450, %v3446
    %v3452 = vlaneseq
    %v3453 = vshrl.u32 %v3452, 7
    %v3454 = vsub.s32 %v2796, %v3453
    %v3455 = vrot.slane %v3189, %v3454
    %v3456 = vsel %vm2801, %v3455, %v3451
    %v3457 = vlaneseq
    %v3458 = vshrl.u32 %v3457, 7
    %v3459 = vsub.s32 %v2803, %v3458
    %v3460 = vrot.slane %v3192, %v3459
    %v3461 = vsel %vm2808, %v3460, %v3456
    %v3462 = vlaneseq
    %v3463 = vshrl.u32 %v3462, 7
    %v3464 = vsub.s32 %v2810, %v3463
    %v3465 = vrot.slane %v3195, %v3464
    %v3466 = vsel %vm2815, %v3465, %v3461
    %v3467 = vlaneseq
    %v3468 = vshrl.u32 %v3467, 7
    %v3469 = vsub.s32 %v2763, %v3468
    %v3470 = vrot.slane %v3198, %v3469
    %v3471 = vlaneseq
    %v3472 = vshrl.u32 %v3471, 7
    %v3473 = vsub.s32 %v2768, %v3472
    %v3474 = vrot.slane %v3201, %v3473
    %v3475 = vsel %vm2773, %v3474, %v3470
    %v3476 = vlaneseq
    %v3477 = vshrl.u32 %v3476, 7
    %v3478 = vsub.s32 %v2775, %v3477
    %v3479 = vrot.slane %v3204, %v3478
    %v3480 = vsel %vm2780, %v3479, %v3475
    %v3481 = vlaneseq
    %v3482 = vshrl.u32 %v3481, 7
    %v3483 = vsub.s32 %v2782, %v3482
    %v3484 = vrot.slane %v3207, %v3483
    %v3485 = vsel %vm2787, %v3484, %v3480
    %v3486 = vlaneseq
    %v3487 = vshrl.u32 %v3486, 7
    %v3488 = vsub.s32 %v2789, %v3487
    %v3489 = vrot.slane %v3210, %v3488
    %v3490 = vsel %vm2794, %v3489, %v3485
    %v3491 = vlaneseq
    %v3492 = vshrl.u32 %v3491, 7
    %v3493 = vsub.s32 %v2796, %v3492
    %v3494 = vrot.slane %v3213, %v3493
    %v3495 = vsel %vm2801, %v3494, %v3490
    %v3496 = vlaneseq
    %v3497 = vshrl.u32 %v3496, 7
    %v3498 = vsub.s32 %v2803, %v3497
    %v3499 = vrot.slane %v3216, %v3498
    %v3500 = vsel %vm2808, %v3499, %v3495
    %v3501 = vlaneseq
    %v3502 = vshrl.u32 %v3501, 7
    %v3503 = vsub.s32 %v2810, %v3502
    %v3504 = vrot.slane %v3219, %v3503
    %v3505 = vsel %vm2815, %v3504, %v3500
    %v3506 = vlaneseq
    %v3507 = vshrl.u32 %v3506, 7
    %v3508 = vsub.s32 %v2763, %v3507
    %v3509 = vrot.slane %v3222, %v3508
    %v3510 = vlaneseq
    %v3511 = vshrl.u32 %v3510, 7
    %v3512 = vsub.s32 %v2768, %v3511
    %v3513 = vrot.slane %v3225, %v3512
    %v3514 = vsel %vm2773, %v3513, %v3509
    %v3515 = vlaneseq
    %v3516 = vshrl.u32 %v3515, 7
    %v3517 = vsub.s32 %v2775, %v3516
    %v3518 = vrot.slane %v3228, %v3517
    %v3519 = vsel %vm2780, %v3518, %v3514
    %v3520 = vlaneseq
    %v3521 = vshrl.u32 %v3520, 7
    %v3522 = vsub.s32 %v2782, %v3521
    %v3523 = vrot.slane %v3231, %v3522
    %v3524 = vsel %vm2787, %v3523, %v3519
    %v3525 = vlaneseq
    %v3526 = vshrl.u32 %v3525, 7
    %v3527 = vsub.s32 %v2789, %v3526
    %v3528 = vrot.slane %v3234, %v3527
    %v3529 = vsel %vm2794, %v3528, %v3524
    %v3530 = vlaneseq
    %v3531 = vshrl.u32 %v3530, 7
    %v3532 = vsub.s32 %v2796, %v3531
    %v3533 = vrot.slane %v3237, %v3532
    %v3534 = vsel %vm2801, %v3533, %v3529
    %v3535 = vlaneseq
    %v3536 = vshrl.u32 %v3535, 7
    %v3537 = vsub.s32 %v2803, %v3536
    %v3538 = vrot.slane %v3240, %v3537
    %v3539 = vsel %vm2808, %v3538, %v3534
    %v3540 = vlaneseq
    %v3541 = vshrl.u32 %v3540, 7
    %v3542 = vsub.s32 %v2810, %v3541
    %v3543 = vrot.slane %v3243, %v3542
    %v3544 = vsel %vm2815, %v3543, %v3539
    %v3545 = vlaneseq
    %v3546 = vshrl.u32 %v3545, 7
    %v3547 = vsub.s32 %v2763, %v3546
    %v3548 = vrot.slane %v3246, %v3547
    %v3549 = vlaneseq
    %v3550 = vshrl.u32 %v3549, 7
    %v3551 = vsub.s32 %v2768, %v3550
    %v3552 = vrot.slane %v3249, %v3551
    %v3553 = vsel %vm2773, %v3552, %v3548
    %v3554 = vlaneseq
    %v3555 = vshrl.u32 %v3554, 7
    %v3556 = vsub.s32 %v2775, %v3555
    %v3557 = vrot.slane %v3252, %v3556
    %v3558 = vsel %vm2780, %v3557, %v3553
    %v3559 = vlaneseq
    %v3560 = vshrl.u32 %v3559, 7
    %v3561 = vsub.s32 %v2782, %v3560
    %v3562 = vrot.slane %v3255, %v3561
    %v3563 = vsel %vm2787, %v3562, %v3558
    %v3564 = vlaneseq
    %v3565 = vshrl.u32 %v3564, 7
    %v3566 = vsub.s32 %v2789, %v3565
    %v3567 = vrot.slane %v3258, %v3566
    %v3568 = vsel %vm2794, %v3567, %v3563
    %v3569 = vlaneseq
    %v3570 = vshrl.u32 %v3569, 7
    %v3571 = vsub.s32 %v2796, %v3570
    %v3572 = vrot.slane %v3261, %v3571
    %v3573 = vsel %vm2801, %v3572, %v3568
    %v3574 = vlaneseq
    %v3575 = vshrl.u32 %v3574, 7
    %v3576 = vsub.s32 %v2803, %v3575
    %v3577 = vrot.slane %v3264, %v3576
    %v3578 = vsel %vm2808, %v3577, %v3573
    %v3579 = vlaneseq
    %v3580 = vshrl.u32 %v3579, 7
    %v3581 = vsub.s32 %v2810, %v3580
    %v3582 = vrot.slane %v3267, %v3581
    %v3583 = vsel %vm2815, %v3582, %v3578
    %v3584 = vlaneseq
    %v3585 = vshrl.u32 %v3584, 7
    %v3586 = vsub.s32 %v2763, %v3585
    %v3587 = vrot.slane %v3270, %v3586
    %v3588 = vlaneseq
    %v3589 = vshrl.u32 %v3588, 7
    %v3590 = vsub.s32 %v2768, %v3589
    %v3591 = vrot.slane %v3273, %v3590
    %v3592 = vsel %vm2773, %v3591, %v3587
    %v3593 = vlaneseq
    %v3594 = vshrl.u32 %v3593, 7
    %v3595 = vsub.s32 %v2775, %v3594
    %v3596 = vrot.slane %v3276, %v3595
    %v3597 = vsel %vm2780, %v3596, %v3592
    %v3598 = vlaneseq
    %v3599 = vshrl.u32 %v3598, 7
    %v3600 = vsub.s32 %v2782, %v3599
    %v3601 = vrot.slane %v3279, %v3600
    %v3602 = vsel %vm2787, %v3601, %v3597
    %v3603 = vlaneseq
    %v3604 = vshrl.u32 %v3603, 7
    %v3605 = vsub.s32 %v2789, %v3604
    %v3606 = vrot.slane %v3282, %v3605
    %v3607 = vsel %vm2794, %v3606, %v3602
    %v3608 = vlaneseq
    %v3609 = vshrl.u32 %v3608, 7
    %v3610 = vsub.s32 %v2796, %v3609
    %v3611 = vrot.slane %v3285, %v3610
    %v3612 = vsel %vm2801, %v3611, %v3607
    %v3613 = vlaneseq
    %v3614 = vshrl.u32 %v3613, 7
    %v3615 = vsub.s32 %v2803, %v3614
    %v3616 = vrot.slane %v3288, %v3615
    %v3617 = vsel %vm2808, %v3616, %v3612
    %v3618 = vlaneseq
    %v3619 = vshrl.u32 %v3618, 7
    %v3620 = vsub.s32 %v2810, %v3619
    %v3621 = vrot.slane %v3291, %v3620
    %v3622 = vsel %vm2815, %v3621, %v3617
    %v3623 = vlaneseq
    %v3624 = vshrl.u32 %v3623, 7
    %v3625 = vsub.s32 %v2763, %v3624
    %v3626 = vrot.slane %v3294, %v3625
    %v3627 = vlaneseq
    %v3628 = vshrl.u32 %v3627, 7
    %v3629 = vsub.s32 %v2768, %v3628
    %v3630 = vrot.slane %v3297, %v3629
    %v3631 = vsel %vm2773, %v3630, %v3626
    %v3632 = vlaneseq
    %v3633 = vshrl.u32 %v3632, 7
    %v3634 = vsub.s32 %v2775, %v3633
    %v3635 = vrot.slane %v3300, %v3634
    %v3636 = vsel %vm2780, %v3635, %v3631
    %v3637 = vlaneseq
    %v3638 = vshrl.u32 %v3637, 7
    %v3639 = vsub.s32 %v2782, %v3638
    %v3640 = vrot.slane %v3303, %v3639
    %v3641 = vsel %vm2787, %v3640, %v3636
    %v3642 = vlaneseq
    %v3643 = vshrl.u32 %v3642, 7
    %v3644 = vsub.s32 %v2789, %v3643
    %v3645 = vrot.slane %v3306, %v3644
    %v3646 = vsel %vm2794, %v3645, %v3641
    %v3647 = vlaneseq
    %v3648 = vshrl.u32 %v3647, 7
    %v3649 = vsub.s32 %v2796, %v3648
    %v3650 = vrot.slane %v3309, %v3649
    %v3651 = vsel %vm2801, %v3650, %v3646
    %v3652 = vlaneseq
    %v3653 = vshrl.u32 %v3652, 7
    %v3654 = vsub.s32 %v2803, %v3653
    %v3655 = vrot.slane %v3312, %v3654
    %v3656 = vsel %vm2808, %v3655, %v3651
    %v3657 = vlaneseq
    %v3658 = vshrl.u32 %v3657, 7
    %v3659 = vsub.s32 %v2810, %v3658
    %v3660 = vrot.slane %v3315, %v3659
    %v3661 = vsel %vm2815, %v3660, %v3656
    %v3662 = vlaneseq
    %v3663 = vshrl.u32 %v3662, 7
    %v3664 = vsub.s32 %v2763, %v3663
    %v3665 = vrot.slane %v3318, %v3664
    %v3666 = vlaneseq
    %v3667 = vshrl.u32 %v3666, 7
    %v3668 = vsub.s32 %v2768, %v3667
    %v3669 = vrot.slane %v3321, %v3668
    %v3670 = vsel %vm2773, %v3669, %v3665
    %v3671 = vlaneseq
    %v3672 = vshrl.u32 %v3671, 7
    %v3673 = vsub.s32 %v2775, %v3672
    %v3674 = vrot.slane %v3324, %v3673
    %v3675 = vsel %vm2780, %v3674, %v3670
    %v3676 = vlaneseq
    %v3677 = vshrl.u32 %v3676, 7
    %v3678 = vsub.s32 %v2782, %v3677
    %v3679 = vrot.slane %v3327, %v3678
    %v3680 = vsel %vm2787, %v3679, %v3675
    %v3681 = vlaneseq
    %v3682 = vshrl.u32 %v3681, 7
    %v3683 = vsub.s32 %v2789, %v3682
    %v3684 = vrot.slane %v3330, %v3683
    %v3685 = vsel %vm2794, %v3684, %v3680
    %v3686 = vlaneseq
    %v3687 = vshrl.u32 %v3686, 7
    %v3688 = vsub.s32 %v2796, %v3687
    %v3689 = vrot.slane %v3333, %v3688
    %v3690 = vsel %vm2801, %v3689, %v3685
    %v3691 = vlaneseq
    %v3692 = vshrl.u32 %v3691, 7
    %v3693 = vsub.s32 %v2803, %v3692
    %v3694 = vrot.slane %v3336, %v3693
    %v3695 = vsel %vm2808, %v3694, %v3690
    %v3696 = vlaneseq
    %v3697 = vshrl.u32 %v3696, 7
    %v3698 = vsub.s32 %v2810, %v3697
    %v3699 = vrot.slane %v3339, %v3698
    %v3700 = vsel %vm2815, %v3699, %v3695
    %v3701 = vlaneseq
    %v3702 = vshrl.u32 %v3701, 7
    %v3703 = vsub.s32 %v2763, %v3702
    %v3704 = vrot.slane %v3342, %v3703
    %v3705 = vlaneseq
    %v3706 = vshrl.u32 %v3705, 7
    %v3707 = vsub.s32 %v2768, %v3706
    %v3708 = vrot.slane %v3345, %v3707
    %v3709 = vsel %vm2773, %v3708, %v3704
    %v3710 = vlaneseq
    %v3711 = vshrl.u32 %v3710, 7
    %v3712 = vsub.s32 %v2775, %v3711
    %v3713 = vrot.slane %v3348, %v3712
    %v3714 = vsel %vm2780, %v3713, %v3709
    %v3715 = vlaneseq
    %v3716 = vshrl.u32 %v3715, 7
    %v3717 = vsub.s32 %v2782, %v3716
    %v3718 = vrot.slane %v3351, %v3717
    %v3719 = vsel %vm2787, %v3718, %v3714
    %v3720 = vlaneseq
    %v3721 = vshrl.u32 %v3720, 7
    %v3722 = vsub.s32 %v2789, %v3721
    %v3723 = vrot.slane %v3354, %v3722
    %v3724 = vsel %vm2794, %v3723, %v3719
    %v3725 = vlaneseq
    %v3726 = vshrl.u32 %v3725, 7
    %v3727 = vsub.s32 %v2796, %v3726
    %v3728 = vrot.slane %v3357, %v3727
    %v3729 = vsel %vm2801, %v3728, %v3724
    %v3730 = vlaneseq
    %v3731 = vshrl.u32 %v3730, 7
    %v3732 = vsub.s32 %v2803, %v3731
    %v3733 = vrot.slane %v3360, %v3732
    %v3734 = vsel %vm2808, %v3733, %v3729
    %v3735 = vlaneseq
    %v3736 = vshrl.u32 %v3735, 7
    %v3737 = vsub.s32 %v2810, %v3736
    %v3738 = vrot.slane %v3363, %v3737
    %v3739 = vsel %vm2815, %v3738, %v3734
    %v3740 = vsel %vm3090, %v3505, %v3466
    %v3741 = vsel %vm3092, %v3544, %v3740
    %v3742 = vsel %vm3094, %v3583, %v3741
    %v3743 = vsel %vm3096, %v3622, %v3742
    %v3744 = vsel %vm3098, %v3661, %v3743
    %v3745 = vsel %vm3100, %v3700, %v3744
    %v3746 = vsel %vm3102, %v3739, %v3745
    %v3748 = vadd.f32 %v3107, %v3746
    %3749 = vst.msk [vmem:[#allocation2] sm:$0xff] %vm1254, %v3748
    // Predicated region
    $region22: #{tpu_custom_call.1} parent=1 // pred_check
      %p3750 = pneg %p19
    $region23: #{tpu_custom_call.1} parent=1 // pred_check_branch
      %3752 = sbr.rel (%p3750) target = $region25
    $region24: #{tpu_custom_call.1} parent=1 // pred_region
      %v3753 = vld [vmem:[#allocation2] sm:$0xff]
      %v3754 = vld [vmem:[#allocation3] sm:$0xff]
      %v3755 = vrcp.pop %v3754
      %v3756 = vmul.f32 %v3753, %v3755
      %v3757 = vld [vmem:[%s3] sm:$0xff]
      %v3758 = vld [vmem:[%s3 + $0x8] sm:$0xff]
      %v3759 = vld [vmem:[%s3 + $0x10] sm:$0xff]
      %v3760 = vld [vmem:[%s3 + $0x18] sm:$0xff]
      %v3761 = vld [vmem:[%s3 + $0x20] sm:$0xff]
      %v3762 = vld [vmem:[%s3 + $0x28] sm:$0xff]
      %v3763 = vld [vmem:[%s3 + $0x30] sm:$0xff]
      %v3764 = vld [vmem:[%s3 + $0x38] sm:$0xff]
      %v3766 = vsel %vm1254, %v3756, 0
      %3768 = vmatprep.subr.mxu0 0.0
      %3769 = vmatpush1.msra.mxu0 %v3757
      %3770 = vmatprep.subr.mxu0 0.0
      %3771 = vmatpush1.msra.mxu0 %v3758
      %3772 = vmatprep.subr.mxu0 0.0
      %3773 = vmatpush1.msra.mxu0 %v3759
      %3774 = vmatprep.subr.mxu0 0.0
      %3775 = vmatpush1.msra.mxu0 %v3760
      %3776 = vmatprep.subr.mxu0 0.0
      %3777 = vmatpush1.msra.mxu0 %v3761
      %3778 = vmatprep.subr.mxu0 0.0
      %3779 = vmatpush1.msra.mxu0 %v3762
      %3780 = vmatprep.subr.mxu0 0.0
      %3781 = vmatpush1.msra.mxu0 %v3763
      %3782 = vmatprep.subr.mxu0 0.0
      %3783 = vmatpush1.msra.mxu0 %v3764
      %3784 = vmatprep.subr.mxu0 0.0
      %3785 = vmatpush1.msra.mxu0 0.0
      %3786 = vmatprep.subr.mxu0 0.0
      %3787 = vmatpush1.msra.mxu0 0.0
      %3788 = vmatprep.subr.mxu0 0.0
      %3789 = vmatpush1.msra.mxu0 0.0
      %3790 = vmatprep.subr.mxu0 0.0
      %3791 = vmatpush1.msra.mxu0 0.0
      %3792 = vmatprep.subr.mxu0 0.0
      %3793 = vmatpush1.msra.mxu0 0.0
      %3794 = vmatprep.subr.mxu0 0.0
      %3795 = vmatpush1.msra.mxu0 0.0
      %3796 = vmatprep.subr.mxu0 0.0
      %3797 = vmatpush1.msra.mxu0 0.0
      %3798 = vmatprep.subr.mxu0 0.0
      %3799 = vmatpush1.msra.mxu0 0.0
      %3800 = vmatprep.subr.mxu0 0.0
      %3801 = vmatpush1.msra.mxu0 0.0
      %3802 = vmatprep.subr.mxu0 0.0
      %3803 = vmatpush1.msra.mxu0 0.0
      %3804 = vmatprep.subr.mxu0 0.0
      %3805 = vmatpush1.msra.mxu0 0.0
      %3806 = vmatprep.subr.mxu0 0.0
      %3807 = vmatpush1.msra.mxu0 0.0
      %3808 = vmatprep.subr.mxu0 0.0
      %3809 = vmatpush1.msra.mxu0 0.0
      %3810 = vmatprep.subr.mxu0 0.0
      %3811 = vmatpush1.msra.mxu0 0.0
      %3812 = vmatprep.subr.mxu0 0.0
      %3813 = vmatpush1.msra.mxu0 0.0
      %3814 = vmatprep.subr.mxu0 0.0
      %3815 = vmatpush1.msra.mxu0 0.0
      %3816 = vmatprep.subr.mxu0 0.0
      %3817 = vmatpush1.msra.mxu0 0.0
      %3818 = vmatprep.subr.mxu0 0.0
      %3819 = vmatpush1.msra.mxu0 0.0
      %3820 = vmatprep.subr.mxu0 0.0
      %3821 = vmatpush1.msra.mxu0 0.0
      %3822 = vmatprep.subr.mxu0 0.0
      %3823 = vmatpush1.msra.mxu0 0.0
      %3824 = vmatprep.subr.mxu0 0.0
      %3825 = vmatpush1.msra.mxu0 0.0
      %3826 = vmatprep.subr.mxu0 0.0
      %3827 = vmatpush1.msra.mxu0 0.0
      %3828 = vmatprep.subr.mxu0 0.0
      %3829 = vmatpush1.msra.mxu0 0.0
      %3830 = vmatprep.subr.mxu0 0.0
      %3831 = vmatpush1.msra.mxu0 0.0
      %3832 = vmatprep.mubr.f32.mxu0 0.0
      %3833 = vmatmul.mubr.f32.gmra.mrb[0].mxu0 %v3766
      %v3834 = vpop.f32.mrb[0].mxu0
      %v3835 = vadd.f32 0.0, %v3834
      %v3836 = vpop.f32.mrb[0].mxu0
      %3837 = vdwg.mxu0
      %3838 = vst [vmem:[#allocation4] sm:$0xff] %v3835
    $region25: #{tpu_custom_call.1} parent=1 // pred_fallthru
      _
    // Predicated region
    $region26: #{tpu_custom_call.1} parent=1 // pred_check
      _
    $region27: #{tpu_custom_call.1} parent=1 // pred_check_branch
      %3840 = sbr.rel (0) target = $region29
    $region28: #{tpu_custom_call.1} parent=1 // pred_region
      %s3842 = ssub.s32 128, 128
      %3843 = vsyncadd [#allocation5], %s3842
      %s3845 = sshll.u32 [#allocation4], 4
      %s3846 = int_to_ptr.vmem [resolvable:$true] %s3845
      %3848 = dma.vmem_to_hbm [thread:$0]  %s3846, 128, %s4, [#allocation5]
    $region29: #{tpu_custom_call.1} parent=1 // pred_fallthru
      _
    // Predicated region
    $region30: #{tpu_custom_call.1} parent=1 // pred_check
      _
    $region31: #{tpu_custom_call.1} parent=1 // pred_check_branch
      %3850 = sbr.rel (0) target = $region33
    $region32: #{tpu_custom_call.1} parent=1 // pred_region
      %3851 = dma.done [#allocation5], 128
    $region33: #{tpu_custom_call.1} parent=1 // pred_fallthru
      _
    %3852 = vsyncpa [#allocation5], 1

</llo_original>
